<compile_context>
chip_gen: v7x
topology: tpu7x:2x2x1
jax: 0.10.0
libtpu: 0.0.40
codegen_flags: <defaults>
</compile_context>

<pallas_src>
import functools
import math

import jax
import jax.numpy as jnp
from jax.experimental import pallas as pl
from jax.experimental.pallas import tpu as pltpu


# ----------------------------------------------------------------------------- kernel

def fused_forward_kernel(x_ref, at_ref, pe_ref, wqkvo_ref, w1_ref, w2_ref, vec_ref, o_ref,
                         *, n_layers, n_heads, head_dim, dim_ff):
    # x_ref:    (B, K, D)      raw input (batch, time, channel)
    # at_ref:   (L1, K)        folded Conv1d(1->16,k=4,s=2) + channel-average-pool band matrix
    # pe_ref:   (L1+1, D)      rows [0:L1] = trainable positional encoding, row L1 = conv bias row
    # wqkvo_ref:(L, D, 4D)     [wqkv^T | wo^T]
    # w1_ref:   (L, D, F)      linear1 weight^T
    # w2_ref:   (L, F, D)      linear2 weight^T
    # vec_ref:  (L, 7, W)      rows: [bq|bk|bv|bo], b1, ln1w, ln1b, b2, ln2w, ln2b  (zero padded)
    # o_ref:    (B, L1, D)
    B, K, D = x_ref.shape
    L1 = at_ref.shape[0]
    F = dim_ff
    H = n_heads
    eps = 1e-5
    scale = 1.0 / math.sqrt(head_dim)

    pe_all = pe_ref[...]                 # (L1+1, D)
    pe = pe_all[0:L1, :]                 # (L1, D)
    beff_row = pe_all[L1:L1 + 1, :]      # (1, D) conv bias broadcast row

    # ---------- stage 1: InstanceNorm1d over time + folded conv/avg-pool (lane-dense) ----------
    at = at_ref[...]                     # (L1, K)
    feats = []
    for bi in range(B):                  # static unroll, B is tiny
        xb = x_ref[bi]                                       # (K, D)
        mu = jnp.mean(xb, axis=0, keepdims=True)             # (1, D)
        xd = xb - mu
        var = jnp.mean(xd * xd, axis=0, keepdims=True)       # two-pass variance (matches PyTorch)
        xnb = xd * jax.lax.rsqrt(var + eps)                  # (K, D)
        feats.append(jnp.dot(at, xnb, preferred_element_type=jnp.float32) + beff_row)  # (L1, D)
    xc = jnp.stack(feats, axis=0)        # (B, L1, D)

    # ---------- data-dependent padding hack (batch-global, in-kernel) ----------
    v0 = jnp.sum(xc[0:1, L1 - 1:L1, 0:1])                    # scalar xc[0, -1, 0]
    eq = (xc == v0)
    cnt = jnp.sum(eq.astype(jnp.float32))
    cond = cnt >= float(D)
    xc = jnp.where(jnp.logical_and(eq, cond), 0.0, xc)

    # key-padding mask from feature 0 (before positional encoding, as in the reference)
    mask_col = (xc[:, :, 0:1] == 0.0)                        # (B, L1, 1) bool
    mask_f = mask_col.astype(jnp.float32)

    # positional encoding + zero masked rows
    xc = xc + pe
    xc = jnp.where(mask_col, 0.0, xc)

    # per-batch additive key-padding bias (L1, L1); the sublane->lane "transpose" of the
    # mask column is done with a tiny identity matmul (bulletproof on the MXU).
    ridx = jax.lax.broadcasted_iota(jnp.int32, (L1, L1), 0)
    cidx = jax.lax.broadcasted_iota(jnp.int32, (L1, L1), 1)
    eye = (ridx == cidx).astype(jnp.float32)
    ones_ll = jnp.ones((L1, L1), jnp.float32)
    bias2d = [jnp.dot(ones_ll, eye * (mask_f[bi] * (-1e30)),
                      preferred_element_type=jnp.float32) for bi in range(B)]   # each (L1, L1)

    # ---------- stage 2: both TransformerEncoderLayers, weights VMEM-resident ----------
    xf = xc.reshape(B * L1, D)           # flatten batch*seq -> row-dense matmuls
    for l in range(n_layers):            # static unroll
        wqkvo = wqkvo_ref[l]             # (D, 4D)
        vec = vec_ref[l]                 # (7, W)
        b_qkv = vec[0:1, 0:3 * D]
        b_o = vec[0:1, 3 * D:4 * D]
        b1 = vec[1:2, 0:F]
        ln1w = vec[2:3, 0:D]
        ln1b = vec[3:4, 0:D]
        b2 = vec[4:5, 0:D]
        ln2w = vec[5:6, 0:D]
        ln2b = vec[6:7, 0:D]

        # --- fused QKV projection: one (B*S, D) @ (D, 3D) matmul ---
        qkv = jnp.dot(xf, wqkvo[:, 0:3 * D], preferred_element_type=jnp.float32) + b_qkv

        ctx_rows = []
        for bi in range(B):              # static; attention is per-sequence
            r0 = bi * L1
            qb = qkv[r0:r0 + L1, :]                                      # (L1, 3D)
            qh = jnp.stack([qb[:, h * head_dim:(h + 1) * head_dim]
                            for h in range(H)], axis=0)                  # (H, L1, hd)
            kh = jnp.stack([qb[:, D + h * head_dim:D + (h + 1) * head_dim]
                            for h in range(H)], axis=0)
            vh = jnp.stack([qb[:, 2 * D + h * head_dim:2 * D + (h + 1) * head_dim]
                            for h in range(H)], axis=0)

            sc = jnp.einsum('hqd,hkd->hqk', qh, kh,
                            preferred_element_type=jnp.float32) * scale  # (H, L1, L1)
            sc = sc + bias2d[bi]
            sc = sc - jnp.max(sc, axis=-1, keepdims=True)
            p = jnp.exp(sc)
            p = p / jnp.sum(p, axis=-1, keepdims=True)                   # exact softmax
            ctx = jnp.einsum('hqk,hkd->hqd', p, vh,
                             preferred_element_type=jnp.float32)         # (H, L1, hd)
            ctx_rows.append(jnp.concatenate([ctx[h] for h in range(H)], axis=-1))  # (L1, D)
        ctx_all = ctx_rows[0] if B == 1 else jnp.concatenate(ctx_rows, axis=0)     # (B*L1, D)
        attn = jnp.dot(ctx_all, wqkvo[:, 3 * D:4 * D],
                       preferred_element_type=jnp.float32) + b_o

        # residual + LayerNorm1 (two-pass variance)
        x1 = xf + attn
        mu1 = jnp.mean(x1, axis=-1, keepdims=True)
        xd1 = x1 - mu1
        v1 = jnp.mean(xd1 * xd1, axis=-1, keepdims=True)
        x1 = xd1 * jax.lax.rsqrt(v1 + eps) * ln1w + ln1b

        # --- feed-forward ---
        h1 = jnp.maximum(jnp.dot(x1, w1_ref[l], preferred_element_type=jnp.float32) + b1, 0.0)
        h2 = jnp.dot(h1, w2_ref[l], preferred_element_type=jnp.float32) + b2

        # residual + LayerNorm2
        x2 = x1 + h2
        mu2 = jnp.mean(x2, axis=-1, keepdims=True)
        xd2 = x2 - mu2
        v2 = jnp.mean(xd2 * xd2, axis=-1, keepdims=True)
        xf = xd2 * jax.lax.rsqrt(v2 + eps) * ln2w + ln2b

    out = jnp.where(mask_col, 0.0, xf.reshape(B, L1, D))
    o_ref[...] = out


# ----------------------------------------------------------------------------- wrapper

def _full_spec(shape):
    return pl.BlockSpec(shape, lambda *_: (0,) * len(shape))


def cnn_transformer_forward(x, packed, *, d_model, n_layers, n_heads, dim_feedforward):
    b, k, d = x.shape
    assert d == d_model
    L1 = (k - 4) // 2 + 1
    assert packed["at"].shape == (L1, k)

    kernel = functools.partial(fused_forward_kernel,
                               n_layers=n_layers, n_heads=n_heads,
                               head_dim=d_model // n_heads, dim_ff=dim_feedforward)
    out = pl.pallas_call(
        kernel,
        out_shape=jax.ShapeDtypeStruct((b, L1, d), jnp.float32),
        grid=(1,),
        in_specs=[_full_spec(x.shape),
                  _full_spec(packed["at"].shape),
                  _full_spec(packed["pe"].shape),
                  _full_spec(packed["wqkvo"].shape),
                  _full_spec(packed["w1t"].shape),
                  _full_spec(packed["w2t"].shape),
                  _full_spec(packed["vec"].shape)],
        out_specs=_full_spec((b, L1, d)),
        compiler_params=pltpu.CompilerParams(dimension_semantics=("arbitrary",)),
    )(x, packed["at"], packed["pe"], packed["wqkvo"], packed["w1t"], packed["w2t"], packed["vec"])
    return jnp.transpose(out, (0, 2, 1))                       # (b, d_model, L1)


# ----------------------------------------------------------------------------- param packing (once)

def pack_params(params, seq_len, d_model, n_heads, dim_feedforward):
    """Hoisted, one-time packing of all weights into a few dense slabs (review items 7 & 8)."""
    k = seq_len
    D, F = d_model, dim_feedforward
    L1 = (k - 4) // 2 + 1

    # fold Conv1d(1->16,k=4,s=2) + channel-average pool into one (L1, K) band matrix
    w_eff = jnp.mean(params["conv_w"], axis=0)                 # (4,)  mean over 16 out channels
    b_eff = jnp.mean(params["conv_b"])                         # scalar
    t = jnp.arange(L1)[:, None]
    j = jnp.arange(k)[None, :]
    rel = j - 2 * t
    at = jnp.where((rel >= 0) & (rel < 4), w_eff[jnp.clip(rel, 0, 3)], 0.0).astype(jnp.float32)

    # positional encoding slab: rows [0:L1] = pe, row L1 = conv-bias row (broadcast-ready)
    pe = params["pe"][0, :L1, :]
    pe_slab = jnp.concatenate([pe, jnp.full((1, D), b_eff)], axis=0).astype(jnp.float32)

    W = max(4 * D, F)

    def row(v):
        v = v.reshape(1, -1)
        return jnp.pad(v, ((0, 0), (0, W - v.shape[1])))

    wqkvo, w1t, w2t, vec = [], [], [], []
    for lp in params["layers"]:
        wqkvo.append(jnp.concatenate([lp["wqkv"].T, lp["wo"].T], axis=1))   # (D, 4D)
        w1t.append(lp["w1"].T)                                              # (D, F)
        w2t.append(lp["w2"].T)                                              # (F, D)
        vec.append(jnp.concatenate([
            row(jnp.concatenate([lp["bqkv"], lp["bo"]], axis=1)),           # row 0: [bq|bk|bv|bo]
            row(lp["b1"]),                                                   # row 1
            row(lp["ln1w"]), row(lp["ln1b"]),                                # rows 2-3
            row(lp["b2"]),                                                   # row 4
            row(lp["ln2w"]), row(lp["ln2b"]),                                # rows 5-6
        ], axis=0))                                                          # (7, W)

    return {
        "at": at,
        "pe": pe_slab,
        "wqkvo": jnp.stack(wqkvo).astype(jnp.float32),
        "w1t": jnp.stack(w1t).astype(jnp.float32),
        "w2t": jnp.stack(w2t).astype(jnp.float32),
        "vec": jnp.stack(vec).astype(jnp.float32),
    }


# ----------------------------------------------------------------------------- params

def init_params(key, d_model, n_layers, n_heads, dim_feedforward, max_len):
    new_len = (max_len - 4) // 2 + 1
    keys = jax.random.split(key, 3 + n_layers)
    p = {
        "conv_w": jax.random.normal(keys[0], (16, 4), jnp.float32) * 0.3,   # Conv1d(1,16,4) weight (16,1,4) squeezed
        "conv_b": jax.random.normal(keys[1], (1, 16), jnp.float32) * 0.1,
        "pe": jax.random.normal(keys[2], (1, new_len, d_model), jnp.float32) * 0.02,
        "layers": [],
    }
    for i in range(n_layers):
        lk = jax.random.split(keys[3 + i], 4)
        s_d = 1.0 / math.sqrt(d_model)
        s_f = 1.0 / math.sqrt(dim_feedforward)
        p["layers"].append(dict(
            wqkv=jax.random.normal(lk[0], (3 * d_model, d_model), jnp.float32) * s_d,
            bqkv=jnp.zeros((1, 3 * d_model), jnp.float32),
            wo=jax.random.normal(lk[1], (d_model, d_model), jnp.float32) * s_d,
            bo=jnp.zeros((1, d_model), jnp.float32),
            ln1w=jnp.ones((1, d_model), jnp.float32),
            ln1b=jnp.zeros((1, d_model), jnp.float32),
            w1=jax.random.normal(lk[2], (dim_feedforward, d_model), jnp.float32) * s_d,
            b1=jnp.zeros((1, dim_feedforward), jnp.float32),
            w2=jax.random.normal(lk[3], (d_model, dim_feedforward), jnp.float32) * s_f,
            b2=jnp.zeros((1, d_model), jnp.float32),
            ln2w=jnp.ones((1, d_model), jnp.float32),
            ln2b=jnp.zeros((1, d_model), jnp.float32),
        ))
    return p


# ----------------------------------------------------------------------------- main

if __name__ == "__main__":
    d_model, n_layers, n_heads, dim_feedforward, max_len = 32, 2, 4, 64, 18
    batch = 2

    key = jax.random.PRNGKey(0)
    kp, kx = jax.random.split(key)
    params = init_params(kp, d_model, n_layers, n_heads, dim_feedforward, max_len)
    packed = pack_params(params, max_len, d_model, n_heads, dim_feedforward)   # one-time, hoisted
    x = jax.random.normal(kx, (batch, max_len, d_model), jnp.float32)          # (b, k, d_model)

    fwd = jax.jit(functools.partial(cnn_transformer_forward,
                                    d_model=d_model, n_layers=n_layers,
                                    n_heads=n_heads, dim_feedforward=dim_feedforward))
    out = jax.block_until_ready(fwd(x, packed))

    new_len = (max_len - 4) // 2 + 1
    assert out.shape == (batch, d_model, new_len), out.shape
    assert bool(jnp.all(jnp.isfinite(out)))
    print("KERNEL_OK")
</pallas_src>

<mosaic_0001>
module attributes {stable_mosaic.version = 11 : i64} {
  func.func @fused_forward_kernel(%arg0: i32, %arg1: memref<2x18x32xf32, #tpu.memory_space<vmem>>, %arg2: memref<8x18xf32, #tpu.memory_space<vmem>>, %arg3: memref<9x32xf32, #tpu.memory_space<vmem>>, %arg4: memref<2x32x128xf32, #tpu.memory_space<vmem>>, %arg5: memref<2x32x64xf32, #tpu.memory_space<vmem>>, %arg6: memref<2x64x32xf32, #tpu.memory_space<vmem>>, %arg7: memref<2x7x128xf32, #tpu.memory_space<vmem>>, %arg8: memref<2x8x32xf32, #tpu.memory_space<vmem>>) attributes {dimension_semantics = [#tpu.dimension_semantics<arbitrary>], iteration_bounds = array<i64: 1>, scalar_prefetch = 0 : i64, scratch_operands = 0 : i64, tpu.core_type = #tpu.core_type<tc>, window_params = [{pipeline_mode = #tpu.pipeline_mode<synchronous>, transform_indices = @transform_0, window_bounds = array<i64: 2, 18, 32>}, {pipeline_mode = #tpu.pipeline_mode<synchronous>, transform_indices = @transform_1, window_bounds = array<i64: 8, 18>}, {pipeline_mode = #tpu.pipeline_mode<synchronous>, transform_indices = @transform_2, window_bounds = array<i64: 9, 32>}, {pipeline_mode = #tpu.pipeline_mode<synchronous>, transform_indices = @transform_3, window_bounds = array<i64: 2, 32, 128>}, {pipeline_mode = #tpu.pipeline_mode<synchronous>, transform_indices = @transform_4, window_bounds = array<i64: 2, 32, 64>}, {pipeline_mode = #tpu.pipeline_mode<synchronous>, transform_indices = @transform_5, window_bounds = array<i64: 2, 64, 32>}, {pipeline_mode = #tpu.pipeline_mode<synchronous>, transform_indices = @transform_6, window_bounds = array<i64: 2, 7, 128>}, {pipeline_mode = #tpu.pipeline_mode<synchronous>, transform_indices = @transform_7, window_bounds = array<i64: 2, 8, 32>}]} {
    %c0 = arith.constant 0 : index
    %c0_0 = arith.constant 0 : index
    %0 = vector.load %arg3[%c0, %c0_0] : memref<9x32xf32, #tpu.memory_space<vmem>>, vector<9x32xf32>
    %1 = vector.extract_strided_slice %0 {offsets = [0, 0], sizes = [8, 32], strides = [1, 1]} : vector<9x32xf32> to vector<8x32xf32>
    %2 = vector.extract_strided_slice %0 {offsets = [8, 0], sizes = [1, 32], strides = [1, 1]} : vector<9x32xf32> to vector<1x32xf32>
    %c0_1 = arith.constant 0 : index
    %c0_2 = arith.constant 0 : index
    %3 = vector.load %arg2[%c0_1, %c0_2] : memref<8x18xf32, #tpu.memory_space<vmem>>, vector<8x18xf32>
    %c0_3 = arith.constant 0 : index
    %c0_4 = arith.constant 0 : index
    %c0_5 = arith.constant 0 : index
    %4 = vector.load %arg1[%c0_3, %c0_4, %c0_5] : memref<2x18x32xf32, #tpu.memory_space<vmem>>, vector<1x18x32xf32>
    %5 = vector.shape_cast %4 : vector<1x18x32xf32> to vector<18x32xf32>
    %cst = arith.constant dense<0.000000e+00> : vector<32xf32>
    %6 = vector.multi_reduction <add>, %5, %cst [0] : vector<18x32xf32> to vector<32xf32>
    %7 = vector.shape_cast %6 : vector<32xf32> to vector<1x32xf32>
    %cst_6 = arith.constant 1.800000e+01 : f32
    %8 = vector.broadcast %cst_6 : f32 to vector<1x32xf32>
    %9 = arith.divf %7, %8 : vector<1x32xf32>
    %10 = vector.broadcast %9 : vector<1x32xf32> to vector<18x32xf32>
    %11 = arith.subf %5, %10 : vector<18x32xf32>
    %12 = arith.mulf %11, %11 : vector<18x32xf32>
    %cst_7 = arith.constant dense<0.000000e+00> : vector<32xf32>
    %13 = vector.multi_reduction <add>, %12, %cst_7 [0] : vector<18x32xf32> to vector<32xf32>
    %14 = vector.shape_cast %13 : vector<32xf32> to vector<1x32xf32>
    %cst_8 = arith.constant 1.800000e+01 : f32
    %15 = vector.broadcast %cst_8 : f32 to vector<1x32xf32>
    %16 = arith.divf %14, %15 : vector<1x32xf32>
    %cst_9 = arith.constant 9.99999974E-6 : f32
    %17 = vector.broadcast %cst_9 : f32 to vector<1x32xf32>
    %18 = arith.addf %16, %17 : vector<1x32xf32>
    %19 = math.rsqrt %18 : vector<1x32xf32>
    %20 = vector.broadcast %19 : vector<1x32xf32> to vector<18x32xf32>
    %21 = arith.mulf %11, %20 : vector<18x32xf32>
    %cst_10 = arith.constant dense<0.000000e+00> : vector<8x32xf32>
    %22 = tpu.matmul %3, %21, %cst_10 {dimension_numbers = #tpu.dot_dimension_numbers<[1], [0], [0], [1], [0, 0, 1, 1], [], []>} : vector<8x18xf32>, vector<18x32xf32>, vector<8x32xf32> -> vector<8x32xf32>
    %23 = vector.broadcast %2 : vector<1x32xf32> to vector<8x32xf32>
    %24 = arith.addf %22, %23 : vector<8x32xf32>
    %c1 = arith.constant 1 : index
    %c0_11 = arith.constant 0 : index
    %c0_12 = arith.constant 0 : index
    %25 = vector.load %arg1[%c1, %c0_11, %c0_12] : memref<2x18x32xf32, #tpu.memory_space<vmem>>, vector<1x18x32xf32>
    %26 = vector.shape_cast %25 : vector<1x18x32xf32> to vector<18x32xf32>
    %cst_13 = arith.constant dense<0.000000e+00> : vector<32xf32>
    %27 = vector.multi_reduction <add>, %26, %cst_13 [0] : vector<18x32xf32> to vector<32xf32>
    %28 = vector.shape_cast %27 : vector<32xf32> to vector<1x32xf32>
    %cst_14 = arith.constant 1.800000e+01 : f32
    %29 = vector.broadcast %cst_14 : f32 to vector<1x32xf32>
    %30 = arith.divf %28, %29 : vector<1x32xf32>
    %31 = vector.broadcast %30 : vector<1x32xf32> to vector<18x32xf32>
    %32 = arith.subf %26, %31 : vector<18x32xf32>
    %33 = arith.mulf %32, %32 : vector<18x32xf32>
    %cst_15 = arith.constant dense<0.000000e+00> : vector<32xf32>
    %34 = vector.multi_reduction <add>, %33, %cst_15 [0] : vector<18x32xf32> to vector<32xf32>
    %35 = vector.shape_cast %34 : vector<32xf32> to vector<1x32xf32>
    %cst_16 = arith.constant 1.800000e+01 : f32
    %36 = vector.broadcast %cst_16 : f32 to vector<1x32xf32>
    %37 = arith.divf %35, %36 : vector<1x32xf32>
    %cst_17 = arith.constant 9.99999974E-6 : f32
    %38 = vector.broadcast %cst_17 : f32 to vector<1x32xf32>
    %39 = arith.addf %37, %38 : vector<1x32xf32>
    %40 = math.rsqrt %39 : vector<1x32xf32>
    %41 = vector.broadcast %40 : vector<1x32xf32> to vector<18x32xf32>
    %42 = arith.mulf %32, %41 : vector<18x32xf32>
    %cst_18 = arith.constant dense<0.000000e+00> : vector<8x32xf32>
    %43 = tpu.matmul %3, %42, %cst_18 {dimension_numbers = #tpu.dot_dimension_numbers<[1], [0], [0], [1], [0, 0, 1, 1], [], []>} : vector<8x18xf32>, vector<18x32xf32>, vector<8x32xf32> -> vector<8x32xf32>
    %44 = vector.broadcast %2 : vector<1x32xf32> to vector<8x32xf32>
    %45 = arith.addf %43, %44 : vector<8x32xf32>
    %46 = vector.shape_cast %24 : vector<8x32xf32> to vector<1x8x32xf32>
    %47 = vector.shape_cast %45 : vector<8x32xf32> to vector<1x8x32xf32>
    %48 = tpu.concatenate %46, %47 in 0 : vector<1x8x32xf32>, vector<1x8x32xf32> -> vector<2x8x32xf32>
    %49 = vector.extract_strided_slice %48 {offsets = [0, 7, 0], sizes = [1, 1, 1], strides = [1, 1, 1]} : vector<2x8x32xf32> to vector<1x1x1xf32>
    %50 = vector.shape_cast %49 : vector<1x1x1xf32> to vector<1x1x1x1xf32>
    %cst_19 = arith.constant dense<0.000000e+00> : vector<1xf32>
    %51 = vector.multi_reduction <add>, %50, %cst_19 [1, 2, 3] : vector<1x1x1x1xf32> to vector<1xf32>
    %52 = vector.shape_cast %51 : vector<1xf32> to vector<1x1x1x1xf32>
    %53 = vector.extract %52[0, 0, 0, 0] : f32 from vector<1x1x1x1xf32>
    %54 = vector.broadcast %53 : f32 to vector<2x8x32xf32>
    %55 = arith.cmpf oeq, %48, %54 : vector<2x8x32xf32>
    %56 = arith.extui %55 : vector<2x8x32xi1> to vector<2x8x32xi32>
    %57 = arith.sitofp %56 : vector<2x8x32xi32> to vector<2x8x32xf32>
    %58 = vector.shape_cast %57 : vector<2x8x32xf32> to vector<1x2x8x32xf32>
    %cst_20 = arith.constant dense<0.000000e+00> : vector<1xf32>
    %59 = vector.multi_reduction <add>, %58, %cst_20 [1, 2, 3] : vector<1x2x8x32xf32> to vector<1xf32>
    %60 = vector.shape_cast %59 : vector<1xf32> to vector<1x1x1x1xf32>
    %61 = vector.extract %60[0, 0, 0, 0] : f32 from vector<1x1x1x1xf32>
    %cst_21 = arith.constant 3.200000e+01 : f32
    %62 = arith.cmpf oge, %61, %cst_21 : f32
    %63 = vector.broadcast %62 : i1 to vector<2x8x32xi1>
    %64 = arith.andi %55, %63 : vector<2x8x32xi1>
    %cst_22 = arith.constant 0.000000e+00 : f32
    %65 = vector.broadcast %cst_22 : f32 to vector<2x8x32xf32>
    %66 = arith.select %64, %65, %48 : vector<2x8x32xi1>, vector<2x8x32xf32>
    %67 = vector.extract_strided_slice %66 {offsets = [0, 0, 0], sizes = [2, 8, 1], strides = [1, 1, 1]} : vector<2x8x32xf32> to vector<2x8x1xf32>
    %cst_23 = arith.constant 0.000000e+00 : f32
    %68 = vector.broadcast %cst_23 : f32 to vector<2x8x1xf32>
    %69 = arith.cmpf oeq, %67, %68 : vector<2x8x1xf32>
    %70 = arith.extui %69 : vector<2x8x1xi1> to vector<2x8x1xi32>
    %71 = arith.sitofp %70 : vector<2x8x1xi32> to vector<2x8x1xf32>
    %72 = vector.shape_cast %1 : vector<8x32xf32> to vector<1x8x32xf32>
    %73 = vector.broadcast %72 : vector<1x8x32xf32> to vector<2x8x32xf32>
    %74 = arith.addf %66, %73 : vector<2x8x32xf32>
    %cst_24 = arith.constant 0.000000e+00 : f32
    %75 = vector.shape_cast %69 : vector<2x8x1xi1> to vector<2x8x1xi1>
    %76 = vector.broadcast %75 : vector<2x8x1xi1> to vector<2x8x32xi1>
    %77 = vector.broadcast %cst_24 : f32 to vector<2x8x32xf32>
    %78 = arith.select %76, %77, %74 : vector<2x8x32xi1>, vector<2x8x32xf32>
    %79 = tpu.iota {dimensions = array<i32: 0>} : vector<8x8xi32>
    %80 = tpu.iota {dimensions = array<i32: 1>} : vector<8x8xi32>
    %81 = arith.cmpi eq, %79, %80 : vector<8x8xi32>
    %82 = arith.extui %81 : vector<8x8xi1> to vector<8x8xi32>
    %83 = arith.sitofp %82 : vector<8x8xi32> to vector<8x8xf32>
    %cst_25 = arith.constant 1.000000e+00 : f32
    %84 = vector.broadcast %cst_25 : f32 to vector<8x8xf32>
    %85 = vector.extract_strided_slice %71 {offsets = [0, 0, 0], sizes = [1, 8, 1], strides = [1, 1, 1]} : vector<2x8x1xf32> to vector<1x8x1xf32>
    %86 = vector.shape_cast %85 : vector<1x8x1xf32> to vector<8x1xf32>
    %cst_26 = arith.constant -1.000000e+30 : f32
    %87 = vector.broadcast %cst_26 : f32 to vector<8x1xf32>
    %88 = arith.mulf %86, %87 : vector<8x1xf32>
    %89 = vector.broadcast %88 : vector<8x1xf32> to vector<8x8xf32>
    %90 = arith.mulf %83, %89 : vector<8x8xf32>
    %cst_27 = arith.constant dense<0.000000e+00> : vector<8x8xf32>
    %91 = tpu.matmul %84, %90, %cst_27 {dimension_numbers = #tpu.dot_dimension_numbers<[1], [0], [0], [1], [0, 0, 1, 1], [], []>} : vector<8x8xf32>, vector<8x8xf32>, vector<8x8xf32> -> vector<8x8xf32>
    %92 = vector.extract_strided_slice %71 {offsets = [1, 0, 0], sizes = [1, 8, 1], strides = [1, 1, 1]} : vector<2x8x1xf32> to vector<1x8x1xf32>
    %93 = vector.shape_cast %92 : vector<1x8x1xf32> to vector<8x1xf32>
    %cst_28 = arith.constant -1.000000e+30 : f32
    %94 = vector.broadcast %cst_28 : f32 to vector<8x1xf32>
    %95 = arith.mulf %93, %94 : vector<8x1xf32>
    %96 = vector.broadcast %95 : vector<8x1xf32> to vector<8x8xf32>
    %97 = arith.mulf %83, %96 : vector<8x8xf32>
    %cst_29 = arith.constant dense<0.000000e+00> : vector<8x8xf32>
    %98 = tpu.matmul %84, %97, %cst_29 {dimension_numbers = #tpu.dot_dimension_numbers<[1], [0], [0], [1], [0, 0, 1, 1], [], []>} : vector<8x8xf32>, vector<8x8xf32>, vector<8x8xf32> -> vector<8x8xf32>
    %99 = vector.shape_cast %78 : vector<2x8x32xf32> to vector<16x32xf32>
    %c0_30 = arith.constant 0 : index
    %c0_31 = arith.constant 0 : index
    %c0_32 = arith.constant 0 : index
    %100 = vector.load %arg4[%c0_30, %c0_31, %c0_32] : memref<2x32x128xf32, #tpu.memory_space<vmem>>, vector<1x32x128xf32>
    %101 = vector.shape_cast %100 : vector<1x32x128xf32> to vector<32x128xf32>
    %c0_33 = arith.constant 0 : index
    %c0_34 = arith.constant 0 : index
    %c0_35 = arith.constant 0 : index
    %102 = vector.load %arg7[%c0_33, %c0_34, %c0_35] : memref<2x7x128xf32, #tpu.memory_space<vmem>>, vector<1x7x128xf32>
    %103 = vector.shape_cast %102 : vector<1x7x128xf32> to vector<7x128xf32>
    %104 = vector.extract_strided_slice %103 {offsets = [0, 0], sizes = [1, 96], strides = [1, 1]} : vector<7x128xf32> to vector<1x96xf32>
    %105 = vector.extract_strided_slice %103 {offsets = [0, 96], sizes = [1, 32], strides = [1, 1]} : vector<7x128xf32> to vector<1x32xf32>
    %106 = vector.extract_strided_slice %103 {offsets = [1, 0], sizes = [1, 64], strides = [1, 1]} : vector<7x128xf32> to vector<1x64xf32>
    %107 = vector.extract_strided_slice %103 {offsets = [2, 0], sizes = [1, 32], strides = [1, 1]} : vector<7x128xf32> to vector<1x32xf32>
    %108 = vector.extract_strided_slice %103 {offsets = [3, 0], sizes = [1, 32], strides = [1, 1]} : vector<7x128xf32> to vector<1x32xf32>
    %109 = vector.extract_strided_slice %103 {offsets = [4, 0], sizes = [1, 32], strides = [1, 1]} : vector<7x128xf32> to vector<1x32xf32>
    %110 = vector.extract_strided_slice %103 {offsets = [5, 0], sizes = [1, 32], strides = [1, 1]} : vector<7x128xf32> to vector<1x32xf32>
    %111 = vector.extract_strided_slice %103 {offsets = [6, 0], sizes = [1, 32], strides = [1, 1]} : vector<7x128xf32> to vector<1x32xf32>
    %112 = vector.extract_strided_slice %101 {offsets = [0, 0], sizes = [32, 96], strides = [1, 1]} : vector<32x128xf32> to vector<32x96xf32>
    %cst_36 = arith.constant dense<0.000000e+00> : vector<16x96xf32>
    %113 = tpu.matmul %99, %112, %cst_36 {dimension_numbers = #tpu.dot_dimension_numbers<[1], [0], [0], [1], [0, 0, 1, 1], [], []>} : vector<16x32xf32>, vector<32x96xf32>, vector<16x96xf32> -> vector<16x96xf32>
    %114 = vector.broadcast %104 : vector<1x96xf32> to vector<16x96xf32>
    %115 = arith.addf %113, %114 : vector<16x96xf32>
    %116 = vector.extract_strided_slice %115 {offsets = [0, 0], sizes = [8, 96], strides = [1, 1]} : vector<16x96xf32> to vector<8x96xf32>
    %117 = vector.extract_strided_slice %116 {offsets = [0, 0], sizes = [8, 8], strides = [1, 1]} : vector<8x96xf32> to vector<8x8xf32>
    %118 = vector.extract_strided_slice %116 {offsets = [0, 8], sizes = [8, 8], strides = [1, 1]} : vector<8x96xf32> to vector<8x8xf32>
    %119 = vector.extract_strided_slice %116 {offsets = [0, 16], sizes = [8, 8], strides = [1, 1]} : vector<8x96xf32> to vector<8x8xf32>
    %120 = vector.extract_strided_slice %116 {offsets = [0, 24], sizes = [8, 8], strides = [1, 1]} : vector<8x96xf32> to vector<8x8xf32>
    %121 = vector.shape_cast %117 : vector<8x8xf32> to vector<1x8x8xf32>
    %122 = vector.shape_cast %118 : vector<8x8xf32> to vector<1x8x8xf32>
    %123 = vector.shape_cast %119 : vector<8x8xf32> to vector<1x8x8xf32>
    %124 = vector.shape_cast %120 : vector<8x8xf32> to vector<1x8x8xf32>
    %125 = tpu.concatenate %121, %122, %123, %124 in 0 : vector<1x8x8xf32>, vector<1x8x8xf32>, vector<1x8x8xf32>, vector<1x8x8xf32> -> vector<4x8x8xf32>
    %126 = vector.extract_strided_slice %116 {offsets = [0, 32], sizes = [8, 8], strides = [1, 1]} : vector<8x96xf32> to vector<8x8xf32>
    %127 = vector.extract_strided_slice %116 {offsets = [0, 40], sizes = [8, 8], strides = [1, 1]} : vector<8x96xf32> to vector<8x8xf32>
    %128 = vector.extract_strided_slice %116 {offsets = [0, 48], sizes = [8, 8], strides = [1, 1]} : vector<8x96xf32> to vector<8x8xf32>
    %129 = vector.extract_strided_slice %116 {offsets = [0, 56], sizes = [8, 8], strides = [1, 1]} : vector<8x96xf32> to vector<8x8xf32>
    %130 = vector.shape_cast %126 : vector<8x8xf32> to vector<1x8x8xf32>
    %131 = vector.shape_cast %127 : vector<8x8xf32> to vector<1x8x8xf32>
    %132 = vector.shape_cast %128 : vector<8x8xf32> to vector<1x8x8xf32>
    %133 = vector.shape_cast %129 : vector<8x8xf32> to vector<1x8x8xf32>
    %134 = tpu.concatenate %130, %131, %132, %133 in 0 : vector<1x8x8xf32>, vector<1x8x8xf32>, vector<1x8x8xf32>, vector<1x8x8xf32> -> vector<4x8x8xf32>
    %135 = vector.extract_strided_slice %116 {offsets = [0, 64], sizes = [8, 8], strides = [1, 1]} : vector<8x96xf32> to vector<8x8xf32>
    %136 = vector.extract_strided_slice %116 {offsets = [0, 72], sizes = [8, 8], strides = [1, 1]} : vector<8x96xf32> to vector<8x8xf32>
    %137 = vector.extract_strided_slice %116 {offsets = [0, 80], sizes = [8, 8], strides = [1, 1]} : vector<8x96xf32> to vector<8x8xf32>
    %138 = vector.extract_strided_slice %116 {offsets = [0, 88], sizes = [8, 8], strides = [1, 1]} : vector<8x96xf32> to vector<8x8xf32>
    %139 = vector.shape_cast %135 : vector<8x8xf32> to vector<1x8x8xf32>
    %140 = vector.shape_cast %136 : vector<8x8xf32> to vector<1x8x8xf32>
    %141 = vector.shape_cast %137 : vector<8x8xf32> to vector<1x8x8xf32>
    %142 = vector.shape_cast %138 : vector<8x8xf32> to vector<1x8x8xf32>
    %143 = tpu.concatenate %139, %140, %141, %142 in 0 : vector<1x8x8xf32>, vector<1x8x8xf32>, vector<1x8x8xf32>, vector<1x8x8xf32> -> vector<4x8x8xf32>
    "tpu.trace_start"() <{level = 10 : i32, message = "hqd,hkd->hqk"}> : () -> ()
    %cst_37 = arith.constant dense<0.000000e+00> : vector<4x8x8xf32>
    %144 = tpu.matmul %125, %134, %cst_37 {dimension_numbers = #tpu.dot_dimension_numbers<[2], [2], [1], [1], [0, 0, 0, 1, 1, 1], [0], [0]>} : vector<4x8x8xf32>, vector<4x8x8xf32>, vector<4x8x8xf32> -> vector<4x8x8xf32>
    "tpu.trace_stop"() : () -> ()
    %cst_38 = arith.constant 0.353553385 : f32
    %145 = vector.broadcast %cst_38 : f32 to vector<4x8x8xf32>
    %146 = arith.mulf %144, %145 : vector<4x8x8xf32>
    %147 = vector.shape_cast %91 : vector<8x8xf32> to vector<1x8x8xf32>
    %148 = vector.broadcast %147 : vector<1x8x8xf32> to vector<4x8x8xf32>
    %149 = arith.addf %146, %148 : vector<4x8x8xf32>
    %cst_39 = arith.constant dense<0xFF800000> : vector<4x8xf32>
    %150 = vector.multi_reduction <maximumf>, %149, %cst_39 [2] : vector<4x8x8xf32> to vector<4x8xf32>
    %151 = vector.shape_cast %150 : vector<4x8xf32> to vector<4x8x1xf32>
    %152 = vector.broadcast %151 : vector<4x8x1xf32> to vector<4x8x8xf32>
    %153 = arith.subf %149, %152 : vector<4x8x8xf32>
    %154 = math.exp %153 : vector<4x8x8xf32>
    %cst_40 = arith.constant dense<0.000000e+00> : vector<4x8xf32>
    %155 = vector.multi_reduction <add>, %154, %cst_40 [2] : vector<4x8x8xf32> to vector<4x8xf32>
    %156 = vector.shape_cast %155 : vector<4x8xf32> to vector<4x8x1xf32>
    %157 = vector.broadcast %156 : vector<4x8x1xf32> to vector<4x8x8xf32>
    %158 = arith.divf %154, %157 : vector<4x8x8xf32>
    "tpu.trace_start"() <{level = 10 : i32, message = "hqk,hkd->hqd"}> : () -> ()
    %cst_41 = arith.constant dense<0.000000e+00> : vector<4x8x8xf32>
    %159 = tpu.matmul %158, %143, %cst_41 {dimension_numbers = #tpu.dot_dimension_numbers<[2], [1], [1], [2], [0, 0, 0, 1, 1, 2], [0], [0]>} : vector<4x8x8xf32>, vector<4x8x8xf32>, vector<4x8x8xf32> -> vector<4x8x8xf32>
    "tpu.trace_stop"() : () -> ()
    %160 = vector.extract_strided_slice %159 {offsets = [0, 0, 0], sizes = [1, 8, 8], strides = [1, 1, 1]} : vector<4x8x8xf32> to vector<1x8x8xf32>
    %161 = vector.shape_cast %160 : vector<1x8x8xf32> to vector<8x8xf32>
    %162 = vector.extract_strided_slice %159 {offsets = [1, 0, 0], sizes = [1, 8, 8], strides = [1, 1, 1]} : vector<4x8x8xf32> to vector<1x8x8xf32>
    %163 = vector.shape_cast %162 : vector<1x8x8xf32> to vector<8x8xf32>
    %164 = vector.extract_strided_slice %159 {offsets = [2, 0, 0], sizes = [1, 8, 8], strides = [1, 1, 1]} : vector<4x8x8xf32> to vector<1x8x8xf32>
    %165 = vector.shape_cast %164 : vector<1x8x8xf32> to vector<8x8xf32>
    %166 = vector.extract_strided_slice %159 {offsets = [3, 0, 0], sizes = [1, 8, 8], strides = [1, 1, 1]} : vector<4x8x8xf32> to vector<1x8x8xf32>
    %167 = vector.shape_cast %166 : vector<1x8x8xf32> to vector<8x8xf32>
    %168 = tpu.concatenate %161, %163, %165, %167 in 1 : vector<8x8xf32>, vector<8x8xf32>, vector<8x8xf32>, vector<8x8xf32> -> vector<8x32xf32>
    %169 = vector.extract_strided_slice %115 {offsets = [8, 0], sizes = [8, 96], strides = [1, 1]} : vector<16x96xf32> to vector<8x96xf32>
    %170 = vector.extract_strided_slice %169 {offsets = [0, 0], sizes = [8, 8], strides = [1, 1]} : vector<8x96xf32> to vector<8x8xf32>
    %171 = vector.extract_strided_slice %169 {offsets = [0, 8], sizes = [8, 8], strides = [1, 1]} : vector<8x96xf32> to vector<8x8xf32>
    %172 = vector.extract_strided_slice %169 {offsets = [0, 16], sizes = [8, 8], strides = [1, 1]} : vector<8x96xf32> to vector<8x8xf32>
    %173 = vector.extract_strided_slice %169 {offsets = [0, 24], sizes = [8, 8], strides = [1, 1]} : vector<8x96xf32> to vector<8x8xf32>
    %174 = vector.shape_cast %170 : vector<8x8xf32> to vector<1x8x8xf32>
    %175 = vector.shape_cast %171 : vector<8x8xf32> to vector<1x8x8xf32>
    %176 = vector.shape_cast %172 : vector<8x8xf32> to vector<1x8x8xf32>
    %177 = vector.shape_cast %173 : vector<8x8xf32> to vector<1x8x8xf32>
    %178 = tpu.concatenate %174, %175, %176, %177 in 0 : vector<1x8x8xf32>, vector<1x8x8xf32>, vector<1x8x8xf32>, vector<1x8x8xf32> -> vector<4x8x8xf32>
    %179 = vector.extract_strided_slice %169 {offsets = [0, 32], sizes = [8, 8], strides = [1, 1]} : vector<8x96xf32> to vector<8x8xf32>
    %180 = vector.extract_strided_slice %169 {offsets = [0, 40], sizes = [8, 8], strides = [1, 1]} : vector<8x96xf32> to vector<8x8xf32>
    %181 = vector.extract_strided_slice %169 {offsets = [0, 48], sizes = [8, 8], strides = [1, 1]} : vector<8x96xf32> to vector<8x8xf32>
    %182 = vector.extract_strided_slice %169 {offsets = [0, 56], sizes = [8, 8], strides = [1, 1]} : vector<8x96xf32> to vector<8x8xf32>
    %183 = vector.shape_cast %179 : vector<8x8xf32> to vector<1x8x8xf32>
    %184 = vector.shape_cast %180 : vector<8x8xf32> to vector<1x8x8xf32>
    %185 = vector.shape_cast %181 : vector<8x8xf32> to vector<1x8x8xf32>
    %186 = vector.shape_cast %182 : vector<8x8xf32> to vector<1x8x8xf32>
    %187 = tpu.concatenate %183, %184, %185, %186 in 0 : vector<1x8x8xf32>, vector<1x8x8xf32>, vector<1x8x8xf32>, vector<1x8x8xf32> -> vector<4x8x8xf32>
    %188 = vector.extract_strided_slice %169 {offsets = [0, 64], sizes = [8, 8], strides = [1, 1]} : vector<8x96xf32> to vector<8x8xf32>
    %189 = vector.extract_strided_slice %169 {offsets = [0, 72], sizes = [8, 8], strides = [1, 1]} : vector<8x96xf32> to vector<8x8xf32>
    %190 = vector.extract_strided_slice %169 {offsets = [0, 80], sizes = [8, 8], strides = [1, 1]} : vector<8x96xf32> to vector<8x8xf32>
    %191 = vector.extract_strided_slice %169 {offsets = [0, 88], sizes = [8, 8], strides = [1, 1]} : vector<8x96xf32> to vector<8x8xf32>
    %192 = vector.shape_cast %188 : vector<8x8xf32> to vector<1x8x8xf32>
    %193 = vector.shape_cast %189 : vector<8x8xf32> to vector<1x8x8xf32>
    %194 = vector.shape_cast %190 : vector<8x8xf32> to vector<1x8x8xf32>
    %195 = vector.shape_cast %191 : vector<8x8xf32> to vector<1x8x8xf32>
    %196 = tpu.concatenate %192, %193, %194, %195 in 0 : vector<1x8x8xf32>, vector<1x8x8xf32>, vector<1x8x8xf32>, vector<1x8x8xf32> -> vector<4x8x8xf32>
    "tpu.trace_start"() <{level = 10 : i32, message = "hqd,hkd->hqk"}> : () -> ()
    %cst_42 = arith.constant dense<0.000000e+00> : vector<4x8x8xf32>
    %197 = tpu.matmul %178, %187, %cst_42 {dimension_numbers = #tpu.dot_dimension_numbers<[2], [2], [1], [1], [0, 0, 0, 1, 1, 1], [0], [0]>} : vector<4x8x8xf32>, vector<4x8x8xf32>, vector<4x8x8xf32> -> vector<4x8x8xf32>
    "tpu.trace_stop"() : () -> ()
    %cst_43 = arith.constant 0.353553385 : f32
    %198 = vector.broadcast %cst_43 : f32 to vector<4x8x8xf32>
    %199 = arith.mulf %197, %198 : vector<4x8x8xf32>
    %200 = vector.shape_cast %98 : vector<8x8xf32> to vector<1x8x8xf32>
    %201 = vector.broadcast %200 : vector<1x8x8xf32> to vector<4x8x8xf32>
    %202 = arith.addf %199, %201 : vector<4x8x8xf32>
    %cst_44 = arith.constant dense<0xFF800000> : vector<4x8xf32>
    %203 = vector.multi_reduction <maximumf>, %202, %cst_44 [2] : vector<4x8x8xf32> to vector<4x8xf32>
    %204 = vector.shape_cast %203 : vector<4x8xf32> to vector<4x8x1xf32>
    %205 = vector.broadcast %204 : vector<4x8x1xf32> to vector<4x8x8xf32>
    %206 = arith.subf %202, %205 : vector<4x8x8xf32>
    %207 = math.exp %206 : vector<4x8x8xf32>
    %cst_45 = arith.constant dense<0.000000e+00> : vector<4x8xf32>
    %208 = vector.multi_reduction <add>, %207, %cst_45 [2] : vector<4x8x8xf32> to vector<4x8xf32>
    %209 = vector.shape_cast %208 : vector<4x8xf32> to vector<4x8x1xf32>
    %210 = vector.broadcast %209 : vector<4x8x1xf32> to vector<4x8x8xf32>
    %211 = arith.divf %207, %210 : vector<4x8x8xf32>
    "tpu.trace_start"() <{level = 10 : i32, message = "hqk,hkd->hqd"}> : () -> ()
    %cst_46 = arith.constant dense<0.000000e+00> : vector<4x8x8xf32>
    %212 = tpu.matmul %211, %196, %cst_46 {dimension_numbers = #tpu.dot_dimension_numbers<[2], [1], [1], [2], [0, 0, 0, 1, 1, 2], [0], [0]>} : vector<4x8x8xf32>, vector<4x8x8xf32>, vector<4x8x8xf32> -> vector<4x8x8xf32>
    "tpu.trace_stop"() : () -> ()
    %213 = vector.extract_strided_slice %212 {offsets = [0, 0, 0], sizes = [1, 8, 8], strides = [1, 1, 1]} : vector<4x8x8xf32> to vector<1x8x8xf32>
    %214 = vector.shape_cast %213 : vector<1x8x8xf32> to vector<8x8xf32>
    %215 = vector.extract_strided_slice %212 {offsets = [1, 0, 0], sizes = [1, 8, 8], strides = [1, 1, 1]} : vector<4x8x8xf32> to vector<1x8x8xf32>
    %216 = vector.shape_cast %215 : vector<1x8x8xf32> to vector<8x8xf32>
    %217 = vector.extract_strided_slice %212 {offsets = [2, 0, 0], sizes = [1, 8, 8], strides = [1, 1, 1]} : vector<4x8x8xf32> to vector<1x8x8xf32>
    %218 = vector.shape_cast %217 : vector<1x8x8xf32> to vector<8x8xf32>
    %219 = vector.extract_strided_slice %212 {offsets = [3, 0, 0], sizes = [1, 8, 8], strides = [1, 1, 1]} : vector<4x8x8xf32> to vector<1x8x8xf32>
    %220 = vector.shape_cast %219 : vector<1x8x8xf32> to vector<8x8xf32>
    %221 = tpu.concatenate %214, %216, %218, %220 in 1 : vector<8x8xf32>, vector<8x8xf32>, vector<8x8xf32>, vector<8x8xf32> -> vector<8x32xf32>
    %222 = tpu.concatenate %168, %221 in 0 : vector<8x32xf32>, vector<8x32xf32> -> vector<16x32xf32>
    %223 = vector.extract_strided_slice %101 {offsets = [0, 96], sizes = [32, 32], strides = [1, 1]} : vector<32x128xf32> to vector<32x32xf32>
    %cst_47 = arith.constant dense<0.000000e+00> : vector<16x32xf32>
    %224 = tpu.matmul %222, %223, %cst_47 {dimension_numbers = #tpu.dot_dimension_numbers<[1], [0], [0], [1], [0, 0, 1, 1], [], []>} : vector<16x32xf32>, vector<32x32xf32>, vector<16x32xf32> -> vector<16x32xf32>
    %225 = vector.broadcast %105 : vector<1x32xf32> to vector<16x32xf32>
    %226 = arith.addf %224, %225 : vector<16x32xf32>
    %227 = arith.addf %99, %226 : vector<16x32xf32>
    %cst_48 = arith.constant dense<0.000000e+00> : vector<16xf32>
    %228 = vector.multi_reduction <add>, %227, %cst_48 [1] : vector<16x32xf32> to vector<16xf32>
    %229 = vector.shape_cast %228 : vector<16xf32> to vector<16x1xf32>
    %cst_49 = arith.constant 3.200000e+01 : f32
    %230 = vector.broadcast %cst_49 : f32 to vector<16x1xf32>
    %231 = arith.divf %229, %230 : vector<16x1xf32>
    %232 = vector.broadcast %231 : vector<16x1xf32> to vector<16x32xf32>
    %233 = arith.subf %227, %232 : vector<16x32xf32>
    %234 = arith.mulf %233, %233 : vector<16x32xf32>
    %cst_50 = arith.constant dense<0.000000e+00> : vector<16xf32>
    %235 = vector.multi_reduction <add>, %234, %cst_50 [1] : vector<16x32xf32> to vector<16xf32>
    %236 = vector.shape_cast %235 : vector<16xf32> to vector<16x1xf32>
    %cst_51 = arith.constant 3.200000e+01 : f32
    %237 = vector.broadcast %cst_51 : f32 to vector<16x1xf32>
    %238 = arith.divf %236, %237 : vector<16x1xf32>
    %cst_52 = arith.constant 9.99999974E-6 : f32
    %239 = vector.broadcast %cst_52 : f32 to vector<16x1xf32>
    %240 = arith.addf %238, %239 : vector<16x1xf32>
    %241 = math.rsqrt %240 : vector<16x1xf32>
    %242 = vector.broadcast %241 : vector<16x1xf32> to vector<16x32xf32>
    %243 = arith.mulf %233, %242 : vector<16x32xf32>
    %244 = vector.broadcast %107 : vector<1x32xf32> to vector<16x32xf32>
    %245 = arith.mulf %243, %244 : vector<16x32xf32>
    %246 = vector.broadcast %108 : vector<1x32xf32> to vector<16x32xf32>
    %247 = arith.addf %245, %246 : vector<16x32xf32>
    %c0_53 = arith.constant 0 : index
    %c0_54 = arith.constant 0 : index
    %c0_55 = arith.constant 0 : index
    %248 = vector.load %arg5[%c0_53, %c0_54, %c0_55] : memref<2x32x64xf32, #tpu.memory_space<vmem>>, vector<1x32x64xf32>
    %249 = vector.shape_cast %248 : vector<1x32x64xf32> to vector<32x64xf32>
    %cst_56 = arith.constant dense<0.000000e+00> : vector<16x64xf32>
    %250 = tpu.matmul %247, %249, %cst_56 {dimension_numbers = #tpu.dot_dimension_numbers<[1], [0], [0], [1], [0, 0, 1, 1], [], []>} : vector<16x32xf32>, vector<32x64xf32>, vector<16x64xf32> -> vector<16x64xf32>
    %251 = vector.broadcast %106 : vector<1x64xf32> to vector<16x64xf32>
    %252 = arith.addf %250, %251 : vector<16x64xf32>
    %cst_57 = arith.constant 0.000000e+00 : f32
    %253 = vector.broadcast %cst_57 : f32 to vector<16x64xf32>
    %254 = arith.maximumf %252, %253 : vector<16x64xf32>
    %c0_58 = arith.constant 0 : index
    %c0_59 = arith.constant 0 : index
    %c0_60 = arith.constant 0 : index
    %255 = vector.load %arg6[%c0_58, %c0_59, %c0_60] : memref<2x64x32xf32, #tpu.memory_space<vmem>>, vector<1x64x32xf32>
    %256 = vector.shape_cast %255 : vector<1x64x32xf32> to vector<64x32xf32>
    %cst_61 = arith.constant dense<0.000000e+00> : vector<16x32xf32>
    %257 = tpu.matmul %254, %256, %cst_61 {dimension_numbers = #tpu.dot_dimension_numbers<[1], [0], [0], [1], [0, 0, 1, 1], [], []>} : vector<16x64xf32>, vector<64x32xf32>, vector<16x32xf32> -> vector<16x32xf32>
    %258 = vector.broadcast %109 : vector<1x32xf32> to vector<16x32xf32>
    %259 = arith.addf %257, %258 : vector<16x32xf32>
    %260 = arith.addf %247, %259 : vector<16x32xf32>
    %cst_62 = arith.constant dense<0.000000e+00> : vector<16xf32>
    %261 = vector.multi_reduction <add>, %260, %cst_62 [1] : vector<16x32xf32> to vector<16xf32>
    %262 = vector.shape_cast %261 : vector<16xf32> to vector<16x1xf32>
    %cst_63 = arith.constant 3.200000e+01 : f32
    %263 = vector.broadcast %cst_63 : f32 to vector<16x1xf32>
    %264 = arith.divf %262, %263 : vector<16x1xf32>
    %265 = vector.broadcast %264 : vector<16x1xf32> to vector<16x32xf32>
    %266 = arith.subf %260, %265 : vector<16x32xf32>
    %267 = arith.mulf %266, %266 : vector<16x32xf32>
    %cst_64 = arith.constant dense<0.000000e+00> : vector<16xf32>
    %268 = vector.multi_reduction <add>, %267, %cst_64 [1] : vector<16x32xf32> to vector<16xf32>
    %269 = vector.shape_cast %268 : vector<16xf32> to vector<16x1xf32>
    %cst_65 = arith.constant 3.200000e+01 : f32
    %270 = vector.broadcast %cst_65 : f32 to vector<16x1xf32>
    %271 = arith.divf %269, %270 : vector<16x1xf32>
    %cst_66 = arith.constant 9.99999974E-6 : f32
    %272 = vector.broadcast %cst_66 : f32 to vector<16x1xf32>
    %273 = arith.addf %271, %272 : vector<16x1xf32>
    %274 = math.rsqrt %273 : vector<16x1xf32>
    %275 = vector.broadcast %274 : vector<16x1xf32> to vector<16x32xf32>
    %276 = arith.mulf %266, %275 : vector<16x32xf32>
    %277 = vector.broadcast %110 : vector<1x32xf32> to vector<16x32xf32>
    %278 = arith.mulf %276, %277 : vector<16x32xf32>
    %279 = vector.broadcast %111 : vector<1x32xf32> to vector<16x32xf32>
    %280 = arith.addf %278, %279 : vector<16x32xf32>
    %c1_67 = arith.constant 1 : index
    %c0_68 = arith.constant 0 : index
    %c0_69 = arith.constant 0 : index
    %281 = vector.load %arg4[%c1_67, %c0_68, %c0_69] : memref<2x32x128xf32, #tpu.memory_space<vmem>>, vector<1x32x128xf32>
    %282 = vector.shape_cast %281 : vector<1x32x128xf32> to vector<32x128xf32>
    %c1_70 = arith.constant 1 : index
    %c0_71 = arith.constant 0 : index
    %c0_72 = arith.constant 0 : index
    %283 = vector.load %arg7[%c1_70, %c0_71, %c0_72] : memref<2x7x128xf32, #tpu.memory_space<vmem>>, vector<1x7x128xf32>
    %284 = vector.shape_cast %283 : vector<1x7x128xf32> to vector<7x128xf32>
    %285 = vector.extract_strided_slice %284 {offsets = [0, 0], sizes = [1, 96], strides = [1, 1]} : vector<7x128xf32> to vector<1x96xf32>
    %286 = vector.extract_strided_slice %284 {offsets = [0, 96], sizes = [1, 32], strides = [1, 1]} : vector<7x128xf32> to vector<1x32xf32>
    %287 = vector.extract_strided_slice %284 {offsets = [1, 0], sizes = [1, 64], strides = [1, 1]} : vector<7x128xf32> to vector<1x64xf32>
    %288 = vector.extract_strided_slice %284 {offsets = [2, 0], sizes = [1, 32], strides = [1, 1]} : vector<7x128xf32> to vector<1x32xf32>
    %289 = vector.extract_strided_slice %284 {offsets = [3, 0], sizes = [1, 32], strides = [1, 1]} : vector<7x128xf32> to vector<1x32xf32>
    %290 = vector.extract_strided_slice %284 {offsets = [4, 0], sizes = [1, 32], strides = [1, 1]} : vector<7x128xf32> to vector<1x32xf32>
    %291 = vector.extract_strided_slice %284 {offsets = [5, 0], sizes = [1, 32], strides = [1, 1]} : vector<7x128xf32> to vector<1x32xf32>
    %292 = vector.extract_strided_slice %284 {offsets = [6, 0], sizes = [1, 32], strides = [1, 1]} : vector<7x128xf32> to vector<1x32xf32>
    %293 = vector.extract_strided_slice %282 {offsets = [0, 0], sizes = [32, 96], strides = [1, 1]} : vector<32x128xf32> to vector<32x96xf32>
    %cst_73 = arith.constant dense<0.000000e+00> : vector<16x96xf32>
    %294 = tpu.matmul %280, %293, %cst_73 {dimension_numbers = #tpu.dot_dimension_numbers<[1], [0], [0], [1], [0, 0, 1, 1], [], []>} : vector<16x32xf32>, vector<32x96xf32>, vector<16x96xf32> -> vector<16x96xf32>
    %295 = vector.broadcast %285 : vector<1x96xf32> to vector<16x96xf32>
    %296 = arith.addf %294, %295 : vector<16x96xf32>
    %297 = vector.extract_strided_slice %296 {offsets = [0, 0], sizes = [8, 96], strides = [1, 1]} : vector<16x96xf32> to vector<8x96xf32>
    %298 = vector.extract_strided_slice %297 {offsets = [0, 0], sizes = [8, 8], strides = [1, 1]} : vector<8x96xf32> to vector<8x8xf32>
    %299 = vector.extract_strided_slice %297 {offsets = [0, 8], sizes = [8, 8], strides = [1, 1]} : vector<8x96xf32> to vector<8x8xf32>
    %300 = vector.extract_strided_slice %297 {offsets = [0, 16], sizes = [8, 8], strides = [1, 1]} : vector<8x96xf32> to vector<8x8xf32>
    %301 = vector.extract_strided_slice %297 {offsets = [0, 24], sizes = [8, 8], strides = [1, 1]} : vector<8x96xf32> to vector<8x8xf32>
    %302 = vector.shape_cast %298 : vector<8x8xf32> to vector<1x8x8xf32>
    %303 = vector.shape_cast %299 : vector<8x8xf32> to vector<1x8x8xf32>
    %304 = vector.shape_cast %300 : vector<8x8xf32> to vector<1x8x8xf32>
    %305 = vector.shape_cast %301 : vector<8x8xf32> to vector<1x8x8xf32>
    %306 = tpu.concatenate %302, %303, %304, %305 in 0 : vector<1x8x8xf32>, vector<1x8x8xf32>, vector<1x8x8xf32>, vector<1x8x8xf32> -> vector<4x8x8xf32>
    %307 = vector.extract_strided_slice %297 {offsets = [0, 32], sizes = [8, 8], strides = [1, 1]} : vector<8x96xf32> to vector<8x8xf32>
    %308 = vector.extract_strided_slice %297 {offsets = [0, 40], sizes = [8, 8], strides = [1, 1]} : vector<8x96xf32> to vector<8x8xf32>
    %309 = vector.extract_strided_slice %297 {offsets = [0, 48], sizes = [8, 8], strides = [1, 1]} : vector<8x96xf32> to vector<8x8xf32>
    %310 = vector.extract_strided_slice %297 {offsets = [0, 56], sizes = [8, 8], strides = [1, 1]} : vector<8x96xf32> to vector<8x8xf32>
    %311 = vector.shape_cast %307 : vector<8x8xf32> to vector<1x8x8xf32>
    %312 = vector.shape_cast %308 : vector<8x8xf32> to vector<1x8x8xf32>
    %313 = vector.shape_cast %309 : vector<8x8xf32> to vector<1x8x8xf32>
    %314 = vector.shape_cast %310 : vector<8x8xf32> to vector<1x8x8xf32>
    %315 = tpu.concatenate %311, %312, %313, %314 in 0 : vector<1x8x8xf32>, vector<1x8x8xf32>, vector<1x8x8xf32>, vector<1x8x8xf32> -> vector<4x8x8xf32>
    %316 = vector.extract_strided_slice %297 {offsets = [0, 64], sizes = [8, 8], strides = [1, 1]} : vector<8x96xf32> to vector<8x8xf32>
    %317 = vector.extract_strided_slice %297 {offsets = [0, 72], sizes = [8, 8], strides = [1, 1]} : vector<8x96xf32> to vector<8x8xf32>
    %318 = vector.extract_strided_slice %297 {offsets = [0, 80], sizes = [8, 8], strides = [1, 1]} : vector<8x96xf32> to vector<8x8xf32>
    %319 = vector.extract_strided_slice %297 {offsets = [0, 88], sizes = [8, 8], strides = [1, 1]} : vector<8x96xf32> to vector<8x8xf32>
    %320 = vector.shape_cast %316 : vector<8x8xf32> to vector<1x8x8xf32>
    %321 = vector.shape_cast %317 : vector<8x8xf32> to vector<1x8x8xf32>
    %322 = vector.shape_cast %318 : vector<8x8xf32> to vector<1x8x8xf32>
    %323 = vector.shape_cast %319 : vector<8x8xf32> to vector<1x8x8xf32>
    %324 = tpu.concatenate %320, %321, %322, %323 in 0 : vector<1x8x8xf32>, vector<1x8x8xf32>, vector<1x8x8xf32>, vector<1x8x8xf32> -> vector<4x8x8xf32>
    "tpu.trace_start"() <{level = 10 : i32, message = "hqd,hkd->hqk"}> : () -> ()
    %cst_74 = arith.constant dense<0.000000e+00> : vector<4x8x8xf32>
    %325 = tpu.matmul %306, %315, %cst_74 {dimension_numbers = #tpu.dot_dimension_numbers<[2], [2], [1], [1], [0, 0, 0, 1, 1, 1], [0], [0]>} : vector<4x8x8xf32>, vector<4x8x8xf32>, vector<4x8x8xf32> -> vector<4x8x8xf32>
    "tpu.trace_stop"() : () -> ()
    %cst_75 = arith.constant 0.353553385 : f32
    %326 = vector.broadcast %cst_75 : f32 to vector<4x8x8xf32>
    %327 = arith.mulf %325, %326 : vector<4x8x8xf32>
    %328 = vector.shape_cast %91 : vector<8x8xf32> to vector<1x8x8xf32>
    %329 = vector.broadcast %328 : vector<1x8x8xf32> to vector<4x8x8xf32>
    %330 = arith.addf %327, %329 : vector<4x8x8xf32>
    %cst_76 = arith.constant dense<0xFF800000> : vector<4x8xf32>
    %331 = vector.multi_reduction <maximumf>, %330, %cst_76 [2] : vector<4x8x8xf32> to vector<4x8xf32>
    %332 = vector.shape_cast %331 : vector<4x8xf32> to vector<4x8x1xf32>
    %333 = vector.broadcast %332 : vector<4x8x1xf32> to vector<4x8x8xf32>
    %334 = arith.subf %330, %333 : vector<4x8x8xf32>
    %335 = math.exp %334 : vector<4x8x8xf32>
    %cst_77 = arith.constant dense<0.000000e+00> : vector<4x8xf32>
    %336 = vector.multi_reduction <add>, %335, %cst_77 [2] : vector<4x8x8xf32> to vector<4x8xf32>
    %337 = vector.shape_cast %336 : vector<4x8xf32> to vector<4x8x1xf32>
    %338 = vector.broadcast %337 : vector<4x8x1xf32> to vector<4x8x8xf32>
    %339 = arith.divf %335, %338 : vector<4x8x8xf32>
    "tpu.trace_start"() <{level = 10 : i32, message = "hqk,hkd->hqd"}> : () -> ()
    %cst_78 = arith.constant dense<0.000000e+00> : vector<4x8x8xf32>
    %340 = tpu.matmul %339, %324, %cst_78 {dimension_numbers = #tpu.dot_dimension_numbers<[2], [1], [1], [2], [0, 0, 0, 1, 1, 2], [0], [0]>} : vector<4x8x8xf32>, vector<4x8x8xf32>, vector<4x8x8xf32> -> vector<4x8x8xf32>
    "tpu.trace_stop"() : () -> ()
    %341 = vector.extract_strided_slice %340 {offsets = [0, 0, 0], sizes = [1, 8, 8], strides = [1, 1, 1]} : vector<4x8x8xf32> to vector<1x8x8xf32>
    %342 = vector.shape_cast %341 : vector<1x8x8xf32> to vector<8x8xf32>
    %343 = vector.extract_strided_slice %340 {offsets = [1, 0, 0], sizes = [1, 8, 8], strides = [1, 1, 1]} : vector<4x8x8xf32> to vector<1x8x8xf32>
    %344 = vector.shape_cast %343 : vector<1x8x8xf32> to vector<8x8xf32>
    %345 = vector.extract_strided_slice %340 {offsets = [2, 0, 0], sizes = [1, 8, 8], strides = [1, 1, 1]} : vector<4x8x8xf32> to vector<1x8x8xf32>
    %346 = vector.shape_cast %345 : vector<1x8x8xf32> to vector<8x8xf32>
    %347 = vector.extract_strided_slice %340 {offsets = [3, 0, 0], sizes = [1, 8, 8], strides = [1, 1, 1]} : vector<4x8x8xf32> to vector<1x8x8xf32>
    %348 = vector.shape_cast %347 : vector<1x8x8xf32> to vector<8x8xf32>
    %349 = tpu.concatenate %342, %344, %346, %348 in 1 : vector<8x8xf32>, vector<8x8xf32>, vector<8x8xf32>, vector<8x8xf32> -> vector<8x32xf32>
    %350 = vector.extract_strided_slice %296 {offsets = [8, 0], sizes = [8, 96], strides = [1, 1]} : vector<16x96xf32> to vector<8x96xf32>
    %351 = vector.extract_strided_slice %350 {offsets = [0, 0], sizes = [8, 8], strides = [1, 1]} : vector<8x96xf32> to vector<8x8xf32>
    %352 = vector.extract_strided_slice %350 {offsets = [0, 8], sizes = [8, 8], strides = [1, 1]} : vector<8x96xf32> to vector<8x8xf32>
    %353 = vector.extract_strided_slice %350 {offsets = [0, 16], sizes = [8, 8], strides = [1, 1]} : vector<8x96xf32> to vector<8x8xf32>
    %354 = vector.extract_strided_slice %350 {offsets = [0, 24], sizes = [8, 8], strides = [1, 1]} : vector<8x96xf32> to vector<8x8xf32>
    %355 = vector.shape_cast %351 : vector<8x8xf32> to vector<1x8x8xf32>
    %356 = vector.shape_cast %352 : vector<8x8xf32> to vector<1x8x8xf32>
    %357 = vector.shape_cast %353 : vector<8x8xf32> to vector<1x8x8xf32>
    %358 = vector.shape_cast %354 : vector<8x8xf32> to vector<1x8x8xf32>
    %359 = tpu.concatenate %355, %356, %357, %358 in 0 : vector<1x8x8xf32>, vector<1x8x8xf32>, vector<1x8x8xf32>, vector<1x8x8xf32> -> vector<4x8x8xf32>
    %360 = vector.extract_strided_slice %350 {offsets = [0, 32], sizes = [8, 8], strides = [1, 1]} : vector<8x96xf32> to vector<8x8xf32>
    %361 = vector.extract_strided_slice %350 {offsets = [0, 40], sizes = [8, 8], strides = [1, 1]} : vector<8x96xf32> to vector<8x8xf32>
    %362 = vector.extract_strided_slice %350 {offsets = [0, 48], sizes = [8, 8], strides = [1, 1]} : vector<8x96xf32> to vector<8x8xf32>
    %363 = vector.extract_strided_slice %350 {offsets = [0, 56], sizes = [8, 8], strides = [1, 1]} : vector<8x96xf32> to vector<8x8xf32>
    %364 = vector.shape_cast %360 : vector<8x8xf32> to vector<1x8x8xf32>
    %365 = vector.shape_cast %361 : vector<8x8xf32> to vector<1x8x8xf32>
    %366 = vector.shape_cast %362 : vector<8x8xf32> to vector<1x8x8xf32>
    %367 = vector.shape_cast %363 : vector<8x8xf32> to vector<1x8x8xf32>
    %368 = tpu.concatenate %364, %365, %366, %367 in 0 : vector<1x8x8xf32>, vector<1x8x8xf32>, vector<1x8x8xf32>, vector<1x8x8xf32> -> vector<4x8x8xf32>
    %369 = vector.extract_strided_slice %350 {offsets = [0, 64], sizes = [8, 8], strides = [1, 1]} : vector<8x96xf32> to vector<8x8xf32>
    %370 = vector.extract_strided_slice %350 {offsets = [0, 72], sizes = [8, 8], strides = [1, 1]} : vector<8x96xf32> to vector<8x8xf32>
    %371 = vector.extract_strided_slice %350 {offsets = [0, 80], sizes = [8, 8], strides = [1, 1]} : vector<8x96xf32> to vector<8x8xf32>
    %372 = vector.extract_strided_slice %350 {offsets = [0, 88], sizes = [8, 8], strides = [1, 1]} : vector<8x96xf32> to vector<8x8xf32>
    %373 = vector.shape_cast %369 : vector<8x8xf32> to vector<1x8x8xf32>
    %374 = vector.shape_cast %370 : vector<8x8xf32> to vector<1x8x8xf32>
    %375 = vector.shape_cast %371 : vector<8x8xf32> to vector<1x8x8xf32>
    %376 = vector.shape_cast %372 : vector<8x8xf32> to vector<1x8x8xf32>
    %377 = tpu.concatenate %373, %374, %375, %376 in 0 : vector<1x8x8xf32>, vector<1x8x8xf32>, vector<1x8x8xf32>, vector<1x8x8xf32> -> vector<4x8x8xf32>
    "tpu.trace_start"() <{level = 10 : i32, message = "hqd,hkd->hqk"}> : () -> ()
    %cst_79 = arith.constant dense<0.000000e+00> : vector<4x8x8xf32>
    %378 = tpu.matmul %359, %368, %cst_79 {dimension_numbers = #tpu.dot_dimension_numbers<[2], [2], [1], [1], [0, 0, 0, 1, 1, 1], [0], [0]>} : vector<4x8x8xf32>, vector<4x8x8xf32>, vector<4x8x8xf32> -> vector<4x8x8xf32>
    "tpu.trace_stop"() : () -> ()
    %cst_80 = arith.constant 0.353553385 : f32
    %379 = vector.broadcast %cst_80 : f32 to vector<4x8x8xf32>
    %380 = arith.mulf %378, %379 : vector<4x8x8xf32>
    %381 = vector.shape_cast %98 : vector<8x8xf32> to vector<1x8x8xf32>
    %382 = vector.broadcast %381 : vector<1x8x8xf32> to vector<4x8x8xf32>
    %383 = arith.addf %380, %382 : vector<4x8x8xf32>
    %cst_81 = arith.constant dense<0xFF800000> : vector<4x8xf32>
    %384 = vector.multi_reduction <maximumf>, %383, %cst_81 [2] : vector<4x8x8xf32> to vector<4x8xf32>
    %385 = vector.shape_cast %384 : vector<4x8xf32> to vector<4x8x1xf32>
    %386 = vector.broadcast %385 : vector<4x8x1xf32> to vector<4x8x8xf32>
    %387 = arith.subf %383, %386 : vector<4x8x8xf32>
    %388 = math.exp %387 : vector<4x8x8xf32>
    %cst_82 = arith.constant dense<0.000000e+00> : vector<4x8xf32>
    %389 = vector.multi_reduction <add>, %388, %cst_82 [2] : vector<4x8x8xf32> to vector<4x8xf32>
    %390 = vector.shape_cast %389 : vector<4x8xf32> to vector<4x8x1xf32>
    %391 = vector.broadcast %390 : vector<4x8x1xf32> to vector<4x8x8xf32>
    %392 = arith.divf %388, %391 : vector<4x8x8xf32>
    "tpu.trace_start"() <{level = 10 : i32, message = "hqk,hkd->hqd"}> : () -> ()
    %cst_83 = arith.constant dense<0.000000e+00> : vector<4x8x8xf32>
    %393 = tpu.matmul %392, %377, %cst_83 {dimension_numbers = #tpu.dot_dimension_numbers<[2], [1], [1], [2], [0, 0, 0, 1, 1, 2], [0], [0]>} : vector<4x8x8xf32>, vector<4x8x8xf32>, vector<4x8x8xf32> -> vector<4x8x8xf32>
    "tpu.trace_stop"() : () -> ()
    %394 = vector.extract_strided_slice %393 {offsets = [0, 0, 0], sizes = [1, 8, 8], strides = [1, 1, 1]} : vector<4x8x8xf32> to vector<1x8x8xf32>
    %395 = vector.shape_cast %394 : vector<1x8x8xf32> to vector<8x8xf32>
    %396 = vector.extract_strided_slice %393 {offsets = [1, 0, 0], sizes = [1, 8, 8], strides = [1, 1, 1]} : vector<4x8x8xf32> to vector<1x8x8xf32>
    %397 = vector.shape_cast %396 : vector<1x8x8xf32> to vector<8x8xf32>
    %398 = vector.extract_strided_slice %393 {offsets = [2, 0, 0], sizes = [1, 8, 8], strides = [1, 1, 1]} : vector<4x8x8xf32> to vector<1x8x8xf32>
    %399 = vector.shape_cast %398 : vector<1x8x8xf32> to vector<8x8xf32>
    %400 = vector.extract_strided_slice %393 {offsets = [3, 0, 0], sizes = [1, 8, 8], strides = [1, 1, 1]} : vector<4x8x8xf32> to vector<1x8x8xf32>
    %401 = vector.shape_cast %400 : vector<1x8x8xf32> to vector<8x8xf32>
    %402 = tpu.concatenate %395, %397, %399, %401 in 1 : vector<8x8xf32>, vector<8x8xf32>, vector<8x8xf32>, vector<8x8xf32> -> vector<8x32xf32>
    %403 = tpu.concatenate %349, %402 in 0 : vector<8x32xf32>, vector<8x32xf32> -> vector<16x32xf32>
    %404 = vector.extract_strided_slice %282 {offsets = [0, 96], sizes = [32, 32], strides = [1, 1]} : vector<32x128xf32> to vector<32x32xf32>
    %cst_84 = arith.constant dense<0.000000e+00> : vector<16x32xf32>
    %405 = tpu.matmul %403, %404, %cst_84 {dimension_numbers = #tpu.dot_dimension_numbers<[1], [0], [0], [1], [0, 0, 1, 1], [], []>} : vector<16x32xf32>, vector<32x32xf32>, vector<16x32xf32> -> vector<16x32xf32>
    %406 = vector.broadcast %286 : vector<1x32xf32> to vector<16x32xf32>
    %407 = arith.addf %405, %406 : vector<16x32xf32>
    %408 = arith.addf %280, %407 : vector<16x32xf32>
    %cst_85 = arith.constant dense<0.000000e+00> : vector<16xf32>
    %409 = vector.multi_reduction <add>, %408, %cst_85 [1] : vector<16x32xf32> to vector<16xf32>
    %410 = vector.shape_cast %409 : vector<16xf32> to vector<16x1xf32>
    %cst_86 = arith.constant 3.200000e+01 : f32
    %411 = vector.broadcast %cst_86 : f32 to vector<16x1xf32>
    %412 = arith.divf %410, %411 : vector<16x1xf32>
    %413 = vector.broadcast %412 : vector<16x1xf32> to vector<16x32xf32>
    %414 = arith.subf %408, %413 : vector<16x32xf32>
    %415 = arith.mulf %414, %414 : vector<16x32xf32>
    %cst_87 = arith.constant dense<0.000000e+00> : vector<16xf32>
    %416 = vector.multi_reduction <add>, %415, %cst_87 [1] : vector<16x32xf32> to vector<16xf32>
    %417 = vector.shape_cast %416 : vector<16xf32> to vector<16x1xf32>
    %cst_88 = arith.constant 3.200000e+01 : f32
    %418 = vector.broadcast %cst_88 : f32 to vector<16x1xf32>
    %419 = arith.divf %417, %418 : vector<16x1xf32>
    %cst_89 = arith.constant 9.99999974E-6 : f32
    %420 = vector.broadcast %cst_89 : f32 to vector<16x1xf32>
    %421 = arith.addf %419, %420 : vector<16x1xf32>
    %422 = math.rsqrt %421 : vector<16x1xf32>
    %423 = vector.broadcast %422 : vector<16x1xf32> to vector<16x32xf32>
    %424 = arith.mulf %414, %423 : vector<16x32xf32>
    %425 = vector.broadcast %288 : vector<1x32xf32> to vector<16x32xf32>
    %426 = arith.mulf %424, %425 : vector<16x32xf32>
    %427 = vector.broadcast %289 : vector<1x32xf32> to vector<16x32xf32>
    %428 = arith.addf %426, %427 : vector<16x32xf32>
    %c1_90 = arith.constant 1 : index
    %c0_91 = arith.constant 0 : index
    %c0_92 = arith.constant 0 : index
    %429 = vector.load %arg5[%c1_90, %c0_91, %c0_92] : memref<2x32x64xf32, #tpu.memory_space<vmem>>, vector<1x32x64xf32>
    %430 = vector.shape_cast %429 : vector<1x32x64xf32> to vector<32x64xf32>
    %cst_93 = arith.constant dense<0.000000e+00> : vector<16x64xf32>
    %431 = tpu.matmul %428, %430, %cst_93 {dimension_numbers = #tpu.dot_dimension_numbers<[1], [0], [0], [1], [0, 0, 1, 1], [], []>} : vector<16x32xf32>, vector<32x64xf32>, vector<16x64xf32> -> vector<16x64xf32>
    %432 = vector.broadcast %287 : vector<1x64xf32> to vector<16x64xf32>
    %433 = arith.addf %431, %432 : vector<16x64xf32>
    %cst_94 = arith.constant 0.000000e+00 : f32
    %434 = vector.broadcast %cst_94 : f32 to vector<16x64xf32>
    %435 = arith.maximumf %433, %434 : vector<16x64xf32>
    %c1_95 = arith.constant 1 : index
    %c0_96 = arith.constant 0 : index
    %c0_97 = arith.constant 0 : index
    %436 = vector.load %arg6[%c1_95, %c0_96, %c0_97] : memref<2x64x32xf32, #tpu.memory_space<vmem>>, vector<1x64x32xf32>
    %437 = vector.shape_cast %436 : vector<1x64x32xf32> to vector<64x32xf32>
    %cst_98 = arith.constant dense<0.000000e+00> : vector<16x32xf32>
    %438 = tpu.matmul %435, %437, %cst_98 {dimension_numbers = #tpu.dot_dimension_numbers<[1], [0], [0], [1], [0, 0, 1, 1], [], []>} : vector<16x64xf32>, vector<64x32xf32>, vector<16x32xf32> -> vector<16x32xf32>
    %439 = vector.broadcast %290 : vector<1x32xf32> to vector<16x32xf32>
    %440 = arith.addf %438, %439 : vector<16x32xf32>
    %441 = arith.addf %428, %440 : vector<16x32xf32>
    %cst_99 = arith.constant dense<0.000000e+00> : vector<16xf32>
    %442 = vector.multi_reduction <add>, %441, %cst_99 [1] : vector<16x32xf32> to vector<16xf32>
    %443 = vector.shape_cast %442 : vector<16xf32> to vector<16x1xf32>
    %cst_100 = arith.constant 3.200000e+01 : f32
    %444 = vector.broadcast %cst_100 : f32 to vector<16x1xf32>
    %445 = arith.divf %443, %444 : vector<16x1xf32>
    %446 = vector.broadcast %445 : vector<16x1xf32> to vector<16x32xf32>
    %447 = arith.subf %441, %446 : vector<16x32xf32>
    %448 = arith.mulf %447, %447 : vector<16x32xf32>
    %cst_101 = arith.constant dense<0.000000e+00> : vector<16xf32>
    %449 = vector.multi_reduction <add>, %448, %cst_101 [1] : vector<16x32xf32> to vector<16xf32>
    %450 = vector.shape_cast %449 : vector<16xf32> to vector<16x1xf32>
    %cst_102 = arith.constant 3.200000e+01 : f32
    %451 = vector.broadcast %cst_102 : f32 to vector<16x1xf32>
    %452 = arith.divf %450, %451 : vector<16x1xf32>
    %cst_103 = arith.constant 9.99999974E-6 : f32
    %453 = vector.broadcast %cst_103 : f32 to vector<16x1xf32>
    %454 = arith.addf %452, %453 : vector<16x1xf32>
    %455 = math.rsqrt %454 : vector<16x1xf32>
    %456 = vector.broadcast %455 : vector<16x1xf32> to vector<16x32xf32>
    %457 = arith.mulf %447, %456 : vector<16x32xf32>
    %458 = vector.broadcast %291 : vector<1x32xf32> to vector<16x32xf32>
    %459 = arith.mulf %457, %458 : vector<16x32xf32>
    %460 = vector.broadcast %292 : vector<1x32xf32> to vector<16x32xf32>
    %461 = arith.addf %459, %460 : vector<16x32xf32>
    %462 = vector.shape_cast %461 : vector<16x32xf32> to vector<2x8x32xf32>
    %cst_104 = arith.constant 0.000000e+00 : f32
    %463 = vector.shape_cast %69 : vector<2x8x1xi1> to vector<2x8x1xi1>
    %464 = vector.broadcast %463 : vector<2x8x1xi1> to vector<2x8x32xi1>
    %465 = vector.broadcast %cst_104 : f32 to vector<2x8x32xf32>
    %466 = arith.select %464, %465, %462 : vector<2x8x32xi1>, vector<2x8x32xf32>
    %c0_105 = arith.constant 0 : index
    %c0_106 = arith.constant 0 : index
    %c0_107 = arith.constant 0 : index
    %467 = vector.load %arg8[%c0_105, %c0_106, %c0_107] : memref<2x8x32xf32, #tpu.memory_space<vmem>>, vector<2x8x32xf32>
    tpu.vector_store %arg8[%c0_105, %c0_106, %c0_107], %466 {strides = array<i32>} : memref<2x8x32xf32, #tpu.memory_space<vmem>>, vector<2x8x32xf32>,
    return
  }
  func.func @transform_0(%arg0: i32) -> (i32, i32, i32) {
    %c0_i32 = arith.constant 0 : i32
    %c0_i32_0 = arith.constant 0 : i32
    %c0_i32_1 = arith.constant 0 : i32
    %c0_i32_2 = arith.constant 0 : i32
    return %c0_i32, %c0_i32_0, %c0_i32_1 : i32, i32, i32
  }
  func.func @transform_1(%arg0: i32) -> (i32, i32) {
    %c0_i32 = arith.constant 0 : i32
    %c0_i32_0 = arith.constant 0 : i32
    %c0_i32_1 = arith.constant 0 : i32
    return %c0_i32, %c0_i32_0 : i32, i32
  }
  func.func @transform_2(%arg0: i32) -> (i32, i32) {
    %c0_i32 = arith.constant 0 : i32
    %c0_i32_0 = arith.constant 0 : i32
    %c0_i32_1 = arith.constant 0 : i32
    return %c0_i32, %c0_i32_0 : i32, i32
  }
  func.func @transform_3(%arg0: i32) -> (i32, i32, i32) {
    %c0_i32 = arith.constant 0 : i32
    %c0_i32_0 = arith.constant 0 : i32
    %c0_i32_1 = arith.constant 0 : i32
    %c0_i32_2 = arith.constant 0 : i32
    return %c0_i32, %c0_i32_0, %c0_i32_1 : i32, i32, i32
  }
  func.func @transform_4(%arg0: i32) -> (i32, i32, i32) {
    %c0_i32 = arith.constant 0 : i32
    %c0_i32_0 = arith.constant 0 : i32
    %c0_i32_1 = arith.constant 0 : i32
    %c0_i32_2 = arith.constant 0 : i32
    return %c0_i32, %c0_i32_0, %c0_i32_1 : i32, i32, i32
  }
  func.func @transform_5(%arg0: i32) -> (i32, i32, i32) {
    %c0_i32 = arith.constant 0 : i32
    %c0_i32_0 = arith.constant 0 : i32
    %c0_i32_1 = arith.constant 0 : i32
    %c0_i32_2 = arith.constant 0 : i32
    return %c0_i32, %c0_i32_0, %c0_i32_1 : i32, i32, i32
  }
  func.func @transform_6(%arg0: i32) -> (i32, i32, i32) {
    %c0_i32 = arith.constant 0 : i32
    %c0_i32_0 = arith.constant 0 : i32
    %c0_i32_1 = arith.constant 0 : i32
    %c0_i32_2 = arith.constant 0 : i32
    return %c0_i32, %c0_i32_0, %c0_i32_1 : i32, i32, i32
  }
  func.func @transform_7(%arg0: i32) -> (i32, i32, i32) {
    %c0_i32 = arith.constant 0 : i32
    %c0_i32_0 = arith.constant 0 : i32
    %c0_i32_1 = arith.constant 0 : i32
    %c0_i32_2 = arith.constant 0 : i32
    return %c0_i32, %c0_i32_0, %c0_i32_1 : i32, i32, i32
  }
}

</mosaic_0001>

<llo_original>
// kernel: cnn_transformer_forward.1
$region0: #{cnn_transformer_forward.1}
  #allocation0 [shape = 'u32[]', space=smem, size = 0x4, offset = 0x4, fixed_abs, tag = 'smem constant byte address 0x4 - core index']
  #allocation1 [shape = 'u32[144,128]{1,0:T(1,128)}', space=vmem, size = 0x12000, scoped, tag = 'internal scratch']
  %s0 = inlined_call_operand.vmem [shape: f32[2,18,32], index: 0, kind: input, shape index: {}]
  %s1 = inlined_call_operand.vmem [shape: f32[8,18], index: 1, kind: input, shape index: {}]
  %s2 = inlined_call_operand.vmem [shape: f32[9,32], index: 2, kind: input, shape index: {}]
  %s3 = inlined_call_operand.vmem [shape: f32[2,32,128], index: 3, kind: input, shape index: {}]
  %s4 = inlined_call_operand.vmem [shape: f32[2,32,64], index: 4, kind: input, shape index: {}]
  %s5 = inlined_call_operand.vmem [shape: f32[2,64,32], index: 5, kind: input, shape index: {}]
  %s6 = inlined_call_operand.vmem [shape: f32[2,7,128], index: 6, kind: input, shape index: {}]
  %s7 = inlined_call_operand.hbm [shape: f32[2,8,32], index: 7, kind: output, shape index: {}]
  %s8 = sld [smem:[#allocation0]]
  $region38: #{cnn_transformer_forward.1} parent=0
    _
  %s10 = ssub.s32 1, %s8
  %s11 = scalar_select 0, %s10, %s8
  $region1: #{cnn_transformer_forward.1} parent=0
    #allocation2 [shape = 'u8[8192]{0}', space=vmem, size = 0x2000, scoped, tag = 'output window, operand 0, single buffered']
    #allocation3 [shape = 's32[1]{0}', space=sflag, size = 0x4, scoped, tag = 'scoped memory for cnn_transformer_forward.1']
    %12 = vsyncpa [#allocation3], 0
    // Predicated region
    $region2: #{cnn_transformer_forward.1} parent=1 // pred_check
      _
    $region3: #{cnn_transformer_forward.1} parent=1 // pred_check_branch
      %14 = sbr.rel (0) target = $region5
    $region4: #{cnn_transformer_forward.1} parent=1 // pred_region
      _
    $region5: #{cnn_transformer_forward.1} parent=1 // pred_fallthru
      _
    // Predicated region
    $region6: #{cnn_transformer_forward.1} parent=1 // pred_check
      _
    $region7: #{cnn_transformer_forward.1} parent=1 // pred_check_branch
      %16 = sbr.rel (0) target = $region9
    $region8: #{cnn_transformer_forward.1} parent=1 // pred_region
      _
    $region9: #{cnn_transformer_forward.1} parent=1 // pred_fallthru
      _
    // Predicated region
    $region10: #{cnn_transformer_forward.1} parent=1 // pred_check
      _
    $region11: #{cnn_transformer_forward.1} parent=1 // pred_check_branch
      %18 = sbr.rel (0) target = $region13
    $region12: #{cnn_transformer_forward.1} parent=1 // pred_region
      _
    $region13: #{cnn_transformer_forward.1} parent=1 // pred_fallthru
      _
    // Predicated region
    $region14: #{cnn_transformer_forward.1} parent=1 // pred_check
      _
    $region15: #{cnn_transformer_forward.1} parent=1 // pred_check_branch
      %20 = sbr.rel (0) target = $region17
    $region16: #{cnn_transformer_forward.1} parent=1 // pred_region
      _
    $region17: #{cnn_transformer_forward.1} parent=1 // pred_fallthru
      _
    // Predicated region
    $region18: #{cnn_transformer_forward.1} parent=1 // pred_check
      _
    $region19: #{cnn_transformer_forward.1} parent=1 // pred_check_branch
      %22 = sbr.rel (0) target = $region21
    $region20: #{cnn_transformer_forward.1} parent=1 // pred_region
      _
    $region21: #{cnn_transformer_forward.1} parent=1 // pred_fallthru
      _
    // Predicated region
    $region22: #{cnn_transformer_forward.1} parent=1 // pred_check
      _
    $region23: #{cnn_transformer_forward.1} parent=1 // pred_check_branch
      %24 = sbr.rel (0) target = $region25
    $region24: #{cnn_transformer_forward.1} parent=1 // pred_region
      _
    $region25: #{cnn_transformer_forward.1} parent=1 // pred_fallthru
      _
    // Predicated region
    $region26: #{cnn_transformer_forward.1} parent=1 // pred_check
      _
    $region27: #{cnn_transformer_forward.1} parent=1 // pred_check_branch
      %26 = sbr.rel (0) target = $region29
    $region28: #{cnn_transformer_forward.1} parent=1 // pred_region
      _
    $region29: #{cnn_transformer_forward.1} parent=1 // pred_fallthru
      _
    %v27 = vld [vmem:[%s2] sm:$0xff]
    %v28 = vld [vmem:[%s2 + $0x8] sm:$0x1]
    %v29 = vld [vmem:[%s1] sm:$0xff]
    %v30 = vld [vmem:[%s0] sm:$0xff]
    %v31 = vld [vmem:[%s0 + $0x8] sm:$0xff]
    %v32 = vld [vmem:[%s0 + $0x10] sm:$0x3]
    %vm33 = vcmask 261120
    %v34 = vsel %vm33, %v30, 0.0
    %v35 = vsel %vm33, %v31, 0.0
    %v36 = vadd.f32 %v34, %v35
    %vm37 = vcmask 254976
    %v38 = vsel %vm37, %v32, 0.0
    %v39 = vadd.f32 %v36, %v38
    %v40 = vrot.slane %v39, 4
    %v41 = vadd.f32 %v39, %v40
    %v42 = vrot.slane %v41, 2
    %v43 = vadd.f32 %v41, %v42
    %v44 = vrot.slane %v43, 1
    %v45 = vadd.f32 %v43, %v44
    %v46 = vrcp.pop 18.0
    %v47 = vmul.f32 %v45, %v46
    %v48 = vsub.f32 %v30, %v47
    %v49 = vsub.f32 %v31, %v47
    %v50 = vsub.f32 %v32, %v47
    %v51 = vmul.f32 %v48, %v48
    %v52 = vmul.f32 %v49, %v49
    %v53 = vmul.f32 %v50, %v50
    %v54 = vsel %vm33, %v51, 0.0
    %v55 = vsel %vm33, %v52, 0.0
    %v56 = vadd.f32 %v54, %v55
    %v57 = vsel %vm37, %v53, 0.0
    %v58 = vadd.f32 %v56, %v57
    %v59 = vrot.slane %v58, 4
    %v60 = vadd.f32 %v58, %v59
    %v61 = vrot.slane %v60, 2
    %v62 = vadd.f32 %v60, %v61
    %v63 = vrot.slane %v62, 1
    %v64 = vadd.f32 %v62, %v63
    %v65 = vmul.f32 %v64, %v46
    %v66 = vadd.f32 %v65, 1e-05
    %v67 = vrsqrt.pop %v66
    %v68 = vmul.f32 %v48, %v67
    %v69 = vmul.f32 %v49, %v67
    %v70 = vmul.f32 %v50, %v67
    %v71 = vlaneseq
    %v72 = vshrl.u32 %v71, 7
    %v73 = vsub.s32 0, %v72
    %v74 = vrot.slane %v28, %v73
    %vm75 = vcmask 146432
    %v77 = vsel %vm75, %v29, 0
    %vm79 = vcmask 1041408
    %v81 = vsel %vm79, %v70, 0
    %83 = vmatprep.subr.mxu0 0.0
    %84 = vmatpush1.msra.mxu0 %v68
    %85 = vmatprep.subr.mxu0 0.0
    %86 = vmatpush1.msra.mxu0 %v69
    %87 = vmatprep.subr.mxu0 0.0
    %88 = vmatpush1.msra.mxu0 %v81
    %89 = vmatprep.subr.mxu0 0.0
    %90 = vmatpush1.msra.mxu0 0.0
    %91 = vmatprep.subr.mxu0 0.0
    %92 = vmatpush1.msra.mxu0 0.0
    %93 = vmatprep.subr.mxu0 0.0
    %94 = vmatpush1.msra.mxu0 0.0
    %95 = vmatprep.subr.mxu0 0.0
    %96 = vmatpush1.msra.mxu0 0.0
    %97 = vmatprep.subr.mxu0 0.0
    %98 = vmatpush1.msra.mxu0 0.0
    %99 = vmatprep.subr.mxu0 0.0
    %100 = vmatpush1.msra.mxu0 0.0
    %101 = vmatprep.subr.mxu0 0.0
    %102 = vmatpush1.msra.mxu0 0.0
    %103 = vmatprep.subr.mxu0 0.0
    %104 = vmatpush1.msra.mxu0 0.0
    %105 = vmatprep.subr.mxu0 0.0
    %106 = vmatpush1.msra.mxu0 0.0
    %107 = vmatprep.subr.mxu0 0.0
    %108 = vmatpush1.msra.mxu0 0.0
    %109 = vmatprep.subr.mxu0 0.0
    %110 = vmatpush1.msra.mxu0 0.0
    %111 = vmatprep.subr.mxu0 0.0
    %112 = vmatpush1.msra.mxu0 0.0
    %113 = vmatprep.subr.mxu0 0.0
    %114 = vmatpush1.msra.mxu0 0.0
    %115 = vmatprep.subr.mxu0 0.0
    %116 = vmatpush1.msra.mxu0 0.0
    %117 = vmatprep.subr.mxu0 0.0
    %118 = vmatpush1.msra.mxu0 0.0
    %119 = vmatprep.subr.mxu0 0.0
    %120 = vmatpush1.msra.mxu0 0.0
    %121 = vmatprep.subr.mxu0 0.0
    %122 = vmatpush1.msra.mxu0 0.0
    %123 = vmatprep.subr.mxu0 0.0
    %124 = vmatpush1.msra.mxu0 0.0
    %125 = vmatprep.subr.mxu0 0.0
    %126 = vmatpush1.msra.mxu0 0.0
    %127 = vmatprep.subr.mxu0 0.0
    %128 = vmatpush1.msra.mxu0 0.0
    %129 = vmatprep.subr.mxu0 0.0
    %130 = vmatpush1.msra.mxu0 0.0
    %131 = vmatprep.subr.mxu0 0.0
    %132 = vmatpush1.msra.mxu0 0.0
    %133 = vmatprep.subr.mxu0 0.0
    %134 = vmatpush1.msra.mxu0 0.0
    %135 = vmatprep.subr.mxu0 0.0
    %136 = vmatpush1.msra.mxu0 0.0
    %137 = vmatprep.subr.mxu0 0.0
    %138 = vmatpush1.msra.mxu0 0.0
    %139 = vmatprep.subr.mxu0 0.0
    %140 = vmatpush1.msra.mxu0 0.0
    %141 = vmatprep.subr.mxu0 0.0
    %142 = vmatpush1.msra.mxu0 0.0
    %143 = vmatprep.subr.mxu0 0.0
    %144 = vmatpush1.msra.mxu0 0.0
    %145 = vmatprep.subr.mxu0 0.0
    %146 = vmatpush1.msra.mxu0 0.0
    %147 = vmatprep.mubr.f32.mxu0 0.0
    %148 = vmatmul.mubr.f32.gmra.mrb[0].mxu0 %v77
    %v149 = vpop.f32.mrb[0].mxu0
    %v150 = vadd.f32 %v74, %v149
    %v151 = vpop.f32.mrb[0].mxu0
    %152 = vdwg.mxu0
    %s153 = scalar_lea.vmem %s0, 24
    %v154 = vld [vmem:[%s153] sm:$0xff]
    %v155 = vld [vmem:[%s153 + $0x8] sm:$0xff]
    %v156 = vld [vmem:[%s153 + $0x10] sm:$0x3]
    %v157 = vsel %vm33, %v154, 0.0
    %v158 = vsel %vm33, %v155, 0.0
    %v159 = vadd.f32 %v157, %v158
    %v160 = vsel %vm37, %v156, 0.0
    %v161 = vadd.f32 %v159, %v160
    %v162 = vrot.slane %v161, 4
    %v163 = vadd.f32 %v161, %v162
    %v164 = vrot.slane %v163, 2
    %v165 = vadd.f32 %v163, %v164
    %v166 = vrot.slane %v165, 1
    %v167 = vadd.f32 %v165, %v166
    %v168 = vmul.f32 %v167, %v46
    %v169 = vsub.f32 %v154, %v168
    %v170 = vsub.f32 %v155, %v168
    %v171 = vsub.f32 %v156, %v168
    %v172 = vmul.f32 %v169, %v169
    %v173 = vmul.f32 %v170, %v170
    %v174 = vmul.f32 %v171, %v171
    %v175 = vsel %vm33, %v172, 0.0
    %v176 = vsel %vm33, %v173, 0.0
    %v177 = vadd.f32 %v175, %v176
    %v178 = vsel %vm37, %v174, 0.0
    %v179 = vadd.f32 %v177, %v178
    %v180 = vrot.slane %v179, 4
    %v181 = vadd.f32 %v179, %v180
    %v182 = vrot.slane %v181, 2
    %v183 = vadd.f32 %v181, %v182
    %v184 = vrot.slane %v183, 1
    %v185 = vadd.f32 %v183, %v184
    %v186 = vmul.f32 %v185, %v46
    %v187 = vadd.f32 %v186, 1e-05
    %v188 = vrsqrt.pop %v187
    %v189 = vmul.f32 %v169, %v188
    %v190 = vmul.f32 %v170, %v188
    %v191 = vmul.f32 %v171, %v188
    %v193 = vsel %vm79, %v191, 0
    %195 = vmatprep.subr.mxu0 0.0
    %196 = vmatpush1.msra.mxu0 %v189
    %197 = vmatprep.subr.mxu0 0.0
    %198 = vmatpush1.msra.mxu0 %v190
    %199 = vmatprep.subr.mxu0 0.0
    %200 = vmatpush1.msra.mxu0 %v193
    %201 = vmatprep.subr.mxu0 0.0
    %202 = vmatpush1.msra.mxu0 0.0
    %203 = vmatprep.subr.mxu0 0.0
    %204 = vmatpush1.msra.mxu0 0.0
    %205 = vmatprep.subr.mxu0 0.0
    %206 = vmatpush1.msra.mxu0 0.0
    %207 = vmatprep.subr.mxu0 0.0
    %208 = vmatpush1.msra.mxu0 0.0
    %209 = vmatprep.subr.mxu0 0.0
    %210 = vmatpush1.msra.mxu0 0.0
    %211 = vmatprep.subr.mxu0 0.0
    %212 = vmatpush1.msra.mxu0 0.0
    %213 = vmatprep.subr.mxu0 0.0
    %214 = vmatpush1.msra.mxu0 0.0
    %215 = vmatprep.subr.mxu0 0.0
    %216 = vmatpush1.msra.mxu0 0.0
    %217 = vmatprep.subr.mxu0 0.0
    %218 = vmatpush1.msra.mxu0 0.0
    %219 = vmatprep.subr.mxu0 0.0
    %220 = vmatpush1.msra.mxu0 0.0
    %221 = vmatprep.subr.mxu0 0.0
    %222 = vmatpush1.msra.mxu0 0.0
    %223 = vmatprep.subr.mxu0 0.0
    %224 = vmatpush1.msra.mxu0 0.0
    %225 = vmatprep.subr.mxu0 0.0
    %226 = vmatpush1.msra.mxu0 0.0
    %227 = vmatprep.subr.mxu0 0.0
    %228 = vmatpush1.msra.mxu0 0.0
    %229 = vmatprep.subr.mxu0 0.0
    %230 = vmatpush1.msra.mxu0 0.0
    %231 = vmatprep.subr.mxu0 0.0
    %232 = vmatpush1.msra.mxu0 0.0
    %233 = vmatprep.subr.mxu0 0.0
    %234 = vmatpush1.msra.mxu0 0.0
    %235 = vmatprep.subr.mxu0 0.0
    %236 = vmatpush1.msra.mxu0 0.0
    %237 = vmatprep.subr.mxu0 0.0
    %238 = vmatpush1.msra.mxu0 0.0
    %239 = vmatprep.subr.mxu0 0.0
    %240 = vmatpush1.msra.mxu0 0.0
    %241 = vmatprep.subr.mxu0 0.0
    %242 = vmatpush1.msra.mxu0 0.0
    %243 = vmatprep.subr.mxu0 0.0
    %244 = vmatpush1.msra.mxu0 0.0
    %245 = vmatprep.subr.mxu0 0.0
    %246 = vmatpush1.msra.mxu0 0.0
    %247 = vmatprep.subr.mxu0 0.0
    %248 = vmatpush1.msra.mxu0 0.0
    %249 = vmatprep.subr.mxu0 0.0
    %250 = vmatpush1.msra.mxu0 0.0
    %251 = vmatprep.subr.mxu0 0.0
    %252 = vmatpush1.msra.mxu0 0.0
    %253 = vmatprep.subr.mxu0 0.0
    %254 = vmatpush1.msra.mxu0 0.0
    %255 = vmatprep.subr.mxu0 0.0
    %256 = vmatpush1.msra.mxu0 0.0
    %257 = vmatprep.subr.mxu0 0.0
    %258 = vmatpush1.msra.mxu0 0.0
    %259 = vmatprep.mubr.f32.mxu0 0.0
    %260 = vmatmul.mubr.f32.gmra.mrb[0].mxu0 %v77
    %v261 = vpop.f32.mrb[0].mxu0
    %v262 = vadd.f32 %v74, %v261
    %v263 = vpop.f32.mrb[0].mxu0
    %264 = vdwg.mxu0
    %v265 = vadd.f32 %v150, 0.0
    %v267 = vrot.slane %v265, 7
    %s269 = vtos %v267
    %v270 = vstv %s269
    %vm271 = vcmp.eq.f32.partialorder %v150, %v270
    %vm272 = vcmp.eq.f32.partialorder %v262, %v270
    %v273 = vsel %vm271, 1, 0
    %v274 = vsel %vm272, 1, 0
    %v275 = vcvt.s32.f32 %v273
    %v276 = vcvt.s32.f32 %v274
    %v277 = vsel %vm33, %v275, 0.0
    %v278 = vsel %vm33, %v276, 0.0
    %v279 = vadd.f32 %v277, %v278
    %280 = vadd.xlane.f32.xlu0 %v279
    %v281 = vpop.xlane.xlu0 %280
    %v282 = vrot.slane %v281, 4
    %v283 = vadd.f32 %v281, %v282
    %v284 = vrot.slane %v283, 2
    %v285 = vadd.f32 %v283, %v284
    %v286 = vrot.slane %v285, 1
    %v287 = vadd.f32 %v285, %v286
    %s288 = vtos %v287
    %p289 = scmp.ge.f32.partialorder %s288, 32.0
    %s290 = scalar_select %p289, 1, 0
    %v291 = vstv %s290
    %vm292 = vcmp.eq.s32.totalorder %v291, 1
    %vm293 = vmand %vm271, %vm292
    %vm294 = vmand %vm272, %vm292
    %v295 = vsel %vm293, 0.0, %v150
    %v296 = vsel %vm294, 0.0, %v262
    %vm297 = vcmp.eq.f32.partialorder %v295, 0.0
    %vm298 = vcmp.eq.f32.partialorder %v296, 0.0
    %v299 = vsel %vm297, 1, 0
    %v300 = vsel %vm298, 1, 0
    %v301 = vcvt.s32.f32 %v299
    %v302 = vcvt.s32.f32 %v300
    %v303 = vadd.f32 %v295, %v27
    %v304 = vadd.f32 %v296, %v27
    %305 = vset.pattern.permute.xlu0 0
    %306 = vperm.xlu0 %305, %v299
    %v307 = vpop.permute.xlu0 %306
    %308 = vset.pattern.permute.xlu0 0
    %309 = vperm.xlu0 %308, %v300
    %v310 = vpop.permute.xlu0 %309
    %vm311 = vcmp.eq.s32.totalorder %v307, 1
    %vm312 = vcmp.eq.s32.totalorder %v310, 1
    %v313 = vsel %vm311, 0.0, %v303
    %v314 = vsel %vm312, 0.0, %v304
    %v315 = vlaneseq
    %v316 = vshrl.u32 %v315, 7
    %v317 = vlaneseq
    %v318 = vand.u32 %v317, 127
    %vm319 = vcmp.eq.s32.totalorder %v316, %v318
    %v320 = vsel %vm319, 1, 0
    %v321 = vcvt.s32.f32 %v320
    %v322 = vmul.f32 %v301, -1e+30
    %324 = vset.pattern.permute.xlu0 0
    %325 = vperm.xlu0 %324, %v322
    %v326 = vpop.permute.xlu0 %325
    %v328 = vmul.f32 %v321, %v326
    %vm329 = vcmask 64512
    %v331 = vsel %vm329, 1.0, 0
    %333 = vmatprep.subr.mxu0 0.0
    %334 = vmatpush1.msra.mxu0 %v328
    %335 = vmatprep.subr.mxu0 0.0
    %336 = vmatpush1.msra.mxu0 0.0
    %337 = vmatprep.subr.mxu0 0.0
    %338 = vmatpush1.msra.mxu0 0.0
    %339 = vmatprep.subr.mxu0 0.0
    %340 = vmatpush1.msra.mxu0 0.0
    %341 = vmatprep.subr.mxu0 0.0
    %342 = vmatpush1.msra.mxu0 0.0
    %343 = vmatprep.subr.mxu0 0.0
    %344 = vmatpush1.msra.mxu0 0.0
    %345 = vmatprep.subr.mxu0 0.0
    %346 = vmatpush1.msra.mxu0 0.0
    %347 = vmatprep.subr.mxu0 0.0
    %348 = vmatpush1.msra.mxu0 0.0
    %349 = vmatprep.subr.mxu0 0.0
    %350 = vmatpush1.msra.mxu0 0.0
    %351 = vmatprep.subr.mxu0 0.0
    %352 = vmatpush1.msra.mxu0 0.0
    %353 = vmatprep.subr.mxu0 0.0
    %354 = vmatpush1.msra.mxu0 0.0
    %355 = vmatprep.subr.mxu0 0.0
    %356 = vmatpush1.msra.mxu0 0.0
    %357 = vmatprep.subr.mxu0 0.0
    %358 = vmatpush1.msra.mxu0 0.0
    %359 = vmatprep.subr.mxu0 0.0
    %360 = vmatpush1.msra.mxu0 0.0
    %361 = vmatprep.subr.mxu0 0.0
    %362 = vmatpush1.msra.mxu0 0.0
    %363 = vmatprep.subr.mxu0 0.0
    %364 = vmatpush1.msra.mxu0 0.0
    %365 = vmatprep.subr.mxu0 0.0
    %366 = vmatpush1.msra.mxu0 0.0
    %367 = vmatprep.subr.mxu0 0.0
    %368 = vmatpush1.msra.mxu0 0.0
    %369 = vmatprep.subr.mxu0 0.0
    %370 = vmatpush1.msra.mxu0 0.0
    %371 = vmatprep.subr.mxu0 0.0
    %372 = vmatpush1.msra.mxu0 0.0
    %373 = vmatprep.subr.mxu0 0.0
    %374 = vmatpush1.msra.mxu0 0.0
    %375 = vmatprep.subr.mxu0 0.0
    %376 = vmatpush1.msra.mxu0 0.0
    %377 = vmatprep.subr.mxu0 0.0
    %378 = vmatpush1.msra.mxu0 0.0
    %379 = vmatprep.subr.mxu0 0.0
    %380 = vmatpush1.msra.mxu0 0.0
    %381 = vmatprep.subr.mxu0 0.0
    %382 = vmatpush1.msra.mxu0 0.0
    %383 = vmatprep.subr.mxu0 0.0
    %384 = vmatpush1.msra.mxu0 0.0
    %385 = vmatprep.subr.mxu0 0.0
    %386 = vmatpush1.msra.mxu0 0.0
    %387 = vmatprep.subr.mxu0 0.0
    %388 = vmatpush1.msra.mxu0 0.0
    %389 = vmatprep.subr.mxu0 0.0
    %390 = vmatpush1.msra.mxu0 0.0
    %391 = vmatprep.subr.mxu0 0.0
    %392 = vmatpush1.msra.mxu0 0.0
    %393 = vmatprep.subr.mxu0 0.0
    %394 = vmatpush1.msra.mxu0 0.0
    %395 = vmatprep.subr.mxu0 0.0
    %396 = vmatpush1.msra.mxu0 0.0
    %397 = vmatprep.mubr.f32.mxu0 0.0
    %398 = vmatmul.mubr.f32.gmra.mrb[0].mxu0 %v331
    %v399 = vpop.f32.mrb[0].mxu0
    %v400 = vadd.f32 0.0, %v399
    %v401 = vpop.f32.mrb[0].mxu0
    %402 = vdwg.mxu0
    %v403 = vmul.f32 %v302, -1e+30
    %405 = vset.pattern.permute.xlu0 0
    %406 = vperm.xlu0 %405, %v403
    %v407 = vpop.permute.xlu0 %406
    %v409 = vmul.f32 %v321, %v407
    %410 = vmatprep.subr.mxu0 0.0
    %411 = vmatpush1.msra.mxu0 %v409
    %412 = vmatprep.subr.mxu0 0.0
    %413 = vmatpush1.msra.mxu0 0.0
    %414 = vmatprep.subr.mxu0 0.0
    %415 = vmatpush1.msra.mxu0 0.0
    %416 = vmatprep.subr.mxu0 0.0
    %417 = vmatpush1.msra.mxu0 0.0
    %418 = vmatprep.subr.mxu0 0.0
    %419 = vmatpush1.msra.mxu0 0.0
    %420 = vmatprep.subr.mxu0 0.0
    %421 = vmatpush1.msra.mxu0 0.0
    %422 = vmatprep.subr.mxu0 0.0
    %423 = vmatpush1.msra.mxu0 0.0
    %424 = vmatprep.subr.mxu0 0.0
    %425 = vmatpush1.msra.mxu0 0.0
    %426 = vmatprep.subr.mxu0 0.0
    %427 = vmatpush1.msra.mxu0 0.0
    %428 = vmatprep.subr.mxu0 0.0
    %429 = vmatpush1.msra.mxu0 0.0
    %430 = vmatprep.subr.mxu0 0.0
    %431 = vmatpush1.msra.mxu0 0.0
    %432 = vmatprep.subr.mxu0 0.0
    %433 = vmatpush1.msra.mxu0 0.0
    %434 = vmatprep.subr.mxu0 0.0
    %435 = vmatpush1.msra.mxu0 0.0
    %436 = vmatprep.subr.mxu0 0.0
    %437 = vmatpush1.msra.mxu0 0.0
    %438 = vmatprep.subr.mxu0 0.0
    %439 = vmatpush1.msra.mxu0 0.0
    %440 = vmatprep.subr.mxu0 0.0
    %441 = vmatpush1.msra.mxu0 0.0
    %442 = vmatprep.subr.mxu0 0.0
    %443 = vmatpush1.msra.mxu0 0.0
    %444 = vmatprep.subr.mxu0 0.0
    %445 = vmatpush1.msra.mxu0 0.0
    %446 = vmatprep.subr.mxu0 0.0
    %447 = vmatpush1.msra.mxu0 0.0
    %448 = vmatprep.subr.mxu0 0.0
    %449 = vmatpush1.msra.mxu0 0.0
    %450 = vmatprep.subr.mxu0 0.0
    %451 = vmatpush1.msra.mxu0 0.0
    %452 = vmatprep.subr.mxu0 0.0
    %453 = vmatpush1.msra.mxu0 0.0
    %454 = vmatprep.subr.mxu0 0.0
    %455 = vmatpush1.msra.mxu0 0.0
    %456 = vmatprep.subr.mxu0 0.0
    %457 = vmatpush1.msra.mxu0 0.0
    %458 = vmatprep.subr.mxu0 0.0
    %459 = vmatpush1.msra.mxu0 0.0
    %460 = vmatprep.subr.mxu0 0.0
    %461 = vmatpush1.msra.mxu0 0.0
    %462 = vmatprep.subr.mxu0 0.0
    %463 = vmatpush1.msra.mxu0 0.0
    %464 = vmatprep.subr.mxu0 0.0
    %465 = vmatpush1.msra.mxu0 0.0
    %466 = vmatprep.subr.mxu0 0.0
    %467 = vmatpush1.msra.mxu0 0.0
    %468 = vmatprep.subr.mxu0 0.0
    %469 = vmatpush1.msra.mxu0 0.0
    %470 = vmatprep.subr.mxu0 0.0
    %471 = vmatpush1.msra.mxu0 0.0
    %472 = vmatprep.subr.mxu0 0.0
    %473 = vmatpush1.msra.mxu0 0.0
    %474 = vmatprep.mubr.f32.mxu0 0.0
    %475 = vmatmul.mubr.f32.gmra.mrb[0].mxu0 %v331
    %v476 = vpop.f32.mrb[0].mxu0
    %v477 = vadd.f32 0.0, %v476
    %v478 = vpop.f32.mrb[0].mxu0
    %479 = vdwg.mxu0
    %v480 = vld [vmem:[%s3] sm:$0xff]
    %v481 = vld [vmem:[%s3 + $0x8] sm:$0xff]
    %v482 = vld [vmem:[%s3 + $0x10] sm:$0xff]
    %v483 = vld [vmem:[%s3 + $0x18] sm:$0xff]
    %v484 = vld [vmem:[%s6] sm:$0x7f]
    %v485 = vlaneseq
    %v486 = vshrl.u32 %v485, 7
    %v487 = vsub.s32 0, %v486
    %v488 = vrot.slane %v484, %v487
    %v490 = vsel %vm33, %v313, 0
    %v493 = vsel %vm33, %v314, 0
    %495 = vmatprep.subr.mxu0 0.0
    %496 = vmatpush1.msra.mxu0 %v480
    %497 = vmatprep.subr.mxu0 0.0
    %498 = vmatpush1.msra.mxu0 %v481
    %499 = vmatprep.subr.mxu0 0.0
    %500 = vmatpush1.msra.mxu0 %v482
    %501 = vmatprep.subr.mxu0 0.0
    %502 = vmatpush1.msra.mxu0 %v483
    %503 = vmatprep.subr.mxu0 0.0
    %504 = vmatpush1.msra.mxu0 0.0
    %505 = vmatprep.subr.mxu0 0.0
    %506 = vmatpush1.msra.mxu0 0.0
    %507 = vmatprep.subr.mxu0 0.0
    %508 = vmatpush1.msra.mxu0 0.0
    %509 = vmatprep.subr.mxu0 0.0
    %510 = vmatpush1.msra.mxu0 0.0
    %511 = vmatprep.subr.mxu0 0.0
    %512 = vmatpush1.msra.mxu0 0.0
    %513 = vmatprep.subr.mxu0 0.0
    %514 = vmatpush1.msra.mxu0 0.0
    %515 = vmatprep.subr.mxu0 0.0
    %516 = vmatpush1.msra.mxu0 0.0
    %517 = vmatprep.subr.mxu0 0.0
    %518 = vmatpush1.msra.mxu0 0.0
    %519 = vmatprep.subr.mxu0 0.0
    %520 = vmatpush1.msra.mxu0 0.0
    %521 = vmatprep.subr.mxu0 0.0
    %522 = vmatpush1.msra.mxu0 0.0
    %523 = vmatprep.subr.mxu0 0.0
    %524 = vmatpush1.msra.mxu0 0.0
    %525 = vmatprep.subr.mxu0 0.0
    %526 = vmatpush1.msra.mxu0 0.0
    %527 = vmatprep.subr.mxu0 0.0
    %528 = vmatpush1.msra.mxu0 0.0
    %529 = vmatprep.subr.mxu0 0.0
    %530 = vmatpush1.msra.mxu0 0.0
    %531 = vmatprep.subr.mxu0 0.0
    %532 = vmatpush1.msra.mxu0 0.0
    %533 = vmatprep.subr.mxu0 0.0
    %534 = vmatpush1.msra.mxu0 0.0
    %535 = vmatprep.subr.mxu0 0.0
    %536 = vmatpush1.msra.mxu0 0.0
    %537 = vmatprep.subr.mxu0 0.0
    %538 = vmatpush1.msra.mxu0 0.0
    %539 = vmatprep.subr.mxu0 0.0
    %540 = vmatpush1.msra.mxu0 0.0
    %541 = vmatprep.subr.mxu0 0.0
    %542 = vmatpush1.msra.mxu0 0.0
    %543 = vmatprep.subr.mxu0 0.0
    %544 = vmatpush1.msra.mxu0 0.0
    %545 = vmatprep.subr.mxu0 0.0
    %546 = vmatpush1.msra.mxu0 0.0
    %547 = vmatprep.subr.mxu0 0.0
    %548 = vmatpush1.msra.mxu0 0.0
    %549 = vmatprep.subr.mxu0 0.0
    %550 = vmatpush1.msra.mxu0 0.0
    %551 = vmatprep.subr.mxu0 0.0
    %552 = vmatpush1.msra.mxu0 0.0
    %553 = vmatprep.subr.mxu0 0.0
    %554 = vmatpush1.msra.mxu0 0.0
    %555 = vmatprep.subr.mxu0 0.0
    %556 = vmatpush1.msra.mxu0 0.0
    %557 = vmatprep.subr.mxu0 0.0
    %558 = vmatpush1.msra.mxu0 0.0
    %559 = vmatprep.mubr.f32.mxu0 0.0
    %560 = vmatmul.mubr.f32.gmra.mrb[0].mxu0 %v490
    %v561 = vpop.f32.mrb[0].mxu0
    %v562 = vadd.f32 %v488, %v561
    %v563 = vpop.f32.mrb[0].mxu0
    %564 = vmatprep.mubr.f32.mxu0 0.0
    %565 = vmatmul.mubr.f32.gmra.mrb[0].mxu0 %v493
    %v566 = vpop.f32.mrb[0].mxu0
    %v567 = vadd.f32 %v488, %v566
    %v568 = vpop.f32.mrb[0].mxu0
    %569 = vdwg.mxu0
    %571 = vrot.lane.b32.xlu0 %v562, 120
    %v572 = vpop.permute.xlu0 %571
    %573 = vrot.lane.b32.xlu0 %v562, 112
    %v574 = vpop.permute.xlu0 %573
    %575 = vrot.lane.b32.xlu0 %v562, 104
    %v576 = vpop.permute.xlu0 %575
    %577 = vrot.lane.b32.xlu0 %v562, 96
    %v578 = vpop.permute.xlu0 %577
    %v579 = vsel %vm329, %v562, 0
    %v581 = vsel %vm329, %v578, 0
    %583 = vmatprep.subr.mxu0 0.0
    %584 = vmatpush1.xpose.msra.mxu0 %v581
    %585 = vmatprep.subr.mxu0 0.0
    %586 = vmatpush1.xpose.msra.mxu0 0.0
    %587 = vmatprep.subr.mxu0 0.0
    %588 = vmatpush1.xpose.msra.mxu0 0.0
    %589 = vmatprep.subr.mxu0 0.0
    %590 = vmatpush1.xpose.msra.mxu0 0.0
    %591 = vmatprep.subr.mxu0 0.0
    %592 = vmatpush1.xpose.msra.mxu0 0.0
    %593 = vmatprep.subr.mxu0 0.0
    %594 = vmatpush1.xpose.msra.mxu0 0.0
    %595 = vmatprep.subr.mxu0 0.0
    %596 = vmatpush1.xpose.msra.mxu0 0.0
    %597 = vmatprep.subr.mxu0 0.0
    %598 = vmatpush1.xpose.msra.mxu0 0.0
    %599 = vmatprep.subr.mxu0 0.0
    %600 = vmatpush1.xpose.msra.mxu0 0.0
    %601 = vmatprep.subr.mxu0 0.0
    %602 = vmatpush1.xpose.msra.mxu0 0.0
    %603 = vmatprep.subr.mxu0 0.0
    %604 = vmatpush1.xpose.msra.mxu0 0.0
    %605 = vmatprep.subr.mxu0 0.0
    %606 = vmatpush1.xpose.msra.mxu0 0.0
    %607 = vmatprep.subr.mxu0 0.0
    %608 = vmatpush1.xpose.msra.mxu0 0.0
    %609 = vmatprep.subr.mxu0 0.0
    %610 = vmatpush1.xpose.msra.mxu0 0.0
    %611 = vmatprep.subr.mxu0 0.0
    %612 = vmatpush1.xpose.msra.mxu0 0.0
    %613 = vmatprep.subr.mxu0 0.0
    %614 = vmatpush1.xpose.msra.mxu0 0.0
    %615 = vmatprep.subr.mxu0 0.0
    %616 = vmatpush1.xpose.msra.mxu0 0.0
    %617 = vmatprep.subr.mxu0 0.0
    %618 = vmatpush1.xpose.msra.mxu0 0.0
    %619 = vmatprep.subr.mxu0 0.0
    %620 = vmatpush1.xpose.msra.mxu0 0.0
    %621 = vmatprep.subr.mxu0 0.0
    %622 = vmatpush1.xpose.msra.mxu0 0.0
    %623 = vmatprep.subr.mxu0 0.0
    %624 = vmatpush1.xpose.msra.mxu0 0.0
    %625 = vmatprep.subr.mxu0 0.0
    %626 = vmatpush1.xpose.msra.mxu0 0.0
    %627 = vmatprep.subr.mxu0 0.0
    %628 = vmatpush1.xpose.msra.mxu0 0.0
    %629 = vmatprep.subr.mxu0 0.0
    %630 = vmatpush1.xpose.msra.mxu0 0.0
    %631 = vmatprep.subr.mxu0 0.0
    %632 = vmatpush1.xpose.msra.mxu0 0.0
    %633 = vmatprep.subr.mxu0 0.0
    %634 = vmatpush1.xpose.msra.mxu0 0.0
    %635 = vmatprep.subr.mxu0 0.0
    %636 = vmatpush1.xpose.msra.mxu0 0.0
    %637 = vmatprep.subr.mxu0 0.0
    %638 = vmatpush1.xpose.msra.mxu0 0.0
    %639 = vmatprep.subr.mxu0 0.0
    %640 = vmatpush1.xpose.msra.mxu0 0.0
    %641 = vmatprep.subr.mxu0 0.0
    %642 = vmatpush1.xpose.msra.mxu0 0.0
    %643 = vmatprep.subr.mxu0 0.0
    %644 = vmatpush1.xpose.msra.mxu0 0.0
    %645 = vmatprep.subr.mxu0 0.0
    %646 = vmatpush1.xpose.msra.mxu0 0.0
    %647 = vmatprep.mubr.f32.mxu0 0.0
    %648 = vmatmul.mubr.f32.gmra.mrb[0].mxu0 %v579
    %v649 = vpop.f32.mrb[0].mxu0
    %v650 = vadd.f32 0.0, %v649
    %v651 = vpop.f32.mrb[0].mxu0
    %652 = vdwg.mxu0
    %653 = vrot.lane.b32.xlu0 %v572, 96
    %v654 = vpop.permute.xlu0 %653
    %v655 = vsel %vm329, %v572, 0
    %v657 = vsel %vm329, %v654, 0
    %659 = vmatprep.subr.mxu0 0.0
    %660 = vmatpush1.xpose.msra.mxu0 %v657
    %661 = vmatprep.subr.mxu0 0.0
    %662 = vmatpush1.xpose.msra.mxu0 0.0
    %663 = vmatprep.subr.mxu0 0.0
    %664 = vmatpush1.xpose.msra.mxu0 0.0
    %665 = vmatprep.subr.mxu0 0.0
    %666 = vmatpush1.xpose.msra.mxu0 0.0
    %667 = vmatprep.subr.mxu0 0.0
    %668 = vmatpush1.xpose.msra.mxu0 0.0
    %669 = vmatprep.subr.mxu0 0.0
    %670 = vmatpush1.xpose.msra.mxu0 0.0
    %671 = vmatprep.subr.mxu0 0.0
    %672 = vmatpush1.xpose.msra.mxu0 0.0
    %673 = vmatprep.subr.mxu0 0.0
    %674 = vmatpush1.xpose.msra.mxu0 0.0
    %675 = vmatprep.subr.mxu0 0.0
    %676 = vmatpush1.xpose.msra.mxu0 0.0
    %677 = vmatprep.subr.mxu0 0.0
    %678 = vmatpush1.xpose.msra.mxu0 0.0
    %679 = vmatprep.subr.mxu0 0.0
    %680 = vmatpush1.xpose.msra.mxu0 0.0
    %681 = vmatprep.subr.mxu0 0.0
    %682 = vmatpush1.xpose.msra.mxu0 0.0
    %683 = vmatprep.subr.mxu0 0.0
    %684 = vmatpush1.xpose.msra.mxu0 0.0
    %685 = vmatprep.subr.mxu0 0.0
    %686 = vmatpush1.xpose.msra.mxu0 0.0
    %687 = vmatprep.subr.mxu0 0.0
    %688 = vmatpush1.xpose.msra.mxu0 0.0
    %689 = vmatprep.subr.mxu0 0.0
    %690 = vmatpush1.xpose.msra.mxu0 0.0
    %691 = vmatprep.subr.mxu0 0.0
    %692 = vmatpush1.xpose.msra.mxu0 0.0
    %693 = vmatprep.subr.mxu0 0.0
    %694 = vmatpush1.xpose.msra.mxu0 0.0
    %695 = vmatprep.subr.mxu0 0.0
    %696 = vmatpush1.xpose.msra.mxu0 0.0
    %697 = vmatprep.subr.mxu0 0.0
    %698 = vmatpush1.xpose.msra.mxu0 0.0
    %699 = vmatprep.subr.mxu0 0.0
    %700 = vmatpush1.xpose.msra.mxu0 0.0
    %701 = vmatprep.subr.mxu0 0.0
    %702 = vmatpush1.xpose.msra.mxu0 0.0
    %703 = vmatprep.subr.mxu0 0.0
    %704 = vmatpush1.xpose.msra.mxu0 0.0
    %705 = vmatprep.subr.mxu0 0.0
    %706 = vmatpush1.xpose.msra.mxu0 0.0
    %707 = vmatprep.subr.mxu0 0.0
    %708 = vmatpush1.xpose.msra.mxu0 0.0
    %709 = vmatprep.subr.mxu0 0.0
    %710 = vmatpush1.xpose.msra.mxu0 0.0
    %711 = vmatprep.subr.mxu0 0.0
    %712 = vmatpush1.xpose.msra.mxu0 0.0
    %713 = vmatprep.subr.mxu0 0.0
    %714 = vmatpush1.xpose.msra.mxu0 0.0
    %715 = vmatprep.subr.mxu0 0.0
    %716 = vmatpush1.xpose.msra.mxu0 0.0
    %717 = vmatprep.subr.mxu0 0.0
    %718 = vmatpush1.xpose.msra.mxu0 0.0
    %719 = vmatprep.subr.mxu0 0.0
    %720 = vmatpush1.xpose.msra.mxu0 0.0
    %721 = vmatprep.subr.mxu0 0.0
    %722 = vmatpush1.xpose.msra.mxu0 0.0
    %723 = vmatprep.mubr.f32.mxu0 0.0
    %724 = vmatmul.mubr.f32.gmra.mrb[0].mxu0 %v655
    %v725 = vpop.f32.mrb[0].mxu0
    %v726 = vadd.f32 0.0, %v725
    %v727 = vpop.f32.mrb[0].mxu0
    %728 = vdwg.mxu0
    %729 = vrot.lane.b32.xlu0 %v574, 96
    %v730 = vpop.permute.xlu0 %729
    %v731 = vsel %vm329, %v574, 0
    %v733 = vsel %vm329, %v730, 0
    %735 = vmatprep.subr.mxu0 0.0
    %736 = vmatpush1.xpose.msra.mxu0 %v733
    %737 = vmatprep.subr.mxu0 0.0
    %738 = vmatpush1.xpose.msra.mxu0 0.0
    %739 = vmatprep.subr.mxu0 0.0
    %740 = vmatpush1.xpose.msra.mxu0 0.0
    %741 = vmatprep.subr.mxu0 0.0
    %742 = vmatpush1.xpose.msra.mxu0 0.0
    %743 = vmatprep.subr.mxu0 0.0
    %744 = vmatpush1.xpose.msra.mxu0 0.0
    %745 = vmatprep.subr.mxu0 0.0
    %746 = vmatpush1.xpose.msra.mxu0 0.0
    %747 = vmatprep.subr.mxu0 0.0
    %748 = vmatpush1.xpose.msra.mxu0 0.0
    %749 = vmatprep.subr.mxu0 0.0
    %750 = vmatpush1.xpose.msra.mxu0 0.0
    %751 = vmatprep.subr.mxu0 0.0
    %752 = vmatpush1.xpose.msra.mxu0 0.0
    %753 = vmatprep.subr.mxu0 0.0
    %754 = vmatpush1.xpose.msra.mxu0 0.0
    %755 = vmatprep.subr.mxu0 0.0
    %756 = vmatpush1.xpose.msra.mxu0 0.0
    %757 = vmatprep.subr.mxu0 0.0
    %758 = vmatpush1.xpose.msra.mxu0 0.0
    %759 = vmatprep.subr.mxu0 0.0
    %760 = vmatpush1.xpose.msra.mxu0 0.0
    %761 = vmatprep.subr.mxu0 0.0
    %762 = vmatpush1.xpose.msra.mxu0 0.0
    %763 = vmatprep.subr.mxu0 0.0
    %764 = vmatpush1.xpose.msra.mxu0 0.0
    %765 = vmatprep.subr.mxu0 0.0
    %766 = vmatpush1.xpose.msra.mxu0 0.0
    %767 = vmatprep.subr.mxu0 0.0
    %768 = vmatpush1.xpose.msra.mxu0 0.0
    %769 = vmatprep.subr.mxu0 0.0
    %770 = vmatpush1.xpose.msra.mxu0 0.0
    %771 = vmatprep.subr.mxu0 0.0
    %772 = vmatpush1.xpose.msra.mxu0 0.0
    %773 = vmatprep.subr.mxu0 0.0
    %774 = vmatpush1.xpose.msra.mxu0 0.0
    %775 = vmatprep.subr.mxu0 0.0
    %776 = vmatpush1.xpose.msra.mxu0 0.0
    %777 = vmatprep.subr.mxu0 0.0
    %778 = vmatpush1.xpose.msra.mxu0 0.0
    %779 = vmatprep.subr.mxu0 0.0
    %780 = vmatpush1.xpose.msra.mxu0 0.0
    %781 = vmatprep.subr.mxu0 0.0
    %782 = vmatpush1.xpose.msra.mxu0 0.0
    %783 = vmatprep.subr.mxu0 0.0
    %784 = vmatpush1.xpose.msra.mxu0 0.0
    %785 = vmatprep.subr.mxu0 0.0
    %786 = vmatpush1.xpose.msra.mxu0 0.0
    %787 = vmatprep.subr.mxu0 0.0
    %788 = vmatpush1.xpose.msra.mxu0 0.0
    %789 = vmatprep.subr.mxu0 0.0
    %790 = vmatpush1.xpose.msra.mxu0 0.0
    %791 = vmatprep.subr.mxu0 0.0
    %792 = vmatpush1.xpose.msra.mxu0 0.0
    %793 = vmatprep.subr.mxu0 0.0
    %794 = vmatpush1.xpose.msra.mxu0 0.0
    %795 = vmatprep.subr.mxu0 0.0
    %796 = vmatpush1.xpose.msra.mxu0 0.0
    %797 = vmatprep.subr.mxu0 0.0
    %798 = vmatpush1.xpose.msra.mxu0 0.0
    %799 = vmatprep.mubr.f32.mxu0 0.0
    %800 = vmatmul.mubr.f32.gmra.mrb[0].mxu0 %v731
    %v801 = vpop.f32.mrb[0].mxu0
    %v802 = vadd.f32 0.0, %v801
    %v803 = vpop.f32.mrb[0].mxu0
    %804 = vdwg.mxu0
    %805 = vrot.lane.b32.xlu0 %v576, 96
    %v806 = vpop.permute.xlu0 %805
    %v807 = vsel %vm329, %v576, 0
    %v809 = vsel %vm329, %v806, 0
    %811 = vmatprep.subr.mxu0 0.0
    %812 = vmatpush1.xpose.msra.mxu0 %v809
    %813 = vmatprep.subr.mxu0 0.0
    %814 = vmatpush1.xpose.msra.mxu0 0.0
    %815 = vmatprep.subr.mxu0 0.0
    %816 = vmatpush1.xpose.msra.mxu0 0.0
    %817 = vmatprep.subr.mxu0 0.0
    %818 = vmatpush1.xpose.msra.mxu0 0.0
    %819 = vmatprep.subr.mxu0 0.0
    %820 = vmatpush1.xpose.msra.mxu0 0.0
    %821 = vmatprep.subr.mxu0 0.0
    %822 = vmatpush1.xpose.msra.mxu0 0.0
    %823 = vmatprep.subr.mxu0 0.0
    %824 = vmatpush1.xpose.msra.mxu0 0.0
    %825 = vmatprep.subr.mxu0 0.0
    %826 = vmatpush1.xpose.msra.mxu0 0.0
    %827 = vmatprep.subr.mxu0 0.0
    %828 = vmatpush1.xpose.msra.mxu0 0.0
    %829 = vmatprep.subr.mxu0 0.0
    %830 = vmatpush1.xpose.msra.mxu0 0.0
    %831 = vmatprep.subr.mxu0 0.0
    %832 = vmatpush1.xpose.msra.mxu0 0.0
    %833 = vmatprep.subr.mxu0 0.0
    %834 = vmatpush1.xpose.msra.mxu0 0.0
    %835 = vmatprep.subr.mxu0 0.0
    %836 = vmatpush1.xpose.msra.mxu0 0.0
    %837 = vmatprep.subr.mxu0 0.0
    %838 = vmatpush1.xpose.msra.mxu0 0.0
    %839 = vmatprep.subr.mxu0 0.0
    %840 = vmatpush1.xpose.msra.mxu0 0.0
    %841 = vmatprep.subr.mxu0 0.0
    %842 = vmatpush1.xpose.msra.mxu0 0.0
    %843 = vmatprep.subr.mxu0 0.0
    %844 = vmatpush1.xpose.msra.mxu0 0.0
    %845 = vmatprep.subr.mxu0 0.0
    %846 = vmatpush1.xpose.msra.mxu0 0.0
    %847 = vmatprep.subr.mxu0 0.0
    %848 = vmatpush1.xpose.msra.mxu0 0.0
    %849 = vmatprep.subr.mxu0 0.0
    %850 = vmatpush1.xpose.msra.mxu0 0.0
    %851 = vmatprep.subr.mxu0 0.0
    %852 = vmatpush1.xpose.msra.mxu0 0.0
    %853 = vmatprep.subr.mxu0 0.0
    %854 = vmatpush1.xpose.msra.mxu0 0.0
    %855 = vmatprep.subr.mxu0 0.0
    %856 = vmatpush1.xpose.msra.mxu0 0.0
    %857 = vmatprep.subr.mxu0 0.0
    %858 = vmatpush1.xpose.msra.mxu0 0.0
    %859 = vmatprep.subr.mxu0 0.0
    %860 = vmatpush1.xpose.msra.mxu0 0.0
    %861 = vmatprep.subr.mxu0 0.0
    %862 = vmatpush1.xpose.msra.mxu0 0.0
    %863 = vmatprep.subr.mxu0 0.0
    %864 = vmatpush1.xpose.msra.mxu0 0.0
    %865 = vmatprep.subr.mxu0 0.0
    %866 = vmatpush1.xpose.msra.mxu0 0.0
    %867 = vmatprep.subr.mxu0 0.0
    %868 = vmatpush1.xpose.msra.mxu0 0.0
    %869 = vmatprep.subr.mxu0 0.0
    %870 = vmatpush1.xpose.msra.mxu0 0.0
    %871 = vmatprep.subr.mxu0 0.0
    %872 = vmatpush1.xpose.msra.mxu0 0.0
    %873 = vmatprep.subr.mxu0 0.0
    %874 = vmatpush1.xpose.msra.mxu0 0.0
    %875 = vmatprep.mubr.f32.mxu0 0.0
    %876 = vmatmul.mubr.f32.gmra.mrb[0].mxu0 %v807
    %v877 = vpop.f32.mrb[0].mxu0
    %v878 = vadd.f32 0.0, %v877
    %v879 = vpop.f32.mrb[0].mxu0
    %880 = vdwg.mxu0
    %v881 = vmul.f32 %v650, 0.35355338
    %v882 = vmul.f32 %v726, 0.35355338
    %v883 = vmul.f32 %v802, 0.35355338
    %v884 = vmul.f32 %v878, 0.35355338
    %v885 = vadd.f32 %v881, %v400
    %v886 = vadd.f32 %v882, %v400
    %v887 = vadd.f32 %v883, %v400
    %v888 = vadd.f32 %v884, %v400
    %v889 = vsel %vm329, %v885, -inf
    %890 = vmax.xlane.f32.xlu0 %v889
    %v891 = vpop.xlane.xlu0 %890
    %v892 = vsel %vm329, %v886, -inf
    %893 = vmax.xlane.f32.xlu0 %v892
    %v894 = vpop.xlane.xlu0 %893
    %v895 = vsel %vm329, %v887, -inf
    %896 = vmax.xlane.f32.xlu0 %v895
    %v897 = vpop.xlane.xlu0 %896
    %v898 = vsel %vm329, %v888, -inf
    %899 = vmax.xlane.f32.xlu0 %v898
    %v900 = vpop.xlane.xlu0 %899
    %v901 = vsub.f32 %v885, %v891
    %v902 = vsub.f32 %v886, %v894
    %v903 = vsub.f32 %v887, %v897
    %v904 = vsub.f32 %v888, %v900
    %v905 = vmul.f32 %v901, 1.442695
    %v906 = vpow.pop %v905
    %v907 = vmul.f32 %v902, 1.442695
    %v908 = vpow.pop %v907
    %v909 = vmul.f32 %v903, 1.442695
    %v910 = vpow.pop %v909
    %v911 = vmul.f32 %v904, 1.442695
    %v912 = vpow.pop %v911
    %v913 = vsel %vm329, %v906, 0.0
    %914 = vadd.xlane.f32.xlu0 %v913
    %v915 = vpop.xlane.xlu0 %914
    %v916 = vsel %vm329, %v908, 0.0
    %917 = vadd.xlane.f32.xlu0 %v916
    %v918 = vpop.xlane.xlu0 %917
    %v919 = vsel %vm329, %v910, 0.0
    %920 = vadd.xlane.f32.xlu0 %v919
    %v921 = vpop.xlane.xlu0 %920
    %v922 = vsel %vm329, %v912, 0.0
    %923 = vadd.xlane.f32.xlu0 %v922
    %v924 = vpop.xlane.xlu0 %923
    %v925 = vrcp.pop %v915
    %v926 = vmul.f32 %v906, %v925
    %v927 = vrcp.pop %v918
    %v928 = vmul.f32 %v908, %v927
    %v929 = vrcp.pop %v921
    %v930 = vmul.f32 %v910, %v929
    %v931 = vrcp.pop %v924
    %v932 = vmul.f32 %v912, %v931
    %933 = vrot.lane.b32.xlu0 %v562, 64
    %v934 = vpop.permute.xlu0 %933
    %v937 = vsel %vm329, %v926, 0
    %939 = vmatprep.subr.mxu0 0.0
    %940 = vmatpush1.msra.mxu0 %v934
    %941 = vmatprep.subr.mxu0 0.0
    %942 = vmatpush1.msra.mxu0 0.0
    %943 = vmatprep.subr.mxu0 0.0
    %944 = vmatpush1.msra.mxu0 0.0
    %945 = vmatprep.subr.mxu0 0.0
    %946 = vmatpush1.msra.mxu0 0.0
    %947 = vmatprep.subr.mxu0 0.0
    %948 = vmatpush1.msra.mxu0 0.0
    %949 = vmatprep.subr.mxu0 0.0
    %950 = vmatpush1.msra.mxu0 0.0
    %951 = vmatprep.subr.mxu0 0.0
    %952 = vmatpush1.msra.mxu0 0.0
    %953 = vmatprep.subr.mxu0 0.0
    %954 = vmatpush1.msra.mxu0 0.0
    %955 = vmatprep.subr.mxu0 0.0
    %956 = vmatpush1.msra.mxu0 0.0
    %957 = vmatprep.subr.mxu0 0.0
    %958 = vmatpush1.msra.mxu0 0.0
    %959 = vmatprep.subr.mxu0 0.0
    %960 = vmatpush1.msra.mxu0 0.0
    %961 = vmatprep.subr.mxu0 0.0
    %962 = vmatpush1.msra.mxu0 0.0
    %963 = vmatprep.subr.mxu0 0.0
    %964 = vmatpush1.msra.mxu0 0.0
    %965 = vmatprep.subr.mxu0 0.0
    %966 = vmatpush1.msra.mxu0 0.0
    %967 = vmatprep.subr.mxu0 0.0
    %968 = vmatpush1.msra.mxu0 0.0
    %969 = vmatprep.subr.mxu0 0.0
    %970 = vmatpush1.msra.mxu0 0.0
    %971 = vmatprep.subr.mxu0 0.0
    %972 = vmatpush1.msra.mxu0 0.0
    %973 = vmatprep.subr.mxu0 0.0
    %974 = vmatpush1.msra.mxu0 0.0
    %975 = vmatprep.subr.mxu0 0.0
    %976 = vmatpush1.msra.mxu0 0.0
    %977 = vmatprep.subr.mxu0 0.0
    %978 = vmatpush1.msra.mxu0 0.0
    %979 = vmatprep.subr.mxu0 0.0
    %980 = vmatpush1.msra.mxu0 0.0
    %981 = vmatprep.subr.mxu0 0.0
    %982 = vmatpush1.msra.mxu0 0.0
    %983 = vmatprep.subr.mxu0 0.0
    %984 = vmatpush1.msra.mxu0 0.0
    %985 = vmatprep.subr.mxu0 0.0
    %986 = vmatpush1.msra.mxu0 0.0
    %987 = vmatprep.subr.mxu0 0.0
    %988 = vmatpush1.msra.mxu0 0.0
    %989 = vmatprep.subr.mxu0 0.0
    %990 = vmatpush1.msra.mxu0 0.0
    %991 = vmatprep.subr.mxu0 0.0
    %992 = vmatpush1.msra.mxu0 0.0
    %993 = vmatprep.subr.mxu0 0.0
    %994 = vmatpush1.msra.mxu0 0.0
    %995 = vmatprep.subr.mxu0 0.0
    %996 = vmatpush1.msra.mxu0 0.0
    %997 = vmatprep.subr.mxu0 0.0
    %998 = vmatpush1.msra.mxu0 0.0
    %999 = vmatprep.subr.mxu0 0.0
    %1000 = vmatpush1.msra.mxu0 0.0
    %1001 = vmatprep.subr.mxu0 0.0
    %1002 = vmatpush1.msra.mxu0 0.0
    %1003 = vmatprep.mubr.f32.mxu0 0.0
    %1004 = vmatmul.mubr.f32.gmra.mrb[0].mxu0 %v937
    %v1005 = vpop.f32.mrb[0].mxu0
    %v1006 = vadd.f32 0.0, %v1005
    %v1007 = vpop.f32.mrb[0].mxu0
    %1008 = vdwg.mxu0
    %1009 = vrot.lane.b32.xlu0 %v572, 64
    %v1010 = vpop.permute.xlu0 %1009
    %v1013 = vsel %vm329, %v928, 0
    %1015 = vmatprep.subr.mxu0 0.0
    %1016 = vmatpush1.msra.mxu0 %v1010
    %1017 = vmatprep.subr.mxu0 0.0
    %1018 = vmatpush1.msra.mxu0 0.0
    %1019 = vmatprep.subr.mxu0 0.0
    %1020 = vmatpush1.msra.mxu0 0.0
    %1021 = vmatprep.subr.mxu0 0.0
    %1022 = vmatpush1.msra.mxu0 0.0
    %1023 = vmatprep.subr.mxu0 0.0
    %1024 = vmatpush1.msra.mxu0 0.0
    %1025 = vmatprep.subr.mxu0 0.0
    %1026 = vmatpush1.msra.mxu0 0.0
    %1027 = vmatprep.subr.mxu0 0.0
    %1028 = vmatpush1.msra.mxu0 0.0
    %1029 = vmatprep.subr.mxu0 0.0
    %1030 = vmatpush1.msra.mxu0 0.0
    %1031 = vmatprep.subr.mxu0 0.0
    %1032 = vmatpush1.msra.mxu0 0.0
    %1033 = vmatprep.subr.mxu0 0.0
    %1034 = vmatpush1.msra.mxu0 0.0
    %1035 = vmatprep.subr.mxu0 0.0
    %1036 = vmatpush1.msra.mxu0 0.0
    %1037 = vmatprep.subr.mxu0 0.0
    %1038 = vmatpush1.msra.mxu0 0.0
    %1039 = vmatprep.subr.mxu0 0.0
    %1040 = vmatpush1.msra.mxu0 0.0
    %1041 = vmatprep.subr.mxu0 0.0
    %1042 = vmatpush1.msra.mxu0 0.0
    %1043 = vmatprep.subr.mxu0 0.0
    %1044 = vmatpush1.msra.mxu0 0.0
    %1045 = vmatprep.subr.mxu0 0.0
    %1046 = vmatpush1.msra.mxu0 0.0
    %1047 = vmatprep.subr.mxu0 0.0
    %1048 = vmatpush1.msra.mxu0 0.0
    %1049 = vmatprep.subr.mxu0 0.0
    %1050 = vmatpush1.msra.mxu0 0.0
    %1051 = vmatprep.subr.mxu0 0.0
    %1052 = vmatpush1.msra.mxu0 0.0
    %1053 = vmatprep.subr.mxu0 0.0
    %1054 = vmatpush1.msra.mxu0 0.0
    %1055 = vmatprep.subr.mxu0 0.0
    %1056 = vmatpush1.msra.mxu0 0.0
    %1057 = vmatprep.subr.mxu0 0.0
    %1058 = vmatpush1.msra.mxu0 0.0
    %1059 = vmatprep.subr.mxu0 0.0
    %1060 = vmatpush1.msra.mxu0 0.0
    %1061 = vmatprep.subr.mxu0 0.0
    %1062 = vmatpush1.msra.mxu0 0.0
    %1063 = vmatprep.subr.mxu0 0.0
    %1064 = vmatpush1.msra.mxu0 0.0
    %1065 = vmatprep.subr.mxu0 0.0
    %1066 = vmatpush1.msra.mxu0 0.0
    %1067 = vmatprep.subr.mxu0 0.0
    %1068 = vmatpush1.msra.mxu0 0.0
    %1069 = vmatprep.subr.mxu0 0.0
    %1070 = vmatpush1.msra.mxu0 0.0
    %1071 = vmatprep.subr.mxu0 0.0
    %1072 = vmatpush1.msra.mxu0 0.0
    %1073 = vmatprep.subr.mxu0 0.0
    %1074 = vmatpush1.msra.mxu0 0.0
    %1075 = vmatprep.subr.mxu0 0.0
    %1076 = vmatpush1.msra.mxu0 0.0
    %1077 = vmatprep.subr.mxu0 0.0
    %1078 = vmatpush1.msra.mxu0 0.0
    %1079 = vmatprep.mubr.f32.mxu0 0.0
    %1080 = vmatmul.mubr.f32.gmra.mrb[0].mxu0 %v1013
    %v1081 = vpop.f32.mrb[0].mxu0
    %v1082 = vadd.f32 0.0, %v1081
    %v1083 = vpop.f32.mrb[0].mxu0
    %1084 = vdwg.mxu0
    %1085 = vrot.lane.b32.xlu0 %v574, 64
    %v1086 = vpop.permute.xlu0 %1085
    %v1089 = vsel %vm329, %v930, 0
    %1091 = vmatprep.subr.mxu0 0.0
    %1092 = vmatpush1.msra.mxu0 %v1086
    %1093 = vmatprep.subr.mxu0 0.0
    %1094 = vmatpush1.msra.mxu0 0.0
    %1095 = vmatprep.subr.mxu0 0.0
    %1096 = vmatpush1.msra.mxu0 0.0
    %1097 = vmatprep.subr.mxu0 0.0
    %1098 = vmatpush1.msra.mxu0 0.0
    %1099 = vmatprep.subr.mxu0 0.0
    %1100 = vmatpush1.msra.mxu0 0.0
    %1101 = vmatprep.subr.mxu0 0.0
    %1102 = vmatpush1.msra.mxu0 0.0
    %1103 = vmatprep.subr.mxu0 0.0
    %1104 = vmatpush1.msra.mxu0 0.0
    %1105 = vmatprep.subr.mxu0 0.0
    %1106 = vmatpush1.msra.mxu0 0.0
    %1107 = vmatprep.subr.mxu0 0.0
    %1108 = vmatpush1.msra.mxu0 0.0
    %1109 = vmatprep.subr.mxu0 0.0
    %1110 = vmatpush1.msra.mxu0 0.0
    %1111 = vmatprep.subr.mxu0 0.0
    %1112 = vmatpush1.msra.mxu0 0.0
    %1113 = vmatprep.subr.mxu0 0.0
    %1114 = vmatpush1.msra.mxu0 0.0
    %1115 = vmatprep.subr.mxu0 0.0
    %1116 = vmatpush1.msra.mxu0 0.0
    %1117 = vmatprep.subr.mxu0 0.0
    %1118 = vmatpush1.msra.mxu0 0.0
    %1119 = vmatprep.subr.mxu0 0.0
    %1120 = vmatpush1.msra.mxu0 0.0
    %1121 = vmatprep.subr.mxu0 0.0
    %1122 = vmatpush1.msra.mxu0 0.0
    %1123 = vmatprep.subr.mxu0 0.0
    %1124 = vmatpush1.msra.mxu0 0.0
    %1125 = vmatprep.subr.mxu0 0.0
    %1126 = vmatpush1.msra.mxu0 0.0
    %1127 = vmatprep.subr.mxu0 0.0
    %1128 = vmatpush1.msra.mxu0 0.0
    %1129 = vmatprep.subr.mxu0 0.0
    %1130 = vmatpush1.msra.mxu0 0.0
    %1131 = vmatprep.subr.mxu0 0.0
    %1132 = vmatpush1.msra.mxu0 0.0
    %1133 = vmatprep.subr.mxu0 0.0
    %1134 = vmatpush1.msra.mxu0 0.0
    %1135 = vmatprep.subr.mxu0 0.0
    %1136 = vmatpush1.msra.mxu0 0.0
    %1137 = vmatprep.subr.mxu0 0.0
    %1138 = vmatpush1.msra.mxu0 0.0
    %1139 = vmatprep.subr.mxu0 0.0
    %1140 = vmatpush1.msra.mxu0 0.0
    %1141 = vmatprep.subr.mxu0 0.0
    %1142 = vmatpush1.msra.mxu0 0.0
    %1143 = vmatprep.subr.mxu0 0.0
    %1144 = vmatpush1.msra.mxu0 0.0
    %1145 = vmatprep.subr.mxu0 0.0
    %1146 = vmatpush1.msra.mxu0 0.0
    %1147 = vmatprep.subr.mxu0 0.0
    %1148 = vmatpush1.msra.mxu0 0.0
    %1149 = vmatprep.subr.mxu0 0.0
    %1150 = vmatpush1.msra.mxu0 0.0
    %1151 = vmatprep.subr.mxu0 0.0
    %1152 = vmatpush1.msra.mxu0 0.0
    %1153 = vmatprep.subr.mxu0 0.0
    %1154 = vmatpush1.msra.mxu0 0.0
    %1155 = vmatprep.mubr.f32.mxu0 0.0
    %1156 = vmatmul.mubr.f32.gmra.mrb[0].mxu0 %v1089
    %v1157 = vpop.f32.mrb[0].mxu0
    %v1158 = vadd.f32 0.0, %v1157
    %v1159 = vpop.f32.mrb[0].mxu0
    %1160 = vdwg.mxu0
    %1161 = vrot.lane.b32.xlu0 %v576, 64
    %v1162 = vpop.permute.xlu0 %1161
    %v1165 = vsel %vm329, %v932, 0
    %1167 = vmatprep.subr.mxu0 0.0
    %1168 = vmatpush1.msra.mxu0 %v1162
    %1169 = vmatprep.subr.mxu0 0.0
    %1170 = vmatpush1.msra.mxu0 0.0
    %1171 = vmatprep.subr.mxu0 0.0
    %1172 = vmatpush1.msra.mxu0 0.0
    %1173 = vmatprep.subr.mxu0 0.0
    %1174 = vmatpush1.msra.mxu0 0.0
    %1175 = vmatprep.subr.mxu0 0.0
    %1176 = vmatpush1.msra.mxu0 0.0
    %1177 = vmatprep.subr.mxu0 0.0
    %1178 = vmatpush1.msra.mxu0 0.0
    %1179 = vmatprep.subr.mxu0 0.0
    %1180 = vmatpush1.msra.mxu0 0.0
    %1181 = vmatprep.subr.mxu0 0.0
    %1182 = vmatpush1.msra.mxu0 0.0
    %1183 = vmatprep.subr.mxu0 0.0
    %1184 = vmatpush1.msra.mxu0 0.0
    %1185 = vmatprep.subr.mxu0 0.0
    %1186 = vmatpush1.msra.mxu0 0.0
    %1187 = vmatprep.subr.mxu0 0.0
    %1188 = vmatpush1.msra.mxu0 0.0
    %1189 = vmatprep.subr.mxu0 0.0
    %1190 = vmatpush1.msra.mxu0 0.0
    %1191 = vmatprep.subr.mxu0 0.0
    %1192 = vmatpush1.msra.mxu0 0.0
    %1193 = vmatprep.subr.mxu0 0.0
    %1194 = vmatpush1.msra.mxu0 0.0
    %1195 = vmatprep.subr.mxu0 0.0
    %1196 = vmatpush1.msra.mxu0 0.0
    %1197 = vmatprep.subr.mxu0 0.0
    %1198 = vmatpush1.msra.mxu0 0.0
    %1199 = vmatprep.subr.mxu0 0.0
    %1200 = vmatpush1.msra.mxu0 0.0
    %1201 = vmatprep.subr.mxu0 0.0
    %1202 = vmatpush1.msra.mxu0 0.0
    %1203 = vmatprep.subr.mxu0 0.0
    %1204 = vmatpush1.msra.mxu0 0.0
    %1205 = vmatprep.subr.mxu0 0.0
    %1206 = vmatpush1.msra.mxu0 0.0
    %1207 = vmatprep.subr.mxu0 0.0
    %1208 = vmatpush1.msra.mxu0 0.0
    %1209 = vmatprep.subr.mxu0 0.0
    %1210 = vmatpush1.msra.mxu0 0.0
    %1211 = vmatprep.subr.mxu0 0.0
    %1212 = vmatpush1.msra.mxu0 0.0
    %1213 = vmatprep.subr.mxu0 0.0
    %1214 = vmatpush1.msra.mxu0 0.0
    %1215 = vmatprep.subr.mxu0 0.0
    %1216 = vmatpush1.msra.mxu0 0.0
    %1217 = vmatprep.subr.mxu0 0.0
    %1218 = vmatpush1.msra.mxu0 0.0
    %1219 = vmatprep.subr.mxu0 0.0
    %1220 = vmatpush1.msra.mxu0 0.0
    %1221 = vmatprep.subr.mxu0 0.0
    %1222 = vmatpush1.msra.mxu0 0.0
    %1223 = vmatprep.subr.mxu0 0.0
    %1224 = vmatpush1.msra.mxu0 0.0
    %1225 = vmatprep.subr.mxu0 0.0
    %1226 = vmatpush1.msra.mxu0 0.0
    %1227 = vmatprep.subr.mxu0 0.0
    %1228 = vmatpush1.msra.mxu0 0.0
    %1229 = vmatprep.subr.mxu0 0.0
    %1230 = vmatpush1.msra.mxu0 0.0
    %1231 = vmatprep.mubr.f32.mxu0 0.0
    %1232 = vmatmul.mubr.f32.gmra.mrb[0].mxu0 %v1165
    %v1233 = vpop.f32.mrb[0].mxu0
    %v1234 = vadd.f32 0.0, %v1233
    %v1235 = vpop.f32.mrb[0].mxu0
    %1236 = vdwg.mxu0
    %1238 = vrot.lane.b32.xlu0 %v1082, 8
    %v1239 = vpop.permute.xlu0 %1238
    %1242 = vrot.lane.b32.xlu0 %v1158, 16
    %v1243 = vpop.permute.xlu0 %1242
    %1246 = vrot.lane.b32.xlu0 %v1234, 24
    %v1247 = vpop.permute.xlu0 %1246
    %v1249 = vsel %vm329, %v1006, %v1239
    %vm1250 = vcmask 130048
    %v1251 = vsel %vm1250, %v1249, %v1243
    %vm1252 = vcmask 195584
    %v1253 = vsel %vm1252, %v1251, %v1247
    %1255 = vrot.lane.b32.xlu0 %v567, 120
    %v1256 = vpop.permute.xlu0 %1255
    %1257 = vrot.lane.b32.xlu0 %v567, 112
    %v1258 = vpop.permute.xlu0 %1257
    %1259 = vrot.lane.b32.xlu0 %v567, 104
    %v1260 = vpop.permute.xlu0 %1259
    %1261 = vrot.lane.b32.xlu0 %v567, 96
    %v1262 = vpop.permute.xlu0 %1261
    %v1263 = vsel %vm329, %v567, 0
    %v1265 = vsel %vm329, %v1262, 0
    %1267 = vmatprep.subr.mxu0 0.0
    %1268 = vmatpush1.xpose.msra.mxu0 %v1265
    %1269 = vmatprep.subr.mxu0 0.0
    %1270 = vmatpush1.xpose.msra.mxu0 0.0
    %1271 = vmatprep.subr.mxu0 0.0
    %1272 = vmatpush1.xpose.msra.mxu0 0.0
    %1273 = vmatprep.subr.mxu0 0.0
    %1274 = vmatpush1.xpose.msra.mxu0 0.0
    %1275 = vmatprep.subr.mxu0 0.0
    %1276 = vmatpush1.xpose.msra.mxu0 0.0
    %1277 = vmatprep.subr.mxu0 0.0
    %1278 = vmatpush1.xpose.msra.mxu0 0.0
    %1279 = vmatprep.subr.mxu0 0.0
    %1280 = vmatpush1.xpose.msra.mxu0 0.0
    %1281 = vmatprep.subr.mxu0 0.0
    %1282 = vmatpush1.xpose.msra.mxu0 0.0
    %1283 = vmatprep.subr.mxu0 0.0
    %1284 = vmatpush1.xpose.msra.mxu0 0.0
    %1285 = vmatprep.subr.mxu0 0.0
    %1286 = vmatpush1.xpose.msra.mxu0 0.0
    %1287 = vmatprep.subr.mxu0 0.0
    %1288 = vmatpush1.xpose.msra.mxu0 0.0
    %1289 = vmatprep.subr.mxu0 0.0
    %1290 = vmatpush1.xpose.msra.mxu0 0.0
    %1291 = vmatprep.subr.mxu0 0.0
    %1292 = vmatpush1.xpose.msra.mxu0 0.0
    %1293 = vmatprep.subr.mxu0 0.0
    %1294 = vmatpush1.xpose.msra.mxu0 0.0
    %1295 = vmatprep.subr.mxu0 0.0
    %1296 = vmatpush1.xpose.msra.mxu0 0.0
    %1297 = vmatprep.subr.mxu0 0.0
    %1298 = vmatpush1.xpose.msra.mxu0 0.0
    %1299 = vmatprep.subr.mxu0 0.0
    %1300 = vmatpush1.xpose.msra.mxu0 0.0
    %1301 = vmatprep.subr.mxu0 0.0
    %1302 = vmatpush1.xpose.msra.mxu0 0.0
    %1303 = vmatprep.subr.mxu0 0.0
    %1304 = vmatpush1.xpose.msra.mxu0 0.0
    %1305 = vmatprep.subr.mxu0 0.0
    %1306 = vmatpush1.xpose.msra.mxu0 0.0
    %1307 = vmatprep.subr.mxu0 0.0
    %1308 = vmatpush1.xpose.msra.mxu0 0.0
    %1309 = vmatprep.subr.mxu0 0.0
    %1310 = vmatpush1.xpose.msra.mxu0 0.0
    %1311 = vmatprep.subr.mxu0 0.0
    %1312 = vmatpush1.xpose.msra.mxu0 0.0
    %1313 = vmatprep.subr.mxu0 0.0
    %1314 = vmatpush1.xpose.msra.mxu0 0.0
    %1315 = vmatprep.subr.mxu0 0.0
    %1316 = vmatpush1.xpose.msra.mxu0 0.0
    %1317 = vmatprep.subr.mxu0 0.0
    %1318 = vmatpush1.xpose.msra.mxu0 0.0
    %1319 = vmatprep.subr.mxu0 0.0
    %1320 = vmatpush1.xpose.msra.mxu0 0.0
    %1321 = vmatprep.subr.mxu0 0.0
    %1322 = vmatpush1.xpose.msra.mxu0 0.0
    %1323 = vmatprep.subr.mxu0 0.0
    %1324 = vmatpush1.xpose.msra.mxu0 0.0
    %1325 = vmatprep.subr.mxu0 0.0
    %1326 = vmatpush1.xpose.msra.mxu0 0.0
    %1327 = vmatprep.subr.mxu0 0.0
    %1328 = vmatpush1.xpose.msra.mxu0 0.0
    %1329 = vmatprep.subr.mxu0 0.0
    %1330 = vmatpush1.xpose.msra.mxu0 0.0
    %1331 = vmatprep.mubr.f32.mxu0 0.0
    %1332 = vmatmul.mubr.f32.gmra.mrb[0].mxu0 %v1263
    %v1333 = vpop.f32.mrb[0].mxu0
    %v1334 = vadd.f32 0.0, %v1333
    %v1335 = vpop.f32.mrb[0].mxu0
    %1336 = vdwg.mxu0
    %1337 = vrot.lane.b32.xlu0 %v1256, 96
    %v1338 = vpop.permute.xlu0 %1337
    %v1339 = vsel %vm329, %v1256, 0
    %v1341 = vsel %vm329, %v1338, 0
    %1343 = vmatprep.subr.mxu0 0.0
    %1344 = vmatpush1.xpose.msra.mxu0 %v1341
    %1345 = vmatprep.subr.mxu0 0.0
    %1346 = vmatpush1.xpose.msra.mxu0 0.0
    %1347 = vmatprep.subr.mxu0 0.0
    %1348 = vmatpush1.xpose.msra.mxu0 0.0
    %1349 = vmatprep.subr.mxu0 0.0
    %1350 = vmatpush1.xpose.msra.mxu0 0.0
    %1351 = vmatprep.subr.mxu0 0.0
    %1352 = vmatpush1.xpose.msra.mxu0 0.0
    %1353 = vmatprep.subr.mxu0 0.0
    %1354 = vmatpush1.xpose.msra.mxu0 0.0
    %1355 = vmatprep.subr.mxu0 0.0
    %1356 = vmatpush1.xpose.msra.mxu0 0.0
    %1357 = vmatprep.subr.mxu0 0.0
    %1358 = vmatpush1.xpose.msra.mxu0 0.0
    %1359 = vmatprep.subr.mxu0 0.0
    %1360 = vmatpush1.xpose.msra.mxu0 0.0
    %1361 = vmatprep.subr.mxu0 0.0
    %1362 = vmatpush1.xpose.msra.mxu0 0.0
    %1363 = vmatprep.subr.mxu0 0.0
    %1364 = vmatpush1.xpose.msra.mxu0 0.0
    %1365 = vmatprep.subr.mxu0 0.0
    %1366 = vmatpush1.xpose.msra.mxu0 0.0
    %1367 = vmatprep.subr.mxu0 0.0
    %1368 = vmatpush1.xpose.msra.mxu0 0.0
    %1369 = vmatprep.subr.mxu0 0.0
    %1370 = vmatpush1.xpose.msra.mxu0 0.0
    %1371 = vmatprep.subr.mxu0 0.0
    %1372 = vmatpush1.xpose.msra.mxu0 0.0
    %1373 = vmatprep.subr.mxu0 0.0
    %1374 = vmatpush1.xpose.msra.mxu0 0.0
    %1375 = vmatprep.subr.mxu0 0.0
    %1376 = vmatpush1.xpose.msra.mxu0 0.0
    %1377 = vmatprep.subr.mxu0 0.0
    %1378 = vmatpush1.xpose.msra.mxu0 0.0
    %1379 = vmatprep.subr.mxu0 0.0
    %1380 = vmatpush1.xpose.msra.mxu0 0.0
    %1381 = vmatprep.subr.mxu0 0.0
    %1382 = vmatpush1.xpose.msra.mxu0 0.0
    %1383 = vmatprep.subr.mxu0 0.0
    %1384 = vmatpush1.xpose.msra.mxu0 0.0
    %1385 = vmatprep.subr.mxu0 0.0
    %1386 = vmatpush1.xpose.msra.mxu0 0.0
    %1387 = vmatprep.subr.mxu0 0.0
    %1388 = vmatpush1.xpose.msra.mxu0 0.0
    %1389 = vmatprep.subr.mxu0 0.0
    %1390 = vmatpush1.xpose.msra.mxu0 0.0
    %1391 = vmatprep.subr.mxu0 0.0
    %1392 = vmatpush1.xpose.msra.mxu0 0.0
    %1393 = vmatprep.subr.mxu0 0.0
    %1394 = vmatpush1.xpose.msra.mxu0 0.0
    %1395 = vmatprep.subr.mxu0 0.0
    %1396 = vmatpush1.xpose.msra.mxu0 0.0
    %1397 = vmatprep.subr.mxu0 0.0
    %1398 = vmatpush1.xpose.msra.mxu0 0.0
    %1399 = vmatprep.subr.mxu0 0.0
    %1400 = vmatpush1.xpose.msra.mxu0 0.0
    %1401 = vmatprep.subr.mxu0 0.0
    %1402 = vmatpush1.xpose.msra.mxu0 0.0
    %1403 = vmatprep.subr.mxu0 0.0
    %1404 = vmatpush1.xpose.msra.mxu0 0.0
    %1405 = vmatprep.subr.mxu0 0.0
    %1406 = vmatpush1.xpose.msra.mxu0 0.0
    %1407 = vmatprep.mubr.f32.mxu0 0.0
    %1408 = vmatmul.mubr.f32.gmra.mrb[0].mxu0 %v1339
    %v1409 = vpop.f32.mrb[0].mxu0
    %v1410 = vadd.f32 0.0, %v1409
    %v1411 = vpop.f32.mrb[0].mxu0
    %1412 = vdwg.mxu0
    %1413 = vrot.lane.b32.xlu0 %v1258, 96
    %v1414 = vpop.permute.xlu0 %1413
    %v1415 = vsel %vm329, %v1258, 0
    %v1417 = vsel %vm329, %v1414, 0
    %1419 = vmatprep.subr.mxu0 0.0
    %1420 = vmatpush1.xpose.msra.mxu0 %v1417
    %1421 = vmatprep.subr.mxu0 0.0
    %1422 = vmatpush1.xpose.msra.mxu0 0.0
    %1423 = vmatprep.subr.mxu0 0.0
    %1424 = vmatpush1.xpose.msra.mxu0 0.0
    %1425 = vmatprep.subr.mxu0 0.0
    %1426 = vmatpush1.xpose.msra.mxu0 0.0
    %1427 = vmatprep.subr.mxu0 0.0
    %1428 = vmatpush1.xpose.msra.mxu0 0.0
    %1429 = vmatprep.subr.mxu0 0.0
    %1430 = vmatpush1.xpose.msra.mxu0 0.0
    %1431 = vmatprep.subr.mxu0 0.0
    %1432 = vmatpush1.xpose.msra.mxu0 0.0
    %1433 = vmatprep.subr.mxu0 0.0
    %1434 = vmatpush1.xpose.msra.mxu0 0.0
    %1435 = vmatprep.subr.mxu0 0.0
    %1436 = vmatpush1.xpose.msra.mxu0 0.0
    %1437 = vmatprep.subr.mxu0 0.0
    %1438 = vmatpush1.xpose.msra.mxu0 0.0
    %1439 = vmatprep.subr.mxu0 0.0
    %1440 = vmatpush1.xpose.msra.mxu0 0.0
    %1441 = vmatprep.subr.mxu0 0.0
    %1442 = vmatpush1.xpose.msra.mxu0 0.0
    %1443 = vmatprep.subr.mxu0 0.0
    %1444 = vmatpush1.xpose.msra.mxu0 0.0
    %1445 = vmatprep.subr.mxu0 0.0
    %1446 = vmatpush1.xpose.msra.mxu0 0.0
    %1447 = vmatprep.subr.mxu0 0.0
    %1448 = vmatpush1.xpose.msra.mxu0 0.0
    %1449 = vmatprep.subr.mxu0 0.0
    %1450 = vmatpush1.xpose.msra.mxu0 0.0
    %1451 = vmatprep.subr.mxu0 0.0
    %1452 = vmatpush1.xpose.msra.mxu0 0.0
    %1453 = vmatprep.subr.mxu0 0.0
    %1454 = vmatpush1.xpose.msra.mxu0 0.0
    %1455 = vmatprep.subr.mxu0 0.0
    %1456 = vmatpush1.xpose.msra.mxu0 0.0
    %1457 = vmatprep.subr.mxu0 0.0
    %1458 = vmatpush1.xpose.msra.mxu0 0.0
    %1459 = vmatprep.subr.mxu0 0.0
    %1460 = vmatpush1.xpose.msra.mxu0 0.0
    %1461 = vmatprep.subr.mxu0 0.0
    %1462 = vmatpush1.xpose.msra.mxu0 0.0
    %1463 = vmatprep.subr.mxu0 0.0
    %1464 = vmatpush1.xpose.msra.mxu0 0.0
    %1465 = vmatprep.subr.mxu0 0.0
    %1466 = vmatpush1.xpose.msra.mxu0 0.0
    %1467 = vmatprep.subr.mxu0 0.0
    %1468 = vmatpush1.xpose.msra.mxu0 0.0
    %1469 = vmatprep.subr.mxu0 0.0
    %1470 = vmatpush1.xpose.msra.mxu0 0.0
    %1471 = vmatprep.subr.mxu0 0.0
    %1472 = vmatpush1.xpose.msra.mxu0 0.0
    %1473 = vmatprep.subr.mxu0 0.0
    %1474 = vmatpush1.xpose.msra.mxu0 0.0
    %1475 = vmatprep.subr.mxu0 0.0
    %1476 = vmatpush1.xpose.msra.mxu0 0.0
    %1477 = vmatprep.subr.mxu0 0.0
    %1478 = vmatpush1.xpose.msra.mxu0 0.0
    %1479 = vmatprep.subr.mxu0 0.0
    %1480 = vmatpush1.xpose.msra.mxu0 0.0
    %1481 = vmatprep.subr.mxu0 0.0
    %1482 = vmatpush1.xpose.msra.mxu0 0.0
    %1483 = vmatprep.mubr.f32.mxu0 0.0
    %1484 = vmatmul.mubr.f32.gmra.mrb[0].mxu0 %v1415
    %v1485 = vpop.f32.mrb[0].mxu0
    %v1486 = vadd.f32 0.0, %v1485
    %v1487 = vpop.f32.mrb[0].mxu0
    %1488 = vdwg.mxu0
    %1489 = vrot.lane.b32.xlu0 %v1260, 96
    %v1490 = vpop.permute.xlu0 %1489
    %v1491 = vsel %vm329, %v1260, 0
    %v1493 = vsel %vm329, %v1490, 0
    %1495 = vmatprep.subr.mxu0 0.0
    %1496 = vmatpush1.xpose.msra.mxu0 %v1493
    %1497 = vmatprep.subr.mxu0 0.0
    %1498 = vmatpush1.xpose.msra.mxu0 0.0
    %1499 = vmatprep.subr.mxu0 0.0
    %1500 = vmatpush1.xpose.msra.mxu0 0.0
    %1501 = vmatprep.subr.mxu0 0.0
    %1502 = vmatpush1.xpose.msra.mxu0 0.0
    %1503 = vmatprep.subr.mxu0 0.0
    %1504 = vmatpush1.xpose.msra.mxu0 0.0
    %1505 = vmatprep.subr.mxu0 0.0
    %1506 = vmatpush1.xpose.msra.mxu0 0.0
    %1507 = vmatprep.subr.mxu0 0.0
    %1508 = vmatpush1.xpose.msra.mxu0 0.0
    %1509 = vmatprep.subr.mxu0 0.0
    %1510 = vmatpush1.xpose.msra.mxu0 0.0
    %1511 = vmatprep.subr.mxu0 0.0
    %1512 = vmatpush1.xpose.msra.mxu0 0.0
    %1513 = vmatprep.subr.mxu0 0.0
    %1514 = vmatpush1.xpose.msra.mxu0 0.0
    %1515 = vmatprep.subr.mxu0 0.0
    %1516 = vmatpush1.xpose.msra.mxu0 0.0
    %1517 = vmatprep.subr.mxu0 0.0
    %1518 = vmatpush1.xpose.msra.mxu0 0.0
    %1519 = vmatprep.subr.mxu0 0.0
    %1520 = vmatpush1.xpose.msra.mxu0 0.0
    %1521 = vmatprep.subr.mxu0 0.0
    %1522 = vmatpush1.xpose.msra.mxu0 0.0
    %1523 = vmatprep.subr.mxu0 0.0
    %1524 = vmatpush1.xpose.msra.mxu0 0.0
    %1525 = vmatprep.subr.mxu0 0.0
    %1526 = vmatpush1.xpose.msra.mxu0 0.0
    %1527 = vmatprep.subr.mxu0 0.0
    %1528 = vmatpush1.xpose.msra.mxu0 0.0
    %1529 = vmatprep.subr.mxu0 0.0
    %1530 = vmatpush1.xpose.msra.mxu0 0.0
    %1531 = vmatprep.subr.mxu0 0.0
    %1532 = vmatpush1.xpose.msra.mxu0 0.0
    %1533 = vmatprep.subr.mxu0 0.0
    %1534 = vmatpush1.xpose.msra.mxu0 0.0
    %1535 = vmatprep.subr.mxu0 0.0
    %1536 = vmatpush1.xpose.msra.mxu0 0.0
    %1537 = vmatprep.subr.mxu0 0.0
    %1538 = vmatpush1.xpose.msra.mxu0 0.0
    %1539 = vmatprep.subr.mxu0 0.0
    %1540 = vmatpush1.xpose.msra.mxu0 0.0
    %1541 = vmatprep.subr.mxu0 0.0
    %1542 = vmatpush1.xpose.msra.mxu0 0.0
    %1543 = vmatprep.subr.mxu0 0.0
    %1544 = vmatpush1.xpose.msra.mxu0 0.0
    %1545 = vmatprep.subr.mxu0 0.0
    %1546 = vmatpush1.xpose.msra.mxu0 0.0
    %1547 = vmatprep.subr.mxu0 0.0
    %1548 = vmatpush1.xpose.msra.mxu0 0.0
    %1549 = vmatprep.subr.mxu0 0.0
    %1550 = vmatpush1.xpose.msra.mxu0 0.0
    %1551 = vmatprep.subr.mxu0 0.0
    %1552 = vmatpush1.xpose.msra.mxu0 0.0
    %1553 = vmatprep.subr.mxu0 0.0
    %1554 = vmatpush1.xpose.msra.mxu0 0.0
    %1555 = vmatprep.subr.mxu0 0.0
    %1556 = vmatpush1.xpose.msra.mxu0 0.0
    %1557 = vmatprep.subr.mxu0 0.0
    %1558 = vmatpush1.xpose.msra.mxu0 0.0
    %1559 = vmatprep.mubr.f32.mxu0 0.0
    %1560 = vmatmul.mubr.f32.gmra.mrb[0].mxu0 %v1491
    %v1561 = vpop.f32.mrb[0].mxu0
    %v1562 = vadd.f32 0.0, %v1561
    %v1563 = vpop.f32.mrb[0].mxu0
    %1564 = vdwg.mxu0
    %v1565 = vmul.f32 %v1334, 0.35355338
    %v1566 = vmul.f32 %v1410, 0.35355338
    %v1567 = vmul.f32 %v1486, 0.35355338
    %v1568 = vmul.f32 %v1562, 0.35355338
    %v1569 = vadd.f32 %v1565, %v477
    %v1570 = vadd.f32 %v1566, %v477
    %v1571 = vadd.f32 %v1567, %v477
    %v1572 = vadd.f32 %v1568, %v477
    %v1573 = vsel %vm329, %v1569, -inf
    %1574 = vmax.xlane.f32.xlu0 %v1573
    %v1575 = vpop.xlane.xlu0 %1574
    %v1576 = vsel %vm329, %v1570, -inf
    %1577 = vmax.xlane.f32.xlu0 %v1576
    %v1578 = vpop.xlane.xlu0 %1577
    %v1579 = vsel %vm329, %v1571, -inf
    %1580 = vmax.xlane.f32.xlu0 %v1579
    %v1581 = vpop.xlane.xlu0 %1580
    %v1582 = vsel %vm329, %v1572, -inf
    %1583 = vmax.xlane.f32.xlu0 %v1582
    %v1584 = vpop.xlane.xlu0 %1583
    %v1585 = vsub.f32 %v1569, %v1575
    %v1586 = vsub.f32 %v1570, %v1578
    %v1587 = vsub.f32 %v1571, %v1581
    %v1588 = vsub.f32 %v1572, %v1584
    %v1589 = vmul.f32 %v1585, 1.442695
    %v1590 = vpow.pop %v1589
    %v1591 = vmul.f32 %v1586, 1.442695
    %v1592 = vpow.pop %v1591
    %v1593 = vmul.f32 %v1587, 1.442695
    %v1594 = vpow.pop %v1593
    %v1595 = vmul.f32 %v1588, 1.442695
    %v1596 = vpow.pop %v1595
    %v1597 = vsel %vm329, %v1590, 0.0
    %1598 = vadd.xlane.f32.xlu0 %v1597
    %v1599 = vpop.xlane.xlu0 %1598
    %v1600 = vsel %vm329, %v1592, 0.0
    %1601 = vadd.xlane.f32.xlu0 %v1600
    %v1602 = vpop.xlane.xlu0 %1601
    %v1603 = vsel %vm329, %v1594, 0.0
    %1604 = vadd.xlane.f32.xlu0 %v1603
    %v1605 = vpop.xlane.xlu0 %1604
    %v1606 = vsel %vm329, %v1596, 0.0
    %1607 = vadd.xlane.f32.xlu0 %v1606
    %v1608 = vpop.xlane.xlu0 %1607
    %v1609 = vrcp.pop %v1599
    %v1610 = vmul.f32 %v1590, %v1609
    %v1611 = vrcp.pop %v1602
    %v1612 = vmul.f32 %v1592, %v1611
    %v1613 = vrcp.pop %v1605
    %v1614 = vmul.f32 %v1594, %v1613
    %v1615 = vrcp.pop %v1608
    %v1616 = vmul.f32 %v1596, %v1615
    %1617 = vrot.lane.b32.xlu0 %v567, 64
    %v1618 = vpop.permute.xlu0 %1617
    %v1621 = vsel %vm329, %v1610, 0
    %1623 = vmatprep.subr.mxu0 0.0
    %1624 = vmatpush1.msra.mxu0 %v1618
    %1625 = vmatprep.subr.mxu0 0.0
    %1626 = vmatpush1.msra.mxu0 0.0
    %1627 = vmatprep.subr.mxu0 0.0
    %1628 = vmatpush1.msra.mxu0 0.0
    %1629 = vmatprep.subr.mxu0 0.0
    %1630 = vmatpush1.msra.mxu0 0.0
    %1631 = vmatprep.subr.mxu0 0.0
    %1632 = vmatpush1.msra.mxu0 0.0
    %1633 = vmatprep.subr.mxu0 0.0
    %1634 = vmatpush1.msra.mxu0 0.0
    %1635 = vmatprep.subr.mxu0 0.0
    %1636 = vmatpush1.msra.mxu0 0.0
    %1637 = vmatprep.subr.mxu0 0.0
    %1638 = vmatpush1.msra.mxu0 0.0
    %1639 = vmatprep.subr.mxu0 0.0
    %1640 = vmatpush1.msra.mxu0 0.0
    %1641 = vmatprep.subr.mxu0 0.0
    %1642 = vmatpush1.msra.mxu0 0.0
    %1643 = vmatprep.subr.mxu0 0.0
    %1644 = vmatpush1.msra.mxu0 0.0
    %1645 = vmatprep.subr.mxu0 0.0
    %1646 = vmatpush1.msra.mxu0 0.0
    %1647 = vmatprep.subr.mxu0 0.0
    %1648 = vmatpush1.msra.mxu0 0.0
    %1649 = vmatprep.subr.mxu0 0.0
    %1650 = vmatpush1.msra.mxu0 0.0
    %1651 = vmatprep.subr.mxu0 0.0
    %1652 = vmatpush1.msra.mxu0 0.0
    %1653 = vmatprep.subr.mxu0 0.0
    %1654 = vmatpush1.msra.mxu0 0.0
    %1655 = vmatprep.subr.mxu0 0.0
    %1656 = vmatpush1.msra.mxu0 0.0
    %1657 = vmatprep.subr.mxu0 0.0
    %1658 = vmatpush1.msra.mxu0 0.0
    %1659 = vmatprep.subr.mxu0 0.0
    %1660 = vmatpush1.msra.mxu0 0.0
    %1661 = vmatprep.subr.mxu0 0.0
    %1662 = vmatpush1.msra.mxu0 0.0
    %1663 = vmatprep.subr.mxu0 0.0
    %1664 = vmatpush1.msra.mxu0 0.0
    %1665 = vmatprep.subr.mxu0 0.0
    %1666 = vmatpush1.msra.mxu0 0.0
    %1667 = vmatprep.subr.mxu0 0.0
    %1668 = vmatpush1.msra.mxu0 0.0
    %1669 = vmatprep.subr.mxu0 0.0
    %1670 = vmatpush1.msra.mxu0 0.0
    %1671 = vmatprep.subr.mxu0 0.0
    %1672 = vmatpush1.msra.mxu0 0.0
    %1673 = vmatprep.subr.mxu0 0.0
    %1674 = vmatpush1.msra.mxu0 0.0
    %1675 = vmatprep.subr.mxu0 0.0
    %1676 = vmatpush1.msra.mxu0 0.0
    %1677 = vmatprep.subr.mxu0 0.0
    %1678 = vmatpush1.msra.mxu0 0.0
    %1679 = vmatprep.subr.mxu0 0.0
    %1680 = vmatpush1.msra.mxu0 0.0
    %1681 = vmatprep.subr.mxu0 0.0
    %1682 = vmatpush1.msra.mxu0 0.0
    %1683 = vmatprep.subr.mxu0 0.0
    %1684 = vmatpush1.msra.mxu0 0.0
    %1685 = vmatprep.subr.mxu0 0.0
    %1686 = vmatpush1.msra.mxu0 0.0
    %1687 = vmatprep.mubr.f32.mxu0 0.0
    %1688 = vmatmul.mubr.f32.gmra.mrb[0].mxu0 %v1621
    %v1689 = vpop.f32.mrb[0].mxu0
    %v1690 = vadd.f32 0.0, %v1689
    %v1691 = vpop.f32.mrb[0].mxu0
    %1692 = vdwg.mxu0
    %1693 = vrot.lane.b32.xlu0 %v1256, 64
    %v1694 = vpop.permute.xlu0 %1693
    %v1697 = vsel %vm329, %v1612, 0
    %1699 = vmatprep.subr.mxu0 0.0
    %1700 = vmatpush1.msra.mxu0 %v1694
    %1701 = vmatprep.subr.mxu0 0.0
    %1702 = vmatpush1.msra.mxu0 0.0
    %1703 = vmatprep.subr.mxu0 0.0
    %1704 = vmatpush1.msra.mxu0 0.0
    %1705 = vmatprep.subr.mxu0 0.0
    %1706 = vmatpush1.msra.mxu0 0.0
    %1707 = vmatprep.subr.mxu0 0.0
    %1708 = vmatpush1.msra.mxu0 0.0
    %1709 = vmatprep.subr.mxu0 0.0
    %1710 = vmatpush1.msra.mxu0 0.0
    %1711 = vmatprep.subr.mxu0 0.0
    %1712 = vmatpush1.msra.mxu0 0.0
    %1713 = vmatprep.subr.mxu0 0.0
    %1714 = vmatpush1.msra.mxu0 0.0
    %1715 = vmatprep.subr.mxu0 0.0
    %1716 = vmatpush1.msra.mxu0 0.0
    %1717 = vmatprep.subr.mxu0 0.0
    %1718 = vmatpush1.msra.mxu0 0.0
    %1719 = vmatprep.subr.mxu0 0.0
    %1720 = vmatpush1.msra.mxu0 0.0
    %1721 = vmatprep.subr.mxu0 0.0
    %1722 = vmatpush1.msra.mxu0 0.0
    %1723 = vmatprep.subr.mxu0 0.0
    %1724 = vmatpush1.msra.mxu0 0.0
    %1725 = vmatprep.subr.mxu0 0.0
    %1726 = vmatpush1.msra.mxu0 0.0
    %1727 = vmatprep.subr.mxu0 0.0
    %1728 = vmatpush1.msra.mxu0 0.0
    %1729 = vmatprep.subr.mxu0 0.0
    %1730 = vmatpush1.msra.mxu0 0.0
    %1731 = vmatprep.subr.mxu0 0.0
    %1732 = vmatpush1.msra.mxu0 0.0
    %1733 = vmatprep.subr.mxu0 0.0
    %1734 = vmatpush1.msra.mxu0 0.0
    %1735 = vmatprep.subr.mxu0 0.0
    %1736 = vmatpush1.msra.mxu0 0.0
    %1737 = vmatprep.subr.mxu0 0.0
    %1738 = vmatpush1.msra.mxu0 0.0
    %1739 = vmatprep.subr.mxu0 0.0
    %1740 = vmatpush1.msra.mxu0 0.0
    %1741 = vmatprep.subr.mxu0 0.0
    %1742 = vmatpush1.msra.mxu0 0.0
    %1743 = vmatprep.subr.mxu0 0.0
    %1744 = vmatpush1.msra.mxu0 0.0
    %1745 = vmatprep.subr.mxu0 0.0
    %1746 = vmatpush1.msra.mxu0 0.0
    %1747 = vmatprep.subr.mxu0 0.0
    %1748 = vmatpush1.msra.mxu0 0.0
    %1749 = vmatprep.subr.mxu0 0.0
    %1750 = vmatpush1.msra.mxu0 0.0
    %1751 = vmatprep.subr.mxu0 0.0
    %1752 = vmatpush1.msra.mxu0 0.0
    %1753 = vmatprep.subr.mxu0 0.0
    %1754 = vmatpush1.msra.mxu0 0.0
    %1755 = vmatprep.subr.mxu0 0.0
    %1756 = vmatpush1.msra.mxu0 0.0
    %1757 = vmatprep.subr.mxu0 0.0
    %1758 = vmatpush1.msra.mxu0 0.0
    %1759 = vmatprep.subr.mxu0 0.0
    %1760 = vmatpush1.msra.mxu0 0.0
    %1761 = vmatprep.subr.mxu0 0.0
    %1762 = vmatpush1.msra.mxu0 0.0
    %1763 = vmatprep.mubr.f32.mxu0 0.0
    %1764 = vmatmul.mubr.f32.gmra.mrb[0].mxu0 %v1697
    %v1765 = vpop.f32.mrb[0].mxu0
    %v1766 = vadd.f32 0.0, %v1765
    %v1767 = vpop.f32.mrb[0].mxu0
    %1768 = vdwg.mxu0
    %1769 = vrot.lane.b32.xlu0 %v1258, 64
    %v1770 = vpop.permute.xlu0 %1769
    %v1773 = vsel %vm329, %v1614, 0
    %1775 = vmatprep.subr.mxu0 0.0
    %1776 = vmatpush1.msra.mxu0 %v1770
    %1777 = vmatprep.subr.mxu0 0.0
    %1778 = vmatpush1.msra.mxu0 0.0
    %1779 = vmatprep.subr.mxu0 0.0
    %1780 = vmatpush1.msra.mxu0 0.0
    %1781 = vmatprep.subr.mxu0 0.0
    %1782 = vmatpush1.msra.mxu0 0.0
    %1783 = vmatprep.subr.mxu0 0.0
    %1784 = vmatpush1.msra.mxu0 0.0
    %1785 = vmatprep.subr.mxu0 0.0
    %1786 = vmatpush1.msra.mxu0 0.0
    %1787 = vmatprep.subr.mxu0 0.0
    %1788 = vmatpush1.msra.mxu0 0.0
    %1789 = vmatprep.subr.mxu0 0.0
    %1790 = vmatpush1.msra.mxu0 0.0
    %1791 = vmatprep.subr.mxu0 0.0
    %1792 = vmatpush1.msra.mxu0 0.0
    %1793 = vmatprep.subr.mxu0 0.0
    %1794 = vmatpush1.msra.mxu0 0.0
    %1795 = vmatprep.subr.mxu0 0.0
    %1796 = vmatpush1.msra.mxu0 0.0
    %1797 = vmatprep.subr.mxu0 0.0
    %1798 = vmatpush1.msra.mxu0 0.0
    %1799 = vmatprep.subr.mxu0 0.0
    %1800 = vmatpush1.msra.mxu0 0.0
    %1801 = vmatprep.subr.mxu0 0.0
    %1802 = vmatpush1.msra.mxu0 0.0
    %1803 = vmatprep.subr.mxu0 0.0
    %1804 = vmatpush1.msra.mxu0 0.0
    %1805 = vmatprep.subr.mxu0 0.0
    %1806 = vmatpush1.msra.mxu0 0.0
    %1807 = vmatprep.subr.mxu0 0.0
    %1808 = vmatpush1.msra.mxu0 0.0
    %1809 = vmatprep.subr.mxu0 0.0
    %1810 = vmatpush1.msra.mxu0 0.0
    %1811 = vmatprep.subr.mxu0 0.0
    %1812 = vmatpush1.msra.mxu0 0.0
    %1813 = vmatprep.subr.mxu0 0.0
    %1814 = vmatpush1.msra.mxu0 0.0
    %1815 = vmatprep.subr.mxu0 0.0
    %1816 = vmatpush1.msra.mxu0 0.0
    %1817 = vmatprep.subr.mxu0 0.0
    %1818 = vmatpush1.msra.mxu0 0.0
    %1819 = vmatprep.subr.mxu0 0.0
    %1820 = vmatpush1.msra.mxu0 0.0
    %1821 = vmatprep.subr.mxu0 0.0
    %1822 = vmatpush1.msra.mxu0 0.0
    %1823 = vmatprep.subr.mxu0 0.0
    %1824 = vmatpush1.msra.mxu0 0.0
    %1825 = vmatprep.subr.mxu0 0.0
    %1826 = vmatpush1.msra.mxu0 0.0
    %1827 = vmatprep.subr.mxu0 0.0
    %1828 = vmatpush1.msra.mxu0 0.0
    %1829 = vmatprep.subr.mxu0 0.0
    %1830 = vmatpush1.msra.mxu0 0.0
    %1831 = vmatprep.subr.mxu0 0.0
    %1832 = vmatpush1.msra.mxu0 0.0
    %1833 = vmatprep.subr.mxu0 0.0
    %1834 = vmatpush1.msra.mxu0 0.0
    %1835 = vmatprep.subr.mxu0 0.0
    %1836 = vmatpush1.msra.mxu0 0.0
    %1837 = vmatprep.subr.mxu0 0.0
    %1838 = vmatpush1.msra.mxu0 0.0
    %1839 = vmatprep.mubr.f32.mxu0 0.0
    %1840 = vmatmul.mubr.f32.gmra.mrb[0].mxu0 %v1773
    %v1841 = vpop.f32.mrb[0].mxu0
    %v1842 = vadd.f32 0.0, %v1841
    %v1843 = vpop.f32.mrb[0].mxu0
    %1844 = vdwg.mxu0
    %1845 = vrot.lane.b32.xlu0 %v1260, 64
    %v1846 = vpop.permute.xlu0 %1845
    %v1849 = vsel %vm329, %v1616, 0
    %1851 = vmatprep.subr.mxu0 0.0
    %1852 = vmatpush1.msra.mxu0 %v1846
    %1853 = vmatprep.subr.mxu0 0.0
    %1854 = vmatpush1.msra.mxu0 0.0
    %1855 = vmatprep.subr.mxu0 0.0
    %1856 = vmatpush1.msra.mxu0 0.0
    %1857 = vmatprep.subr.mxu0 0.0
    %1858 = vmatpush1.msra.mxu0 0.0
    %1859 = vmatprep.subr.mxu0 0.0
    %1860 = vmatpush1.msra.mxu0 0.0
    %1861 = vmatprep.subr.mxu0 0.0
    %1862 = vmatpush1.msra.mxu0 0.0
    %1863 = vmatprep.subr.mxu0 0.0
    %1864 = vmatpush1.msra.mxu0 0.0
    %1865 = vmatprep.subr.mxu0 0.0
    %1866 = vmatpush1.msra.mxu0 0.0
    %1867 = vmatprep.subr.mxu0 0.0
    %1868 = vmatpush1.msra.mxu0 0.0
    %1869 = vmatprep.subr.mxu0 0.0
    %1870 = vmatpush1.msra.mxu0 0.0
    %1871 = vmatprep.subr.mxu0 0.0
    %1872 = vmatpush1.msra.mxu0 0.0
    %1873 = vmatprep.subr.mxu0 0.0
    %1874 = vmatpush1.msra.mxu0 0.0
    %1875 = vmatprep.subr.mxu0 0.0
    %1876 = vmatpush1.msra.mxu0 0.0
    %1877 = vmatprep.subr.mxu0 0.0
    %1878 = vmatpush1.msra.mxu0 0.0
    %1879 = vmatprep.subr.mxu0 0.0
    %1880 = vmatpush1.msra.mxu0 0.0
    %1881 = vmatprep.subr.mxu0 0.0
    %1882 = vmatpush1.msra.mxu0 0.0
    %1883 = vmatprep.subr.mxu0 0.0
    %1884 = vmatpush1.msra.mxu0 0.0
    %1885 = vmatprep.subr.mxu0 0.0
    %1886 = vmatpush1.msra.mxu0 0.0
    %1887 = vmatprep.subr.mxu0 0.0
    %1888 = vmatpush1.msra.mxu0 0.0
    %1889 = vmatprep.subr.mxu0 0.0
    %1890 = vmatpush1.msra.mxu0 0.0
    %1891 = vmatprep.subr.mxu0 0.0
    %1892 = vmatpush1.msra.mxu0 0.0
    %1893 = vmatprep.subr.mxu0 0.0
    %1894 = vmatpush1.msra.mxu0 0.0
    %1895 = vmatprep.subr.mxu0 0.0
    %1896 = vmatpush1.msra.mxu0 0.0
    %1897 = vmatprep.subr.mxu0 0.0
    %1898 = vmatpush1.msra.mxu0 0.0
    %1899 = vmatprep.subr.mxu0 0.0
    %1900 = vmatpush1.msra.mxu0 0.0
    %1901 = vmatprep.subr.mxu0 0.0
    %1902 = vmatpush1.msra.mxu0 0.0
    %1903 = vmatprep.subr.mxu0 0.0
    %1904 = vmatpush1.msra.mxu0 0.0
    %1905 = vmatprep.subr.mxu0 0.0
    %1906 = vmatpush1.msra.mxu0 0.0
    %1907 = vmatprep.subr.mxu0 0.0
    %1908 = vmatpush1.msra.mxu0 0.0
    %1909 = vmatprep.subr.mxu0 0.0
    %1910 = vmatpush1.msra.mxu0 0.0
    %1911 = vmatprep.subr.mxu0 0.0
    %1912 = vmatpush1.msra.mxu0 0.0
    %1913 = vmatprep.subr.mxu0 0.0
    %1914 = vmatpush1.msra.mxu0 0.0
    %1915 = vmatprep.mubr.f32.mxu0 0.0
    %1916 = vmatmul.mubr.f32.gmra.mrb[0].mxu0 %v1849
    %v1917 = vpop.f32.mrb[0].mxu0
    %v1918 = vadd.f32 0.0, %v1917
    %v1919 = vpop.f32.mrb[0].mxu0
    %1920 = vdwg.mxu0
    %1922 = vrot.lane.b32.xlu0 %v1766, 8
    %v1923 = vpop.permute.xlu0 %1922
    %1926 = vrot.lane.b32.xlu0 %v1842, 16
    %v1927 = vpop.permute.xlu0 %1926
    %1930 = vrot.lane.b32.xlu0 %v1918, 24
    %v1931 = vpop.permute.xlu0 %1930
    %v1933 = vsel %vm329, %v1690, %v1923
    %v1934 = vsel %vm1250, %v1933, %v1927
    %v1935 = vsel %vm1252, %v1934, %v1931
    %1940 = vrot.lane.b32.xlu0 %v480, 32
    %v1941 = vpop.permute.xlu0 %1940
    %1942 = vrot.lane.b32.xlu0 %v481, 32
    %v1943 = vpop.permute.xlu0 %1942
    %1944 = vrot.lane.b32.xlu0 %v482, 32
    %v1945 = vpop.permute.xlu0 %1944
    %1946 = vrot.lane.b32.xlu0 %v483, 32
    %v1947 = vpop.permute.xlu0 %1946
    %1953 = vrot.lane.b32.xlu0 %v488, 32
    %v1954 = vpop.permute.xlu0 %1953
    %v1957 = vsel %vm33, %v1253, 0
    %v1960 = vsel %vm33, %v1935, 0
    %1962 = vmatprep.subr.mxu0 0.0
    %1963 = vmatpush1.msra.mxu0 %v1941
    %1964 = vmatprep.subr.mxu0 0.0
    %1965 = vmatpush1.msra.mxu0 %v1943
    %1966 = vmatprep.subr.mxu0 0.0
    %1967 = vmatpush1.msra.mxu0 %v1945
    %1968 = vmatprep.subr.mxu0 0.0
    %1969 = vmatpush1.msra.mxu0 %v1947
    %1970 = vmatprep.subr.mxu0 0.0
    %1971 = vmatpush1.msra.mxu0 0.0
    %1972 = vmatprep.subr.mxu0 0.0
    %1973 = vmatpush1.msra.mxu0 0.0
    %1974 = vmatprep.subr.mxu0 0.0
    %1975 = vmatpush1.msra.mxu0 0.0
    %1976 = vmatprep.subr.mxu0 0.0
    %1977 = vmatpush1.msra.mxu0 0.0
    %1978 = vmatprep.subr.mxu0 0.0
    %1979 = vmatpush1.msra.mxu0 0.0
    %1980 = vmatprep.subr.mxu0 0.0
    %1981 = vmatpush1.msra.mxu0 0.0
    %1982 = vmatprep.subr.mxu0 0.0
    %1983 = vmatpush1.msra.mxu0 0.0
    %1984 = vmatprep.subr.mxu0 0.0
    %1985 = vmatpush1.msra.mxu0 0.0
    %1986 = vmatprep.subr.mxu0 0.0
    %1987 = vmatpush1.msra.mxu0 0.0
    %1988 = vmatprep.subr.mxu0 0.0
    %1989 = vmatpush1.msra.mxu0 0.0
    %1990 = vmatprep.subr.mxu0 0.0
    %1991 = vmatpush1.msra.mxu0 0.0
    %1992 = vmatprep.subr.mxu0 0.0
    %1993 = vmatpush1.msra.mxu0 0.0
    %1994 = vmatprep.subr.mxu0 0.0
    %1995 = vmatpush1.msra.mxu0 0.0
    %1996 = vmatprep.subr.mxu0 0.0
    %1997 = vmatpush1.msra.mxu0 0.0
    %1998 = vmatprep.subr.mxu0 0.0
    %1999 = vmatpush1.msra.mxu0 0.0
    %2000 = vmatprep.subr.mxu0 0.0
    %2001 = vmatpush1.msra.mxu0 0.0
    %2002 = vmatprep.subr.mxu0 0.0
    %2003 = vmatpush1.msra.mxu0 0.0
    %2004 = vmatprep.subr.mxu0 0.0
    %2005 = vmatpush1.msra.mxu0 0.0
    %2006 = vmatprep.subr.mxu0 0.0
    %2007 = vmatpush1.msra.mxu0 0.0
    %2008 = vmatprep.subr.mxu0 0.0
    %2009 = vmatpush1.msra.mxu0 0.0
    %2010 = vmatprep.subr.mxu0 0.0
    %2011 = vmatpush1.msra.mxu0 0.0
    %2012 = vmatprep.subr.mxu0 0.0
    %2013 = vmatpush1.msra.mxu0 0.0
    %2014 = vmatprep.subr.mxu0 0.0
    %2015 = vmatpush1.msra.mxu0 0.0
    %2016 = vmatprep.subr.mxu0 0.0
    %2017 = vmatpush1.msra.mxu0 0.0
    %2018 = vmatprep.subr.mxu0 0.0
    %2019 = vmatpush1.msra.mxu0 0.0
    %2020 = vmatprep.subr.mxu0 0.0
    %2021 = vmatpush1.msra.mxu0 0.0
    %2022 = vmatprep.subr.mxu0 0.0
    %2023 = vmatpush1.msra.mxu0 0.0
    %2024 = vmatprep.subr.mxu0 0.0
    %2025 = vmatpush1.msra.mxu0 0.0
    %2026 = vmatprep.mubr.f32.mxu0 0.0
    %2027 = vmatmul.mubr.f32.gmra.mrb[0].mxu0 %v1957
    %v2028 = vpop.f32.mrb[0].mxu0
    %v2029 = vadd.f32 %v1954, %v2028
    %v2030 = vpop.f32.mrb[0].mxu0
    %2031 = vmatprep.mubr.f32.mxu0 0.0
    %2032 = vmatmul.mubr.f32.gmra.mrb[0].mxu0 %v1960
    %v2033 = vpop.f32.mrb[0].mxu0
    %v2034 = vadd.f32 %v1954, %v2033
    %v2035 = vpop.f32.mrb[0].mxu0
    %2036 = vdwg.mxu0
    %v2037 = vadd.f32 %v313, %v2029
    %v2038 = vadd.f32 %v314, %v2034
    %v2039 = vsel %vm33, %v2037, 0.0
    %2040 = vadd.xlane.f32.xlu0 %v2039
    %v2041 = vpop.xlane.xlu0 %2040
    %v2042 = vsel %vm33, %v2038, 0.0
    %2043 = vadd.xlane.f32.xlu0 %v2042
    %v2044 = vpop.xlane.xlu0 %2043
    %v2045 = vrcp.pop 32.0
    %v2046 = vmul.f32 %v2041, %v2045
    %v2047 = vmul.f32 %v2044, %v2045
    %v2048 = vsub.f32 %v2037, %v2046
    %v2049 = vsub.f32 %v2038, %v2047
    %v2050 = vmul.f32 %v2048, %v2048
    %v2051 = vmul.f32 %v2049, %v2049
    %v2052 = vsel %vm33, %v2050, 0.0
    %2053 = vadd.xlane.f32.xlu0 %v2052
    %v2054 = vpop.xlane.xlu0 %2053
    %v2055 = vsel %vm33, %v2051, 0.0
    %2056 = vadd.xlane.f32.xlu0 %v2055
    %v2057 = vpop.xlane.xlu0 %2056
    %v2058 = vmul.f32 %v2054, %v2045
    %v2059 = vmul.f32 %v2057, %v2045
    %v2060 = vadd.f32 %v2058, 1e-05
    %v2061 = vadd.f32 %v2059, 1e-05
    %v2062 = vrsqrt.pop %v2060
    %v2063 = vrsqrt.pop %v2061
    %v2064 = vmul.f32 %v2048, %v2062
    %v2065 = vmul.f32 %v2049, %v2063
    %v2066 = vlaneseq
    %v2067 = vshrl.u32 %v2066, 7
    %v2068 = vsub.s32 2, %v2067
    %v2069 = vrot.slane %v484, %v2068
    %v2070 = vmul.f32 %v2064, %v2069
    %v2071 = vmul.f32 %v2065, %v2069
    %v2072 = vlaneseq
    %v2073 = vshrl.u32 %v2072, 7
    %v2074 = vsub.s32 3, %v2073
    %v2075 = vrot.slane %v484, %v2074
    %v2076 = vadd.f32 %v2070, %v2075
    %v2077 = vadd.f32 %v2071, %v2075
    %v2078 = vld [vmem:[%s4] sm:$0xff]
    %v2079 = vld [vmem:[%s4 + $0x8] sm:$0xff]
    %v2080 = vld [vmem:[%s4 + $0x10] sm:$0xff]
    %v2081 = vld [vmem:[%s4 + $0x18] sm:$0xff]
    %v2082 = vlaneseq
    %v2083 = vshrl.u32 %v2082, 7
    %v2084 = vsub.s32 1, %v2083
    %v2085 = vrot.slane %v484, %v2084
    %v2087 = vsel %vm33, %v2076, 0
    %v2090 = vsel %vm33, %v2077, 0
    %2092 = vmatprep.subr.mxu0 0.0
    %2093 = vmatpush1.msra.mxu0 %v2078
    %2094 = vmatprep.subr.mxu0 0.0
    %2095 = vmatpush1.msra.mxu0 %v2079
    %2096 = vmatprep.subr.mxu0 0.0
    %2097 = vmatpush1.msra.mxu0 %v2080
    %2098 = vmatprep.subr.mxu0 0.0
    %2099 = vmatpush1.msra.mxu0 %v2081
    %2100 = vmatprep.subr.mxu0 0.0
    %2101 = vmatpush1.msra.mxu0 0.0
    %2102 = vmatprep.subr.mxu0 0.0
    %2103 = vmatpush1.msra.mxu0 0.0
    %2104 = vmatprep.subr.mxu0 0.0
    %2105 = vmatpush1.msra.mxu0 0.0
    %2106 = vmatprep.subr.mxu0 0.0
    %2107 = vmatpush1.msra.mxu0 0.0
    %2108 = vmatprep.subr.mxu0 0.0
    %2109 = vmatpush1.msra.mxu0 0.0
    %2110 = vmatprep.subr.mxu0 0.0
    %2111 = vmatpush1.msra.mxu0 0.0
    %2112 = vmatprep.subr.mxu0 0.0
    %2113 = vmatpush1.msra.mxu0 0.0
    %2114 = vmatprep.subr.mxu0 0.0
    %2115 = vmatpush1.msra.mxu0 0.0
    %2116 = vmatprep.subr.mxu0 0.0
    %2117 = vmatpush1.msra.mxu0 0.0
    %2118 = vmatprep.subr.mxu0 0.0
    %2119 = vmatpush1.msra.mxu0 0.0
    %2120 = vmatprep.subr.mxu0 0.0
    %2121 = vmatpush1.msra.mxu0 0.0
    %2122 = vmatprep.subr.mxu0 0.0
    %2123 = vmatpush1.msra.mxu0 0.0
    %2124 = vmatprep.subr.mxu0 0.0
    %2125 = vmatpush1.msra.mxu0 0.0
    %2126 = vmatprep.subr.mxu0 0.0
    %2127 = vmatpush1.msra.mxu0 0.0
    %2128 = vmatprep.subr.mxu0 0.0
    %2129 = vmatpush1.msra.mxu0 0.0
    %2130 = vmatprep.subr.mxu0 0.0
    %2131 = vmatpush1.msra.mxu0 0.0
    %2132 = vmatprep.subr.mxu0 0.0
    %2133 = vmatpush1.msra.mxu0 0.0
    %2134 = vmatprep.subr.mxu0 0.0
    %2135 = vmatpush1.msra.mxu0 0.0
    %2136 = vmatprep.subr.mxu0 0.0
    %2137 = vmatpush1.msra.mxu0 0.0
    %2138 = vmatprep.subr.mxu0 0.0
    %2139 = vmatpush1.msra.mxu0 0.0
    %2140 = vmatprep.subr.mxu0 0.0
    %2141 = vmatpush1.msra.mxu0 0.0
    %2142 = vmatprep.subr.mxu0 0.0
    %2143 = vmatpush1.msra.mxu0 0.0
    %2144 = vmatprep.subr.mxu0 0.0
    %2145 = vmatpush1.msra.mxu0 0.0
    %2146 = vmatprep.subr.mxu0 0.0
    %2147 = vmatpush1.msra.mxu0 0.0
    %2148 = vmatprep.subr.mxu0 0.0
    %2149 = vmatpush1.msra.mxu0 0.0
    %2150 = vmatprep.subr.mxu0 0.0
    %2151 = vmatpush1.msra.mxu0 0.0
    %2152 = vmatprep.subr.mxu0 0.0
    %2153 = vmatpush1.msra.mxu0 0.0
    %2154 = vmatprep.subr.mxu0 0.0
    %2155 = vmatpush1.msra.mxu0 0.0
    %2156 = vmatprep.mubr.f32.mxu0 0.0
    %2157 = vmatmul.mubr.f32.gmra.mrb[0].mxu0 %v2087
    %v2158 = vpop.f32.mrb[0].mxu0
    %v2159 = vadd.f32 %v2085, %v2158
    %v2160 = vpop.f32.mrb[0].mxu0
    %2161 = vmatprep.mubr.f32.mxu0 0.0
    %2162 = vmatmul.mubr.f32.gmra.mrb[0].mxu0 %v2090
    %v2163 = vpop.f32.mrb[0].mxu0
    %v2164 = vadd.f32 %v2085, %v2163
    %v2165 = vpop.f32.mrb[0].mxu0
    %2166 = vdwg.mxu0
    %v2167 = vmax.f32 %v2159, 0.0
    %v2168 = vmax.f32 %v2164, 0.0
    %v2169 = vld [vmem:[%s5] sm:$0xff]
    %v2170 = vld [vmem:[%s5 + $0x8] sm:$0xff]
    %v2171 = vld [vmem:[%s5 + $0x10] sm:$0xff]
    %v2172 = vld [vmem:[%s5 + $0x18] sm:$0xff]
    %v2173 = vld [vmem:[%s5 + $0x20] sm:$0xff]
    %v2174 = vld [vmem:[%s5 + $0x28] sm:$0xff]
    %v2175 = vld [vmem:[%s5 + $0x30] sm:$0xff]
    %v2176 = vld [vmem:[%s5 + $0x38] sm:$0xff]
    %v2177 = vlaneseq
    %v2178 = vshrl.u32 %v2177, 7
    %v2179 = vsub.s32 4, %v2178
    %v2180 = vrot.slane %v484, %v2179
    %vm2181 = vcmask 523264
    %v2183 = vsel %vm2181, %v2167, 0
    %v2186 = vsel %vm2181, %v2168, 0
    %2188 = vmatprep.subr.mxu0 0.0
    %2189 = vmatpush1.msra.mxu0 %v2169
    %2190 = vmatprep.subr.mxu0 0.0
    %2191 = vmatpush1.msra.mxu0 %v2170
    %2192 = vmatprep.subr.mxu0 0.0
    %2193 = vmatpush1.msra.mxu0 %v2171
    %2194 = vmatprep.subr.mxu0 0.0
    %2195 = vmatpush1.msra.mxu0 %v2172
    %2196 = vmatprep.subr.mxu0 0.0
    %2197 = vmatpush1.msra.mxu0 %v2173
    %2198 = vmatprep.subr.mxu0 0.0
    %2199 = vmatpush1.msra.mxu0 %v2174
    %2200 = vmatprep.subr.mxu0 0.0
    %2201 = vmatpush1.msra.mxu0 %v2175
    %2202 = vmatprep.subr.mxu0 0.0
    %2203 = vmatpush1.msra.mxu0 %v2176
    %2204 = vmatprep.subr.mxu0 0.0
    %2205 = vmatpush1.msra.mxu0 0.0
    %2206 = vmatprep.subr.mxu0 0.0
    %2207 = vmatpush1.msra.mxu0 0.0
    %2208 = vmatprep.subr.mxu0 0.0
    %2209 = vmatpush1.msra.mxu0 0.0
    %2210 = vmatprep.subr.mxu0 0.0
    %2211 = vmatpush1.msra.mxu0 0.0
    %2212 = vmatprep.subr.mxu0 0.0
    %2213 = vmatpush1.msra.mxu0 0.0
    %2214 = vmatprep.subr.mxu0 0.0
    %2215 = vmatpush1.msra.mxu0 0.0
    %2216 = vmatprep.subr.mxu0 0.0
    %2217 = vmatpush1.msra.mxu0 0.0
    %2218 = vmatprep.subr.mxu0 0.0
    %2219 = vmatpush1.msra.mxu0 0.0
    %2220 = vmatprep.subr.mxu0 0.0
    %2221 = vmatpush1.msra.mxu0 0.0
    %2222 = vmatprep.subr.mxu0 0.0
    %2223 = vmatpush1.msra.mxu0 0.0
    %2224 = vmatprep.subr.mxu0 0.0
    %2225 = vmatpush1.msra.mxu0 0.0
    %2226 = vmatprep.subr.mxu0 0.0
    %2227 = vmatpush1.msra.mxu0 0.0
    %2228 = vmatprep.subr.mxu0 0.0
    %2229 = vmatpush1.msra.mxu0 0.0
    %2230 = vmatprep.subr.mxu0 0.0
    %2231 = vmatpush1.msra.mxu0 0.0
    %2232 = vmatprep.subr.mxu0 0.0
    %2233 = vmatpush1.msra.mxu0 0.0
    %2234 = vmatprep.subr.mxu0 0.0
    %2235 = vmatpush1.msra.mxu0 0.0
    %2236 = vmatprep.subr.mxu0 0.0
    %2237 = vmatpush1.msra.mxu0 0.0
    %2238 = vmatprep.subr.mxu0 0.0
    %2239 = vmatpush1.msra.mxu0 0.0
    %2240 = vmatprep.subr.mxu0 0.0
    %2241 = vmatpush1.msra.mxu0 0.0
    %2242 = vmatprep.subr.mxu0 0.0
    %2243 = vmatpush1.msra.mxu0 0.0
    %2244 = vmatprep.subr.mxu0 0.0
    %2245 = vmatpush1.msra.mxu0 0.0
    %2246 = vmatprep.subr.mxu0 0.0
    %2247 = vmatpush1.msra.mxu0 0.0
    %2248 = vmatprep.subr.mxu0 0.0
    %2249 = vmatpush1.msra.mxu0 0.0
    %2250 = vmatprep.subr.mxu0 0.0
    %2251 = vmatpush1.msra.mxu0 0.0
    %2252 = vmatprep.mubr.f32.mxu0 0.0
    %2253 = vmatmul.mubr.f32.gmra.mrb[0].mxu0 %v2183
    %v2254 = vpop.f32.mrb[0].mxu0
    %v2255 = vadd.f32 %v2180, %v2254
    %v2256 = vpop.f32.mrb[0].mxu0
    %2257 = vmatprep.mubr.f32.mxu0 0.0
    %2258 = vmatmul.mubr.f32.gmra.mrb[0].mxu0 %v2186
    %v2259 = vpop.f32.mrb[0].mxu0
    %v2260 = vadd.f32 %v2180, %v2259
    %v2261 = vpop.f32.mrb[0].mxu0
    %2262 = vdwg.mxu0
    %v2263 = vadd.f32 %v2076, %v2255
    %v2264 = vadd.f32 %v2077, %v2260
    %v2265 = vsel %vm33, %v2263, 0.0
    %2266 = vadd.xlane.f32.xlu0 %v2265
    %v2267 = vpop.xlane.xlu0 %2266
    %v2268 = vsel %vm33, %v2264, 0.0
    %2269 = vadd.xlane.f32.xlu0 %v2268
    %v2270 = vpop.xlane.xlu0 %2269
    %v2271 = vmul.f32 %v2267, %v2045
    %v2272 = vmul.f32 %v2270, %v2045
    %v2273 = vsub.f32 %v2263, %v2271
    %v2274 = vsub.f32 %v2264, %v2272
    %v2275 = vmul.f32 %v2273, %v2273
    %v2276 = vmul.f32 %v2274, %v2274
    %v2277 = vsel %vm33, %v2275, 0.0
    %2278 = vadd.xlane.f32.xlu0 %v2277
    %v2279 = vpop.xlane.xlu0 %2278
    %v2280 = vsel %vm33, %v2276, 0.0
    %2281 = vadd.xlane.f32.xlu0 %v2280
    %v2282 = vpop.xlane.xlu0 %2281
    %v2283 = vmul.f32 %v2279, %v2045
    %v2284 = vmul.f32 %v2282, %v2045
    %v2285 = vadd.f32 %v2283, 1e-05
    %v2286 = vadd.f32 %v2284, 1e-05
    %v2287 = vrsqrt.pop %v2285
    %v2288 = vrsqrt.pop %v2286
    %v2289 = vmul.f32 %v2273, %v2287
    %v2290 = vmul.f32 %v2274, %v2288
    %v2291 = vlaneseq
    %v2292 = vshrl.u32 %v2291, 7
    %v2293 = vsub.s32 5, %v2292
    %v2294 = vrot.slane %v484, %v2293
    %v2295 = vmul.f32 %v2289, %v2294
    %v2296 = vmul.f32 %v2290, %v2294
    %v2297 = vlaneseq
    %v2298 = vshrl.u32 %v2297, 7
    %v2299 = vsub.s32 6, %v2298
    %v2300 = vrot.slane %v484, %v2299
    %v2301 = vadd.f32 %v2295, %v2300
    %v2302 = vadd.f32 %v2296, %v2300
    %s2303 = scalar_lea.vmem %s3, 32
    %v2304 = vld [vmem:[%s2303] sm:$0xff]
    %v2305 = vld [vmem:[%s2303 + $0x8] sm:$0xff]
    %v2306 = vld [vmem:[%s2303 + $0x10] sm:$0xff]
    %v2307 = vld [vmem:[%s2303 + $0x18] sm:$0xff]
    %s2308 = scalar_lea.vmem %s6, 8
    %v2309 = vld [vmem:[%s2308] sm:$0x7f]
    %v2310 = vlaneseq
    %v2311 = vshrl.u32 %v2310, 7
    %v2312 = vsub.s32 0, %v2311
    %v2313 = vrot.slane %v2309, %v2312
    %v2315 = vsel %vm33, %v2301, 0
    %v2318 = vsel %vm33, %v2302, 0
    %2320 = vmatprep.subr.mxu0 0.0
    %2321 = vmatpush1.msra.mxu0 %v2304
    %2322 = vmatprep.subr.mxu0 0.0
    %2323 = vmatpush1.msra.mxu0 %v2305
    %2324 = vmatprep.subr.mxu0 0.0
    %2325 = vmatpush1.msra.mxu0 %v2306
    %2326 = vmatprep.subr.mxu0 0.0
    %2327 = vmatpush1.msra.mxu0 %v2307
    %2328 = vmatprep.subr.mxu0 0.0
    %2329 = vmatpush1.msra.mxu0 0.0
    %2330 = vmatprep.subr.mxu0 0.0
    %2331 = vmatpush1.msra.mxu0 0.0
    %2332 = vmatprep.subr.mxu0 0.0
    %2333 = vmatpush1.msra.mxu0 0.0
    %2334 = vmatprep.subr.mxu0 0.0
    %2335 = vmatpush1.msra.mxu0 0.0
    %2336 = vmatprep.subr.mxu0 0.0
    %2337 = vmatpush1.msra.mxu0 0.0
    %2338 = vmatprep.subr.mxu0 0.0
    %2339 = vmatpush1.msra.mxu0 0.0
    %2340 = vmatprep.subr.mxu0 0.0
    %2341 = vmatpush1.msra.mxu0 0.0
    %2342 = vmatprep.subr.mxu0 0.0
    %2343 = vmatpush1.msra.mxu0 0.0
    %2344 = vmatprep.subr.mxu0 0.0
    %2345 = vmatpush1.msra.mxu0 0.0
    %2346 = vmatprep.subr.mxu0 0.0
    %2347 = vmatpush1.msra.mxu0 0.0
    %2348 = vmatprep.subr.mxu0 0.0
    %2349 = vmatpush1.msra.mxu0 0.0
    %2350 = vmatprep.subr.mxu0 0.0
    %2351 = vmatpush1.msra.mxu0 0.0
    %2352 = vmatprep.subr.mxu0 0.0
    %2353 = vmatpush1.msra.mxu0 0.0
    %2354 = vmatprep.subr.mxu0 0.0
    %2355 = vmatpush1.msra.mxu0 0.0
    %2356 = vmatprep.subr.mxu0 0.0
    %2357 = vmatpush1.msra.mxu0 0.0
    %2358 = vmatprep.subr.mxu0 0.0
    %2359 = vmatpush1.msra.mxu0 0.0
    %2360 = vmatprep.subr.mxu0 0.0
    %2361 = vmatpush1.msra.mxu0 0.0
    %2362 = vmatprep.subr.mxu0 0.0
    %2363 = vmatpush1.msra.mxu0 0.0
    %2364 = vmatprep.subr.mxu0 0.0
    %2365 = vmatpush1.msra.mxu0 0.0
    %2366 = vmatprep.subr.mxu0 0.0
    %2367 = vmatpush1.msra.mxu0 0.0
    %2368 = vmatprep.subr.mxu0 0.0
    %2369 = vmatpush1.msra.mxu0 0.0
    %2370 = vmatprep.subr.mxu0 0.0
    %2371 = vmatpush1.msra.mxu0 0.0
    %2372 = vmatprep.subr.mxu0 0.0
    %2373 = vmatpush1.msra.mxu0 0.0
    %2374 = vmatprep.subr.mxu0 0.0
    %2375 = vmatpush1.msra.mxu0 0.0
    %2376 = vmatprep.subr.mxu0 0.0
    %2377 = vmatpush1.msra.mxu0 0.0
    %2378 = vmatprep.subr.mxu0 0.0
    %2379 = vmatpush1.msra.mxu0 0.0
    %2380 = vmatprep.subr.mxu0 0.0
    %2381 = vmatpush1.msra.mxu0 0.0
    %2382 = vmatprep.subr.mxu0 0.0
    %2383 = vmatpush1.msra.mxu0 0.0
    %2384 = vmatprep.mubr.f32.mxu0 0.0
    %2385 = vmatmul.mubr.f32.gmra.mrb[0].mxu0 %v2315
    %v2386 = vpop.f32.mrb[0].mxu0
    %v2387 = vadd.f32 %v2313, %v2386
    %v2388 = vpop.f32.mrb[0].mxu0
    %2389 = vmatprep.mubr.f32.mxu0 0.0
    %2390 = vmatmul.mubr.f32.gmra.mrb[0].mxu0 %v2318
    %v2391 = vpop.f32.mrb[0].mxu0
    %v2392 = vadd.f32 %v2313, %v2391
    %v2393 = vpop.f32.mrb[0].mxu0
    %2394 = vdwg.mxu0
    %2396 = vrot.lane.b32.xlu0 %v2387, 120
    %v2397 = vpop.permute.xlu0 %2396
    %2398 = vrot.lane.b32.xlu0 %v2387, 112
    %v2399 = vpop.permute.xlu0 %2398
    %2400 = vrot.lane.b32.xlu0 %v2387, 104
    %v2401 = vpop.permute.xlu0 %2400
    %2402 = vrot.lane.b32.xlu0 %v2387, 96
    %v2403 = vpop.permute.xlu0 %2402
    %v2404 = vsel %vm329, %v2387, 0
    %v2406 = vsel %vm329, %v2403, 0
    %2408 = vmatprep.subr.mxu0 0.0
    %2409 = vmatpush1.xpose.msra.mxu0 %v2406
    %2410 = vmatprep.subr.mxu0 0.0
    %2411 = vmatpush1.xpose.msra.mxu0 0.0
    %2412 = vmatprep.subr.mxu0 0.0
    %2413 = vmatpush1.xpose.msra.mxu0 0.0
    %2414 = vmatprep.subr.mxu0 0.0
    %2415 = vmatpush1.xpose.msra.mxu0 0.0
    %2416 = vmatprep.subr.mxu0 0.0
    %2417 = vmatpush1.xpose.msra.mxu0 0.0
    %2418 = vmatprep.subr.mxu0 0.0
    %2419 = vmatpush1.xpose.msra.mxu0 0.0
    %2420 = vmatprep.subr.mxu0 0.0
    %2421 = vmatpush1.xpose.msra.mxu0 0.0
    %2422 = vmatprep.subr.mxu0 0.0
    %2423 = vmatpush1.xpose.msra.mxu0 0.0
    %2424 = vmatprep.subr.mxu0 0.0
    %2425 = vmatpush1.xpose.msra.mxu0 0.0
    %2426 = vmatprep.subr.mxu0 0.0
    %2427 = vmatpush1.xpose.msra.mxu0 0.0
    %2428 = vmatprep.subr.mxu0 0.0
    %2429 = vmatpush1.xpose.msra.mxu0 0.0
    %2430 = vmatprep.subr.mxu0 0.0
    %2431 = vmatpush1.xpose.msra.mxu0 0.0
    %2432 = vmatprep.subr.mxu0 0.0
    %2433 = vmatpush1.xpose.msra.mxu0 0.0
    %2434 = vmatprep.subr.mxu0 0.0
    %2435 = vmatpush1.xpose.msra.mxu0 0.0
    %2436 = vmatprep.subr.mxu0 0.0
    %2437 = vmatpush1.xpose.msra.mxu0 0.0
    %2438 = vmatprep.subr.mxu0 0.0
    %2439 = vmatpush1.xpose.msra.mxu0 0.0
    %2440 = vmatprep.subr.mxu0 0.0
    %2441 = vmatpush1.xpose.msra.mxu0 0.0
    %2442 = vmatprep.subr.mxu0 0.0
    %2443 = vmatpush1.xpose.msra.mxu0 0.0
    %2444 = vmatprep.subr.mxu0 0.0
    %2445 = vmatpush1.xpose.msra.mxu0 0.0
    %2446 = vmatprep.subr.mxu0 0.0
    %2447 = vmatpush1.xpose.msra.mxu0 0.0
    %2448 = vmatprep.subr.mxu0 0.0
    %2449 = vmatpush1.xpose.msra.mxu0 0.0
    %2450 = vmatprep.subr.mxu0 0.0
    %2451 = vmatpush1.xpose.msra.mxu0 0.0
    %2452 = vmatprep.subr.mxu0 0.0
    %2453 = vmatpush1.xpose.msra.mxu0 0.0
    %2454 = vmatprep.subr.mxu0 0.0
    %2455 = vmatpush1.xpose.msra.mxu0 0.0
    %2456 = vmatprep.subr.mxu0 0.0
    %2457 = vmatpush1.xpose.msra.mxu0 0.0
    %2458 = vmatprep.subr.mxu0 0.0
    %2459 = vmatpush1.xpose.msra.mxu0 0.0
    %2460 = vmatprep.subr.mxu0 0.0
    %2461 = vmatpush1.xpose.msra.mxu0 0.0
    %2462 = vmatprep.subr.mxu0 0.0
    %2463 = vmatpush1.xpose.msra.mxu0 0.0
    %2464 = vmatprep.subr.mxu0 0.0
    %2465 = vmatpush1.xpose.msra.mxu0 0.0
    %2466 = vmatprep.subr.mxu0 0.0
    %2467 = vmatpush1.xpose.msra.mxu0 0.0
    %2468 = vmatprep.subr.mxu0 0.0
    %2469 = vmatpush1.xpose.msra.mxu0 0.0
    %2470 = vmatprep.subr.mxu0 0.0
    %2471 = vmatpush1.xpose.msra.mxu0 0.0
    %2472 = vmatprep.mubr.f32.mxu0 0.0
    %2473 = vmatmul.mubr.f32.gmra.mrb[0].mxu0 %v2404
    %v2474 = vpop.f32.mrb[0].mxu0
    %v2475 = vadd.f32 0.0, %v2474
    %v2476 = vpop.f32.mrb[0].mxu0
    %2477 = vdwg.mxu0
    %2478 = vrot.lane.b32.xlu0 %v2397, 96
    %v2479 = vpop.permute.xlu0 %2478
    %v2480 = vsel %vm329, %v2397, 0
    %v2482 = vsel %vm329, %v2479, 0
    %2484 = vmatprep.subr.mxu0 0.0
    %2485 = vmatpush1.xpose.msra.mxu0 %v2482
    %2486 = vmatprep.subr.mxu0 0.0
    %2487 = vmatpush1.xpose.msra.mxu0 0.0
    %2488 = vmatprep.subr.mxu0 0.0
    %2489 = vmatpush1.xpose.msra.mxu0 0.0
    %2490 = vmatprep.subr.mxu0 0.0
    %2491 = vmatpush1.xpose.msra.mxu0 0.0
    %2492 = vmatprep.subr.mxu0 0.0
    %2493 = vmatpush1.xpose.msra.mxu0 0.0
    %2494 = vmatprep.subr.mxu0 0.0
    %2495 = vmatpush1.xpose.msra.mxu0 0.0
    %2496 = vmatprep.subr.mxu0 0.0
    %2497 = vmatpush1.xpose.msra.mxu0 0.0
    %2498 = vmatprep.subr.mxu0 0.0
    %2499 = vmatpush1.xpose.msra.mxu0 0.0
    %2500 = vmatprep.subr.mxu0 0.0
    %2501 = vmatpush1.xpose.msra.mxu0 0.0
    %2502 = vmatprep.subr.mxu0 0.0
    %2503 = vmatpush1.xpose.msra.mxu0 0.0
    %2504 = vmatprep.subr.mxu0 0.0
    %2505 = vmatpush1.xpose.msra.mxu0 0.0
    %2506 = vmatprep.subr.mxu0 0.0
    %2507 = vmatpush1.xpose.msra.mxu0 0.0
    %2508 = vmatprep.subr.mxu0 0.0
    %2509 = vmatpush1.xpose.msra.mxu0 0.0
    %2510 = vmatprep.subr.mxu0 0.0
    %2511 = vmatpush1.xpose.msra.mxu0 0.0
    %2512 = vmatprep.subr.mxu0 0.0
    %2513 = vmatpush1.xpose.msra.mxu0 0.0
    %2514 = vmatprep.subr.mxu0 0.0
    %2515 = vmatpush1.xpose.msra.mxu0 0.0
    %2516 = vmatprep.subr.mxu0 0.0
    %2517 = vmatpush1.xpose.msra.mxu0 0.0
    %2518 = vmatprep.subr.mxu0 0.0
    %2519 = vmatpush1.xpose.msra.mxu0 0.0
    %2520 = vmatprep.subr.mxu0 0.0
    %2521 = vmatpush1.xpose.msra.mxu0 0.0
    %2522 = vmatprep.subr.mxu0 0.0
    %2523 = vmatpush1.xpose.msra.mxu0 0.0
    %2524 = vmatprep.subr.mxu0 0.0
    %2525 = vmatpush1.xpose.msra.mxu0 0.0
    %2526 = vmatprep.subr.mxu0 0.0
    %2527 = vmatpush1.xpose.msra.mxu0 0.0
    %2528 = vmatprep.subr.mxu0 0.0
    %2529 = vmatpush1.xpose.msra.mxu0 0.0
    %2530 = vmatprep.subr.mxu0 0.0
    %2531 = vmatpush1.xpose.msra.mxu0 0.0
    %2532 = vmatprep.subr.mxu0 0.0
    %2533 = vmatpush1.xpose.msra.mxu0 0.0
    %2534 = vmatprep.subr.mxu0 0.0
    %2535 = vmatpush1.xpose.msra.mxu0 0.0
    %2536 = vmatprep.subr.mxu0 0.0
    %2537 = vmatpush1.xpose.msra.mxu0 0.0
    %2538 = vmatprep.subr.mxu0 0.0
    %2539 = vmatpush1.xpose.msra.mxu0 0.0
    %2540 = vmatprep.subr.mxu0 0.0
    %2541 = vmatpush1.xpose.msra.mxu0 0.0
    %2542 = vmatprep.subr.mxu0 0.0
    %2543 = vmatpush1.xpose.msra.mxu0 0.0
    %2544 = vmatprep.subr.mxu0 0.0
    %2545 = vmatpush1.xpose.msra.mxu0 0.0
    %2546 = vmatprep.subr.mxu0 0.0
    %2547 = vmatpush1.xpose.msra.mxu0 0.0
    %2548 = vmatprep.mubr.f32.mxu0 0.0
    %2549 = vmatmul.mubr.f32.gmra.mrb[0].mxu0 %v2480
    %v2550 = vpop.f32.mrb[0].mxu0
    %v2551 = vadd.f32 0.0, %v2550
    %v2552 = vpop.f32.mrb[0].mxu0
    %2553 = vdwg.mxu0
    %2554 = vrot.lane.b32.xlu0 %v2399, 96
    %v2555 = vpop.permute.xlu0 %2554
    %v2556 = vsel %vm329, %v2399, 0
    %v2558 = vsel %vm329, %v2555, 0
    %2560 = vmatprep.subr.mxu0 0.0
    %2561 = vmatpush1.xpose.msra.mxu0 %v2558
    %2562 = vmatprep.subr.mxu0 0.0
    %2563 = vmatpush1.xpose.msra.mxu0 0.0
    %2564 = vmatprep.subr.mxu0 0.0
    %2565 = vmatpush1.xpose.msra.mxu0 0.0
    %2566 = vmatprep.subr.mxu0 0.0
    %2567 = vmatpush1.xpose.msra.mxu0 0.0
    %2568 = vmatprep.subr.mxu0 0.0
    %2569 = vmatpush1.xpose.msra.mxu0 0.0
    %2570 = vmatprep.subr.mxu0 0.0
    %2571 = vmatpush1.xpose.msra.mxu0 0.0
    %2572 = vmatprep.subr.mxu0 0.0
    %2573 = vmatpush1.xpose.msra.mxu0 0.0
    %2574 = vmatprep.subr.mxu0 0.0
    %2575 = vmatpush1.xpose.msra.mxu0 0.0
    %2576 = vmatprep.subr.mxu0 0.0
    %2577 = vmatpush1.xpose.msra.mxu0 0.0
    %2578 = vmatprep.subr.mxu0 0.0
    %2579 = vmatpush1.xpose.msra.mxu0 0.0
    %2580 = vmatprep.subr.mxu0 0.0
    %2581 = vmatpush1.xpose.msra.mxu0 0.0
    %2582 = vmatprep.subr.mxu0 0.0
    %2583 = vmatpush1.xpose.msra.mxu0 0.0
    %2584 = vmatprep.subr.mxu0 0.0
    %2585 = vmatpush1.xpose.msra.mxu0 0.0
    %2586 = vmatprep.subr.mxu0 0.0
    %2587 = vmatpush1.xpose.msra.mxu0 0.0
    %2588 = vmatprep.subr.mxu0 0.0
    %2589 = vmatpush1.xpose.msra.mxu0 0.0
    %2590 = vmatprep.subr.mxu0 0.0
    %2591 = vmatpush1.xpose.msra.mxu0 0.0
    %2592 = vmatprep.subr.mxu0 0.0
    %2593 = vmatpush1.xpose.msra.mxu0 0.0
    %2594 = vmatprep.subr.mxu0 0.0
    %2595 = vmatpush1.xpose.msra.mxu0 0.0
    %2596 = vmatprep.subr.mxu0 0.0
    %2597 = vmatpush1.xpose.msra.mxu0 0.0
    %2598 = vmatprep.subr.mxu0 0.0
    %2599 = vmatpush1.xpose.msra.mxu0 0.0
    %2600 = vmatprep.subr.mxu0 0.0
    %2601 = vmatpush1.xpose.msra.mxu0 0.0
    %2602 = vmatprep.subr.mxu0 0.0
    %2603 = vmatpush1.xpose.msra.mxu0 0.0
    %2604 = vmatprep.subr.mxu0 0.0
    %2605 = vmatpush1.xpose.msra.mxu0 0.0
    %2606 = vmatprep.subr.mxu0 0.0
    %2607 = vmatpush1.xpose.msra.mxu0 0.0
    %2608 = vmatprep.subr.mxu0 0.0
    %2609 = vmatpush1.xpose.msra.mxu0 0.0
    %2610 = vmatprep.subr.mxu0 0.0
    %2611 = vmatpush1.xpose.msra.mxu0 0.0
    %2612 = vmatprep.subr.mxu0 0.0
    %2613 = vmatpush1.xpose.msra.mxu0 0.0
    %2614 = vmatprep.subr.mxu0 0.0
    %2615 = vmatpush1.xpose.msra.mxu0 0.0
    %2616 = vmatprep.subr.mxu0 0.0
    %2617 = vmatpush1.xpose.msra.mxu0 0.0
    %2618 = vmatprep.subr.mxu0 0.0
    %2619 = vmatpush1.xpose.msra.mxu0 0.0
    %2620 = vmatprep.subr.mxu0 0.0
    %2621 = vmatpush1.xpose.msra.mxu0 0.0
    %2622 = vmatprep.subr.mxu0 0.0
    %2623 = vmatpush1.xpose.msra.mxu0 0.0
    %2624 = vmatprep.mubr.f32.mxu0 0.0
    %2625 = vmatmul.mubr.f32.gmra.mrb[0].mxu0 %v2556
    %v2626 = vpop.f32.mrb[0].mxu0
    %v2627 = vadd.f32 0.0, %v2626
    %v2628 = vpop.f32.mrb[0].mxu0
    %2629 = vdwg.mxu0
    %2630 = vrot.lane.b32.xlu0 %v2401, 96
    %v2631 = vpop.permute.xlu0 %2630
    %v2632 = vsel %vm329, %v2401, 0
    %v2634 = vsel %vm329, %v2631, 0
    %2636 = vmatprep.subr.mxu0 0.0
    %2637 = vmatpush1.xpose.msra.mxu0 %v2634
    %2638 = vmatprep.subr.mxu0 0.0
    %2639 = vmatpush1.xpose.msra.mxu0 0.0
    %2640 = vmatprep.subr.mxu0 0.0
    %2641 = vmatpush1.xpose.msra.mxu0 0.0
    %2642 = vmatprep.subr.mxu0 0.0
    %2643 = vmatpush1.xpose.msra.mxu0 0.0
    %2644 = vmatprep.subr.mxu0 0.0
    %2645 = vmatpush1.xpose.msra.mxu0 0.0
    %2646 = vmatprep.subr.mxu0 0.0
    %2647 = vmatpush1.xpose.msra.mxu0 0.0
    %2648 = vmatprep.subr.mxu0 0.0
    %2649 = vmatpush1.xpose.msra.mxu0 0.0
    %2650 = vmatprep.subr.mxu0 0.0
    %2651 = vmatpush1.xpose.msra.mxu0 0.0
    %2652 = vmatprep.subr.mxu0 0.0
    %2653 = vmatpush1.xpose.msra.mxu0 0.0
    %2654 = vmatprep.subr.mxu0 0.0
    %2655 = vmatpush1.xpose.msra.mxu0 0.0
    %2656 = vmatprep.subr.mxu0 0.0
    %2657 = vmatpush1.xpose.msra.mxu0 0.0
    %2658 = vmatprep.subr.mxu0 0.0
    %2659 = vmatpush1.xpose.msra.mxu0 0.0
    %2660 = vmatprep.subr.mxu0 0.0
    %2661 = vmatpush1.xpose.msra.mxu0 0.0
    %2662 = vmatprep.subr.mxu0 0.0
    %2663 = vmatpush1.xpose.msra.mxu0 0.0
    %2664 = vmatprep.subr.mxu0 0.0
    %2665 = vmatpush1.xpose.msra.mxu0 0.0
    %2666 = vmatprep.subr.mxu0 0.0
    %2667 = vmatpush1.xpose.msra.mxu0 0.0
    %2668 = vmatprep.subr.mxu0 0.0
    %2669 = vmatpush1.xpose.msra.mxu0 0.0
    %2670 = vmatprep.subr.mxu0 0.0
    %2671 = vmatpush1.xpose.msra.mxu0 0.0
    %2672 = vmatprep.subr.mxu0 0.0
    %2673 = vmatpush1.xpose.msra.mxu0 0.0
    %2674 = vmatprep.subr.mxu0 0.0
    %2675 = vmatpush1.xpose.msra.mxu0 0.0
    %2676 = vmatprep.subr.mxu0 0.0
    %2677 = vmatpush1.xpose.msra.mxu0 0.0
    %2678 = vmatprep.subr.mxu0 0.0
    %2679 = vmatpush1.xpose.msra.mxu0 0.0
    %2680 = vmatprep.subr.mxu0 0.0
    %2681 = vmatpush1.xpose.msra.mxu0 0.0
    %2682 = vmatprep.subr.mxu0 0.0
    %2683 = vmatpush1.xpose.msra.mxu0 0.0
    %2684 = vmatprep.subr.mxu0 0.0
    %2685 = vmatpush1.xpose.msra.mxu0 0.0
    %2686 = vmatprep.subr.mxu0 0.0
    %2687 = vmatpush1.xpose.msra.mxu0 0.0
    %2688 = vmatprep.subr.mxu0 0.0
    %2689 = vmatpush1.xpose.msra.mxu0 0.0
    %2690 = vmatprep.subr.mxu0 0.0
    %2691 = vmatpush1.xpose.msra.mxu0 0.0
    %2692 = vmatprep.subr.mxu0 0.0
    %2693 = vmatpush1.xpose.msra.mxu0 0.0
    %2694 = vmatprep.subr.mxu0 0.0
    %2695 = vmatpush1.xpose.msra.mxu0 0.0
    %2696 = vmatprep.subr.mxu0 0.0
    %2697 = vmatpush1.xpose.msra.mxu0 0.0
    %2698 = vmatprep.subr.mxu0 0.0
    %2699 = vmatpush1.xpose.msra.mxu0 0.0
    %2700 = vmatprep.mubr.f32.mxu0 0.0
    %2701 = vmatmul.mubr.f32.gmra.mrb[0].mxu0 %v2632
    %v2702 = vpop.f32.mrb[0].mxu0
    %v2703 = vadd.f32 0.0, %v2702
    %v2704 = vpop.f32.mrb[0].mxu0
    %2705 = vdwg.mxu0
    %v2706 = vmul.f32 %v2475, 0.35355338
    %v2707 = vmul.f32 %v2551, 0.35355338
    %v2708 = vmul.f32 %v2627, 0.35355338
    %v2709 = vmul.f32 %v2703, 0.35355338
    %v2710 = vadd.f32 %v2706, %v400
    %v2711 = vadd.f32 %v2707, %v400
    %v2712 = vadd.f32 %v2708, %v400
    %v2713 = vadd.f32 %v2709, %v400
    %v2714 = vsel %vm329, %v2710, -inf
    %2715 = vmax.xlane.f32.xlu0 %v2714
    %v2716 = vpop.xlane.xlu0 %2715
    %v2717 = vsel %vm329, %v2711, -inf
    %2718 = vmax.xlane.f32.xlu0 %v2717
    %v2719 = vpop.xlane.xlu0 %2718
    %v2720 = vsel %vm329, %v2712, -inf
    %2721 = vmax.xlane.f32.xlu0 %v2720
    %v2722 = vpop.xlane.xlu0 %2721
    %v2723 = vsel %vm329, %v2713, -inf
    %2724 = vmax.xlane.f32.xlu0 %v2723
    %v2725 = vpop.xlane.xlu0 %2724
    %v2726 = vsub.f32 %v2710, %v2716
    %v2727 = vsub.f32 %v2711, %v2719
    %v2728 = vsub.f32 %v2712, %v2722
    %v2729 = vsub.f32 %v2713, %v2725
    %v2730 = vmul.f32 %v2726, 1.442695
    %v2731 = vpow.pop %v2730
    %v2732 = vmul.f32 %v2727, 1.442695
    %v2733 = vpow.pop %v2732
    %v2734 = vmul.f32 %v2728, 1.442695
    %v2735 = vpow.pop %v2734
    %v2736 = vmul.f32 %v2729, 1.442695
    %v2737 = vpow.pop %v2736
    %v2738 = vsel %vm329, %v2731, 0.0
    %2739 = vadd.xlane.f32.xlu0 %v2738
    %v2740 = vpop.xlane.xlu0 %2739
    %v2741 = vsel %vm329, %v2733, 0.0
    %2742 = vadd.xlane.f32.xlu0 %v2741
    %v2743 = vpop.xlane.xlu0 %2742
    %v2744 = vsel %vm329, %v2735, 0.0
    %2745 = vadd.xlane.f32.xlu0 %v2744
    %v2746 = vpop.xlane.xlu0 %2745
    %v2747 = vsel %vm329, %v2737, 0.0
    %2748 = vadd.xlane.f32.xlu0 %v2747
    %v2749 = vpop.xlane.xlu0 %2748
    %v2750 = vrcp.pop %v2740
    %v2751 = vmul.f32 %v2731, %v2750
    %v2752 = vrcp.pop %v2743
    %v2753 = vmul.f32 %v2733, %v2752
    %v2754 = vrcp.pop %v2746
    %v2755 = vmul.f32 %v2735, %v2754
    %v2756 = vrcp.pop %v2749
    %v2757 = vmul.f32 %v2737, %v2756
    %2758 = vrot.lane.b32.xlu0 %v2387, 64
    %v2759 = vpop.permute.xlu0 %2758
    %v2762 = vsel %vm329, %v2751, 0
    %2764 = vmatprep.subr.mxu0 0.0
    %2765 = vmatpush1.msra.mxu0 %v2759
    %2766 = vmatprep.subr.mxu0 0.0
    %2767 = vmatpush1.msra.mxu0 0.0
    %2768 = vmatprep.subr.mxu0 0.0
    %2769 = vmatpush1.msra.mxu0 0.0
    %2770 = vmatprep.subr.mxu0 0.0
    %2771 = vmatpush1.msra.mxu0 0.0
    %2772 = vmatprep.subr.mxu0 0.0
    %2773 = vmatpush1.msra.mxu0 0.0
    %2774 = vmatprep.subr.mxu0 0.0
    %2775 = vmatpush1.msra.mxu0 0.0
    %2776 = vmatprep.subr.mxu0 0.0
    %2777 = vmatpush1.msra.mxu0 0.0
    %2778 = vmatprep.subr.mxu0 0.0
    %2779 = vmatpush1.msra.mxu0 0.0
    %2780 = vmatprep.subr.mxu0 0.0
    %2781 = vmatpush1.msra.mxu0 0.0
    %2782 = vmatprep.subr.mxu0 0.0
    %2783 = vmatpush1.msra.mxu0 0.0
    %2784 = vmatprep.subr.mxu0 0.0
    %2785 = vmatpush1.msra.mxu0 0.0
    %2786 = vmatprep.subr.mxu0 0.0
    %2787 = vmatpush1.msra.mxu0 0.0
    %2788 = vmatprep.subr.mxu0 0.0
    %2789 = vmatpush1.msra.mxu0 0.0
    %2790 = vmatprep.subr.mxu0 0.0
    %2791 = vmatpush1.msra.mxu0 0.0
    %2792 = vmatprep.subr.mxu0 0.0
    %2793 = vmatpush1.msra.mxu0 0.0
    %2794 = vmatprep.subr.mxu0 0.0
    %2795 = vmatpush1.msra.mxu0 0.0
    %2796 = vmatprep.subr.mxu0 0.0
    %2797 = vmatpush1.msra.mxu0 0.0
    %2798 = vmatprep.subr.mxu0 0.0
    %2799 = vmatpush1.msra.mxu0 0.0
    %2800 = vmatprep.subr.mxu0 0.0
    %2801 = vmatpush1.msra.mxu0 0.0
    %2802 = vmatprep.subr.mxu0 0.0
    %2803 = vmatpush1.msra.mxu0 0.0
    %2804 = vmatprep.subr.mxu0 0.0
    %2805 = vmatpush1.msra.mxu0 0.0
    %2806 = vmatprep.subr.mxu0 0.0
    %2807 = vmatpush1.msra.mxu0 0.0
    %2808 = vmatprep.subr.mxu0 0.0
    %2809 = vmatpush1.msra.mxu0 0.0
    %2810 = vmatprep.subr.mxu0 0.0
    %2811 = vmatpush1.msra.mxu0 0.0
    %2812 = vmatprep.subr.mxu0 0.0
    %2813 = vmatpush1.msra.mxu0 0.0
    %2814 = vmatprep.subr.mxu0 0.0
    %2815 = vmatpush1.msra.mxu0 0.0
    %2816 = vmatprep.subr.mxu0 0.0
    %2817 = vmatpush1.msra.mxu0 0.0
    %2818 = vmatprep.subr.mxu0 0.0
    %2819 = vmatpush1.msra.mxu0 0.0
    %2820 = vmatprep.subr.mxu0 0.0
    %2821 = vmatpush1.msra.mxu0 0.0
    %2822 = vmatprep.subr.mxu0 0.0
    %2823 = vmatpush1.msra.mxu0 0.0
    %2824 = vmatprep.subr.mxu0 0.0
    %2825 = vmatpush1.msra.mxu0 0.0
    %2826 = vmatprep.subr.mxu0 0.0
    %2827 = vmatpush1.msra.mxu0 0.0
    %2828 = vmatprep.mubr.f32.mxu0 0.0
    %2829 = vmatmul.mubr.f32.gmra.mrb[0].mxu0 %v2762
    %v2830 = vpop.f32.mrb[0].mxu0
    %v2831 = vadd.f32 0.0, %v2830
    %v2832 = vpop.f32.mrb[0].mxu0
    %2833 = vdwg.mxu0
    %2834 = vrot.lane.b32.xlu0 %v2397, 64
    %v2835 = vpop.permute.xlu0 %2834
    %v2838 = vsel %vm329, %v2753, 0
    %2840 = vmatprep.subr.mxu0 0.0
    %2841 = vmatpush1.msra.mxu0 %v2835
    %2842 = vmatprep.subr.mxu0 0.0
    %2843 = vmatpush1.msra.mxu0 0.0
    %2844 = vmatprep.subr.mxu0 0.0
    %2845 = vmatpush1.msra.mxu0 0.0
    %2846 = vmatprep.subr.mxu0 0.0
    %2847 = vmatpush1.msra.mxu0 0.0
    %2848 = vmatprep.subr.mxu0 0.0
    %2849 = vmatpush1.msra.mxu0 0.0
    %2850 = vmatprep.subr.mxu0 0.0
    %2851 = vmatpush1.msra.mxu0 0.0
    %2852 = vmatprep.subr.mxu0 0.0
    %2853 = vmatpush1.msra.mxu0 0.0
    %2854 = vmatprep.subr.mxu0 0.0
    %2855 = vmatpush1.msra.mxu0 0.0
    %2856 = vmatprep.subr.mxu0 0.0
    %2857 = vmatpush1.msra.mxu0 0.0
    %2858 = vmatprep.subr.mxu0 0.0
    %2859 = vmatpush1.msra.mxu0 0.0
    %2860 = vmatprep.subr.mxu0 0.0
    %2861 = vmatpush1.msra.mxu0 0.0
    %2862 = vmatprep.subr.mxu0 0.0
    %2863 = vmatpush1.msra.mxu0 0.0
    %2864 = vmatprep.subr.mxu0 0.0
    %2865 = vmatpush1.msra.mxu0 0.0
    %2866 = vmatprep.subr.mxu0 0.0
    %2867 = vmatpush1.msra.mxu0 0.0
    %2868 = vmatprep.subr.mxu0 0.0
    %2869 = vmatpush1.msra.mxu0 0.0
    %2870 = vmatprep.subr.mxu0 0.0
    %2871 = vmatpush1.msra.mxu0 0.0
    %2872 = vmatprep.subr.mxu0 0.0
    %2873 = vmatpush1.msra.mxu0 0.0
    %2874 = vmatprep.subr.mxu0 0.0
    %2875 = vmatpush1.msra.mxu0 0.0
    %2876 = vmatprep.subr.mxu0 0.0
    %2877 = vmatpush1.msra.mxu0 0.0
    %2878 = vmatprep.subr.mxu0 0.0
    %2879 = vmatpush1.msra.mxu0 0.0
    %2880 = vmatprep.subr.mxu0 0.0
    %2881 = vmatpush1.msra.mxu0 0.0
    %2882 = vmatprep.subr.mxu0 0.0
    %2883 = vmatpush1.msra.mxu0 0.0
    %2884 = vmatprep.subr.mxu0 0.0
    %2885 = vmatpush1.msra.mxu0 0.0
    %2886 = vmatprep.subr.mxu0 0.0
    %2887 = vmatpush1.msra.mxu0 0.0
    %2888 = vmatprep.subr.mxu0 0.0
    %2889 = vmatpush1.msra.mxu0 0.0
    %2890 = vmatprep.subr.mxu0 0.0
    %2891 = vmatpush1.msra.mxu0 0.0
    %2892 = vmatprep.subr.mxu0 0.0
    %2893 = vmatpush1.msra.mxu0 0.0
    %2894 = vmatprep.subr.mxu0 0.0
    %2895 = vmatpush1.msra.mxu0 0.0
    %2896 = vmatprep.subr.mxu0 0.0
    %2897 = vmatpush1.msra.mxu0 0.0
    %2898 = vmatprep.subr.mxu0 0.0
    %2899 = vmatpush1.msra.mxu0 0.0
    %2900 = vmatprep.subr.mxu0 0.0
    %2901 = vmatpush1.msra.mxu0 0.0
    %2902 = vmatprep.subr.mxu0 0.0
    %2903 = vmatpush1.msra.mxu0 0.0
    %2904 = vmatprep.mubr.f32.mxu0 0.0
    %2905 = vmatmul.mubr.f32.gmra.mrb[0].mxu0 %v2838
    %v2906 = vpop.f32.mrb[0].mxu0
    %v2907 = vadd.f32 0.0, %v2906
    %v2908 = vpop.f32.mrb[0].mxu0
    %2909 = vdwg.mxu0
    %2910 = vrot.lane.b32.xlu0 %v2399, 64
    %v2911 = vpop.permute.xlu0 %2910
    %v2914 = vsel %vm329, %v2755, 0
    %2916 = vmatprep.subr.mxu0 0.0
    %2917 = vmatpush1.msra.mxu0 %v2911
    %2918 = vmatprep.subr.mxu0 0.0
    %2919 = vmatpush1.msra.mxu0 0.0
    %2920 = vmatprep.subr.mxu0 0.0
    %2921 = vmatpush1.msra.mxu0 0.0
    %2922 = vmatprep.subr.mxu0 0.0
    %2923 = vmatpush1.msra.mxu0 0.0
    %2924 = vmatprep.subr.mxu0 0.0
    %2925 = vmatpush1.msra.mxu0 0.0
    %2926 = vmatprep.subr.mxu0 0.0
    %2927 = vmatpush1.msra.mxu0 0.0
    %2928 = vmatprep.subr.mxu0 0.0
    %2929 = vmatpush1.msra.mxu0 0.0
    %2930 = vmatprep.subr.mxu0 0.0
    %2931 = vmatpush1.msra.mxu0 0.0
    %2932 = vmatprep.subr.mxu0 0.0
    %2933 = vmatpush1.msra.mxu0 0.0
    %2934 = vmatprep.subr.mxu0 0.0
    %2935 = vmatpush1.msra.mxu0 0.0
    %2936 = vmatprep.subr.mxu0 0.0
    %2937 = vmatpush1.msra.mxu0 0.0
    %2938 = vmatprep.subr.mxu0 0.0
    %2939 = vmatpush1.msra.mxu0 0.0
    %2940 = vmatprep.subr.mxu0 0.0
    %2941 = vmatpush1.msra.mxu0 0.0
    %2942 = vmatprep.subr.mxu0 0.0
    %2943 = vmatpush1.msra.mxu0 0.0
    %2944 = vmatprep.subr.mxu0 0.0
    %2945 = vmatpush1.msra.mxu0 0.0
    %2946 = vmatprep.subr.mxu0 0.0
    %2947 = vmatpush1.msra.mxu0 0.0
    %2948 = vmatprep.subr.mxu0 0.0
    %2949 = vmatpush1.msra.mxu0 0.0
    %2950 = vmatprep.subr.mxu0 0.0
    %2951 = vmatpush1.msra.mxu0 0.0
    %2952 = vmatprep.subr.mxu0 0.0
    %2953 = vmatpush1.msra.mxu0 0.0
    %2954 = vmatprep.subr.mxu0 0.0
    %2955 = vmatpush1.msra.mxu0 0.0
    %2956 = vmatprep.subr.mxu0 0.0
    %2957 = vmatpush1.msra.mxu0 0.0
    %2958 = vmatprep.subr.mxu0 0.0
    %2959 = vmatpush1.msra.mxu0 0.0
    %2960 = vmatprep.subr.mxu0 0.0
    %2961 = vmatpush1.msra.mxu0 0.0
    %2962 = vmatprep.subr.mxu0 0.0
    %2963 = vmatpush1.msra.mxu0 0.0
    %2964 = vmatprep.subr.mxu0 0.0
    %2965 = vmatpush1.msra.mxu0 0.0
    %2966 = vmatprep.subr.mxu0 0.0
    %2967 = vmatpush1.msra.mxu0 0.0
    %2968 = vmatprep.subr.mxu0 0.0
    %2969 = vmatpush1.msra.mxu0 0.0
    %2970 = vmatprep.subr.mxu0 0.0
    %2971 = vmatpush1.msra.mxu0 0.0
    %2972 = vmatprep.subr.mxu0 0.0
    %2973 = vmatpush1.msra.mxu0 0.0
    %2974 = vmatprep.subr.mxu0 0.0
    %2975 = vmatpush1.msra.mxu0 0.0
    %2976 = vmatprep.subr.mxu0 0.0
    %2977 = vmatpush1.msra.mxu0 0.0
    %2978 = vmatprep.subr.mxu0 0.0
    %2979 = vmatpush1.msra.mxu0 0.0
    %2980 = vmatprep.mubr.f32.mxu0 0.0
    %2981 = vmatmul.mubr.f32.gmra.mrb[0].mxu0 %v2914
    %v2982 = vpop.f32.mrb[0].mxu0
    %v2983 = vadd.f32 0.0, %v2982
    %v2984 = vpop.f32.mrb[0].mxu0
    %2985 = vdwg.mxu0
    %2986 = vrot.lane.b32.xlu0 %v2401, 64
    %v2987 = vpop.permute.xlu0 %2986
    %v2990 = vsel %vm329, %v2757, 0
    %2992 = vmatprep.subr.mxu0 0.0
    %2993 = vmatpush1.msra.mxu0 %v2987
    %2994 = vmatprep.subr.mxu0 0.0
    %2995 = vmatpush1.msra.mxu0 0.0
    %2996 = vmatprep.subr.mxu0 0.0
    %2997 = vmatpush1.msra.mxu0 0.0
    %2998 = vmatprep.subr.mxu0 0.0
    %2999 = vmatpush1.msra.mxu0 0.0
    %3000 = vmatprep.subr.mxu0 0.0
    %3001 = vmatpush1.msra.mxu0 0.0
    %3002 = vmatprep.subr.mxu0 0.0
    %3003 = vmatpush1.msra.mxu0 0.0
    %3004 = vmatprep.subr.mxu0 0.0
    %3005 = vmatpush1.msra.mxu0 0.0
    %3006 = vmatprep.subr.mxu0 0.0
    %3007 = vmatpush1.msra.mxu0 0.0
    %3008 = vmatprep.subr.mxu0 0.0
    %3009 = vmatpush1.msra.mxu0 0.0
    %3010 = vmatprep.subr.mxu0 0.0
    %3011 = vmatpush1.msra.mxu0 0.0
    %3012 = vmatprep.subr.mxu0 0.0
    %3013 = vmatpush1.msra.mxu0 0.0
    %3014 = vmatprep.subr.mxu0 0.0
    %3015 = vmatpush1.msra.mxu0 0.0
    %3016 = vmatprep.subr.mxu0 0.0
    %3017 = vmatpush1.msra.mxu0 0.0
    %3018 = vmatprep.subr.mxu0 0.0
    %3019 = vmatpush1.msra.mxu0 0.0
    %3020 = vmatprep.subr.mxu0 0.0
    %3021 = vmatpush1.msra.mxu0 0.0
    %3022 = vmatprep.subr.mxu0 0.0
    %3023 = vmatpush1.msra.mxu0 0.0
    %3024 = vmatprep.subr.mxu0 0.0
    %3025 = vmatpush1.msra.mxu0 0.0
    %3026 = vmatprep.subr.mxu0 0.0
    %3027 = vmatpush1.msra.mxu0 0.0
    %3028 = vmatprep.subr.mxu0 0.0
    %3029 = vmatpush1.msra.mxu0 0.0
    %3030 = vmatprep.subr.mxu0 0.0
    %3031 = vmatpush1.msra.mxu0 0.0
    %3032 = vmatprep.subr.mxu0 0.0
    %3033 = vmatpush1.msra.mxu0 0.0
    %3034 = vmatprep.subr.mxu0 0.0
    %3035 = vmatpush1.msra.mxu0 0.0
    %3036 = vmatprep.subr.mxu0 0.0
    %3037 = vmatpush1.msra.mxu0 0.0
    %3038 = vmatprep.subr.mxu0 0.0
    %3039 = vmatpush1.msra.mxu0 0.0
    %3040 = vmatprep.subr.mxu0 0.0
    %3041 = vmatpush1.msra.mxu0 0.0
    %3042 = vmatprep.subr.mxu0 0.0
    %3043 = vmatpush1.msra.mxu0 0.0
    %3044 = vmatprep.subr.mxu0 0.0
    %3045 = vmatpush1.msra.mxu0 0.0
    %3046 = vmatprep.subr.mxu0 0.0
    %3047 = vmatpush1.msra.mxu0 0.0
    %3048 = vmatprep.subr.mxu0 0.0
    %3049 = vmatpush1.msra.mxu0 0.0
    %3050 = vmatprep.subr.mxu0 0.0
    %3051 = vmatpush1.msra.mxu0 0.0
    %3052 = vmatprep.subr.mxu0 0.0
    %3053 = vmatpush1.msra.mxu0 0.0
    %3054 = vmatprep.subr.mxu0 0.0
    %3055 = vmatpush1.msra.mxu0 0.0
    %3056 = vmatprep.mubr.f32.mxu0 0.0
    %3057 = vmatmul.mubr.f32.gmra.mrb[0].mxu0 %v2990
    %v3058 = vpop.f32.mrb[0].mxu0
    %v3059 = vadd.f32 0.0, %v3058
    %v3060 = vpop.f32.mrb[0].mxu0
    %3061 = vdwg.mxu0
    %3063 = vrot.lane.b32.xlu0 %v2907, 8
    %v3064 = vpop.permute.xlu0 %3063
    %3067 = vrot.lane.b32.xlu0 %v2983, 16
    %v3068 = vpop.permute.xlu0 %3067
    %3071 = vrot.lane.b32.xlu0 %v3059, 24
    %v3072 = vpop.permute.xlu0 %3071
    %v3074 = vsel %vm329, %v2831, %v3064
    %v3075 = vsel %vm1250, %v3074, %v3068
    %v3076 = vsel %vm1252, %v3075, %v3072
    %3078 = vrot.lane.b32.xlu0 %v2392, 120
    %v3079 = vpop.permute.xlu0 %3078
    %3080 = vrot.lane.b32.xlu0 %v2392, 112
    %v3081 = vpop.permute.xlu0 %3080
    %3082 = vrot.lane.b32.xlu0 %v2392, 104
    %v3083 = vpop.permute.xlu0 %3082
    %3084 = vrot.lane.b32.xlu0 %v2392, 96
    %v3085 = vpop.permute.xlu0 %3084
    %v3086 = vsel %vm329, %v2392, 0
    %v3088 = vsel %vm329, %v3085, 0
    %3090 = vmatprep.subr.mxu0 0.0
    %3091 = vmatpush1.xpose.msra.mxu0 %v3088
    %3092 = vmatprep.subr.mxu0 0.0
    %3093 = vmatpush1.xpose.msra.mxu0 0.0
    %3094 = vmatprep.subr.mxu0 0.0
    %3095 = vmatpush1.xpose.msra.mxu0 0.0
    %3096 = vmatprep.subr.mxu0 0.0
    %3097 = vmatpush1.xpose.msra.mxu0 0.0
    %3098 = vmatprep.subr.mxu0 0.0
    %3099 = vmatpush1.xpose.msra.mxu0 0.0
    %3100 = vmatprep.subr.mxu0 0.0
    %3101 = vmatpush1.xpose.msra.mxu0 0.0
    %3102 = vmatprep.subr.mxu0 0.0
    %3103 = vmatpush1.xpose.msra.mxu0 0.0
    %3104 = vmatprep.subr.mxu0 0.0
    %3105 = vmatpush1.xpose.msra.mxu0 0.0
    %3106 = vmatprep.subr.mxu0 0.0
    %3107 = vmatpush1.xpose.msra.mxu0 0.0
    %3108 = vmatprep.subr.mxu0 0.0
    %3109 = vmatpush1.xpose.msra.mxu0 0.0
    %3110 = vmatprep.subr.mxu0 0.0
    %3111 = vmatpush1.xpose.msra.mxu0 0.0
    %3112 = vmatprep.subr.mxu0 0.0
    %3113 = vmatpush1.xpose.msra.mxu0 0.0
    %3114 = vmatprep.subr.mxu0 0.0
    %3115 = vmatpush1.xpose.msra.mxu0 0.0
    %3116 = vmatprep.subr.mxu0 0.0
    %3117 = vmatpush1.xpose.msra.mxu0 0.0
    %3118 = vmatprep.subr.mxu0 0.0
    %3119 = vmatpush1.xpose.msra.mxu0 0.0
    %3120 = vmatprep.subr.mxu0 0.0
    %3121 = vmatpush1.xpose.msra.mxu0 0.0
    %3122 = vmatprep.subr.mxu0 0.0
    %3123 = vmatpush1.xpose.msra.mxu0 0.0
    %3124 = vmatprep.subr.mxu0 0.0
    %3125 = vmatpush1.xpose.msra.mxu0 0.0
    %3126 = vmatprep.subr.mxu0 0.0
    %3127 = vmatpush1.xpose.msra.mxu0 0.0
    %3128 = vmatprep.subr.mxu0 0.0
    %3129 = vmatpush1.xpose.msra.mxu0 0.0
    %3130 = vmatprep.subr.mxu0 0.0
    %3131 = vmatpush1.xpose.msra.mxu0 0.0
    %3132 = vmatprep.subr.mxu0 0.0
    %3133 = vmatpush1.xpose.msra.mxu0 0.0
    %3134 = vmatprep.subr.mxu0 0.0
    %3135 = vmatpush1.xpose.msra.mxu0 0.0
    %3136 = vmatprep.subr.mxu0 0.0
    %3137 = vmatpush1.xpose.msra.mxu0 0.0
    %3138 = vmatprep.subr.mxu0 0.0
    %3139 = vmatpush1.xpose.msra.mxu0 0.0
    %3140 = vmatprep.subr.mxu0 0.0
    %3141 = vmatpush1.xpose.msra.mxu0 0.0
    %3142 = vmatprep.subr.mxu0 0.0
    %3143 = vmatpush1.xpose.msra.mxu0 0.0
    %3144 = vmatprep.subr.mxu0 0.0
    %3145 = vmatpush1.xpose.msra.mxu0 0.0
    %3146 = vmatprep.subr.mxu0 0.0
    %3147 = vmatpush1.xpose.msra.mxu0 0.0
    %3148 = vmatprep.subr.mxu0 0.0
    %3149 = vmatpush1.xpose.msra.mxu0 0.0
    %3150 = vmatprep.subr.mxu0 0.0
    %3151 = vmatpush1.xpose.msra.mxu0 0.0
    %3152 = vmatprep.subr.mxu0 0.0
    %3153 = vmatpush1.xpose.msra.mxu0 0.0
    %3154 = vmatprep.mubr.f32.mxu0 0.0
    %3155 = vmatmul.mubr.f32.gmra.mrb[0].mxu0 %v3086
    %v3156 = vpop.f32.mrb[0].mxu0
    %v3157 = vadd.f32 0.0, %v3156
    %v3158 = vpop.f32.mrb[0].mxu0
    %3159 = vdwg.mxu0
    %3160 = vrot.lane.b32.xlu0 %v3079, 96
    %v3161 = vpop.permute.xlu0 %3160
    %v3162 = vsel %vm329, %v3079, 0
    %v3164 = vsel %vm329, %v3161, 0
    %3166 = vmatprep.subr.mxu0 0.0
    %3167 = vmatpush1.xpose.msra.mxu0 %v3164
    %3168 = vmatprep.subr.mxu0 0.0
    %3169 = vmatpush1.xpose.msra.mxu0 0.0
    %3170 = vmatprep.subr.mxu0 0.0
    %3171 = vmatpush1.xpose.msra.mxu0 0.0
    %3172 = vmatprep.subr.mxu0 0.0
    %3173 = vmatpush1.xpose.msra.mxu0 0.0
    %3174 = vmatprep.subr.mxu0 0.0
    %3175 = vmatpush1.xpose.msra.mxu0 0.0
    %3176 = vmatprep.subr.mxu0 0.0
    %3177 = vmatpush1.xpose.msra.mxu0 0.0
    %3178 = vmatprep.subr.mxu0 0.0
    %3179 = vmatpush1.xpose.msra.mxu0 0.0
    %3180 = vmatprep.subr.mxu0 0.0
    %3181 = vmatpush1.xpose.msra.mxu0 0.0
    %3182 = vmatprep.subr.mxu0 0.0
    %3183 = vmatpush1.xpose.msra.mxu0 0.0
    %3184 = vmatprep.subr.mxu0 0.0
    %3185 = vmatpush1.xpose.msra.mxu0 0.0
    %3186 = vmatprep.subr.mxu0 0.0
    %3187 = vmatpush1.xpose.msra.mxu0 0.0
    %3188 = vmatprep.subr.mxu0 0.0
    %3189 = vmatpush1.xpose.msra.mxu0 0.0
    %3190 = vmatprep.subr.mxu0 0.0
    %3191 = vmatpush1.xpose.msra.mxu0 0.0
    %3192 = vmatprep.subr.mxu0 0.0
    %3193 = vmatpush1.xpose.msra.mxu0 0.0
    %3194 = vmatprep.subr.mxu0 0.0
    %3195 = vmatpush1.xpose.msra.mxu0 0.0
    %3196 = vmatprep.subr.mxu0 0.0
    %3197 = vmatpush1.xpose.msra.mxu0 0.0
    %3198 = vmatprep.subr.mxu0 0.0
    %3199 = vmatpush1.xpose.msra.mxu0 0.0
    %3200 = vmatprep.subr.mxu0 0.0
    %3201 = vmatpush1.xpose.msra.mxu0 0.0
    %3202 = vmatprep.subr.mxu0 0.0
    %3203 = vmatpush1.xpose.msra.mxu0 0.0
    %3204 = vmatprep.subr.mxu0 0.0
    %3205 = vmatpush1.xpose.msra.mxu0 0.0
    %3206 = vmatprep.subr.mxu0 0.0
    %3207 = vmatpush1.xpose.msra.mxu0 0.0
    %3208 = vmatprep.subr.mxu0 0.0
    %3209 = vmatpush1.xpose.msra.mxu0 0.0
    %3210 = vmatprep.subr.mxu0 0.0
    %3211 = vmatpush1.xpose.msra.mxu0 0.0
    %3212 = vmatprep.subr.mxu0 0.0
    %3213 = vmatpush1.xpose.msra.mxu0 0.0
    %3214 = vmatprep.subr.mxu0 0.0
    %3215 = vmatpush1.xpose.msra.mxu0 0.0
    %3216 = vmatprep.subr.mxu0 0.0
    %3217 = vmatpush1.xpose.msra.mxu0 0.0
    %3218 = vmatprep.subr.mxu0 0.0
    %3219 = vmatpush1.xpose.msra.mxu0 0.0
    %3220 = vmatprep.subr.mxu0 0.0
    %3221 = vmatpush1.xpose.msra.mxu0 0.0
    %3222 = vmatprep.subr.mxu0 0.0
    %3223 = vmatpush1.xpose.msra.mxu0 0.0
    %3224 = vmatprep.subr.mxu0 0.0
    %3225 = vmatpush1.xpose.msra.mxu0 0.0
    %3226 = vmatprep.subr.mxu0 0.0
    %3227 = vmatpush1.xpose.msra.mxu0 0.0
    %3228 = vmatprep.subr.mxu0 0.0
    %3229 = vmatpush1.xpose.msra.mxu0 0.0
    %3230 = vmatprep.mubr.f32.mxu0 0.0
    %3231 = vmatmul.mubr.f32.gmra.mrb[0].mxu0 %v3162
    %v3232 = vpop.f32.mrb[0].mxu0
    %v3233 = vadd.f32 0.0, %v3232
    %v3234 = vpop.f32.mrb[0].mxu0
    %3235 = vdwg.mxu0
    %3236 = vrot.lane.b32.xlu0 %v3081, 96
    %v3237 = vpop.permute.xlu0 %3236
    %v3238 = vsel %vm329, %v3081, 0
    %v3240 = vsel %vm329, %v3237, 0
    %3242 = vmatprep.subr.mxu0 0.0
    %3243 = vmatpush1.xpose.msra.mxu0 %v3240
    %3244 = vmatprep.subr.mxu0 0.0
    %3245 = vmatpush1.xpose.msra.mxu0 0.0
    %3246 = vmatprep.subr.mxu0 0.0
    %3247 = vmatpush1.xpose.msra.mxu0 0.0
    %3248 = vmatprep.subr.mxu0 0.0
    %3249 = vmatpush1.xpose.msra.mxu0 0.0
    %3250 = vmatprep.subr.mxu0 0.0
    %3251 = vmatpush1.xpose.msra.mxu0 0.0
    %3252 = vmatprep.subr.mxu0 0.0
    %3253 = vmatpush1.xpose.msra.mxu0 0.0
    %3254 = vmatprep.subr.mxu0 0.0
    %3255 = vmatpush1.xpose.msra.mxu0 0.0
    %3256 = vmatprep.subr.mxu0 0.0
    %3257 = vmatpush1.xpose.msra.mxu0 0.0
    %3258 = vmatprep.subr.mxu0 0.0
    %3259 = vmatpush1.xpose.msra.mxu0 0.0
    %3260 = vmatprep.subr.mxu0 0.0
    %3261 = vmatpush1.xpose.msra.mxu0 0.0
    %3262 = vmatprep.subr.mxu0 0.0
    %3263 = vmatpush1.xpose.msra.mxu0 0.0
    %3264 = vmatprep.subr.mxu0 0.0
    %3265 = vmatpush1.xpose.msra.mxu0 0.0
    %3266 = vmatprep.subr.mxu0 0.0
    %3267 = vmatpush1.xpose.msra.mxu0 0.0
    %3268 = vmatprep.subr.mxu0 0.0
    %3269 = vmatpush1.xpose.msra.mxu0 0.0
    %3270 = vmatprep.subr.mxu0 0.0
    %3271 = vmatpush1.xpose.msra.mxu0 0.0
    %3272 = vmatprep.subr.mxu0 0.0
    %3273 = vmatpush1.xpose.msra.mxu0 0.0
    %3274 = vmatprep.subr.mxu0 0.0
    %3275 = vmatpush1.xpose.msra.mxu0 0.0
    %3276 = vmatprep.subr.mxu0 0.0
    %3277 = vmatpush1.xpose.msra.mxu0 0.0
    %3278 = vmatprep.subr.mxu0 0.0
    %3279 = vmatpush1.xpose.msra.mxu0 0.0
    %3280 = vmatprep.subr.mxu0 0.0
    %3281 = vmatpush1.xpose.msra.mxu0 0.0
    %3282 = vmatprep.subr.mxu0 0.0
    %3283 = vmatpush1.xpose.msra.mxu0 0.0
    %3284 = vmatprep.subr.mxu0 0.0
    %3285 = vmatpush1.xpose.msra.mxu0 0.0
    %3286 = vmatprep.subr.mxu0 0.0
    %3287 = vmatpush1.xpose.msra.mxu0 0.0
    %3288 = vmatprep.subr.mxu0 0.0
    %3289 = vmatpush1.xpose.msra.mxu0 0.0
    %3290 = vmatprep.subr.mxu0 0.0
    %3291 = vmatpush1.xpose.msra.mxu0 0.0
    %3292 = vmatprep.subr.mxu0 0.0
    %3293 = vmatpush1.xpose.msra.mxu0 0.0
    %3294 = vmatprep.subr.mxu0 0.0
    %3295 = vmatpush1.xpose.msra.mxu0 0.0
    %3296 = vmatprep.subr.mxu0 0.0
    %3297 = vmatpush1.xpose.msra.mxu0 0.0
    %3298 = vmatprep.subr.mxu0 0.0
    %3299 = vmatpush1.xpose.msra.mxu0 0.0
    %3300 = vmatprep.subr.mxu0 0.0
    %3301 = vmatpush1.xpose.msra.mxu0 0.0
    %3302 = vmatprep.subr.mxu0 0.0
    %3303 = vmatpush1.xpose.msra.mxu0 0.0
    %3304 = vmatprep.subr.mxu0 0.0
    %3305 = vmatpush1.xpose.msra.mxu0 0.0
    %3306 = vmatprep.mubr.f32.mxu0 0.0
    %3307 = vmatmul.mubr.f32.gmra.mrb[0].mxu0 %v3238
    %v3308 = vpop.f32.mrb[0].mxu0
    %v3309 = vadd.f32 0.0, %v3308
    %v3310 = vpop.f32.mrb[0].mxu0
    %3311 = vdwg.mxu0
    %3312 = vrot.lane.b32.xlu0 %v3083, 96
    %v3313 = vpop.permute.xlu0 %3312
    %v3314 = vsel %vm329, %v3083, 0
    %v3316 = vsel %vm329, %v3313, 0
    %3318 = vmatprep.subr.mxu0 0.0
    %3319 = vmatpush1.xpose.msra.mxu0 %v3316
    %3320 = vmatprep.subr.mxu0 0.0
    %3321 = vmatpush1.xpose.msra.mxu0 0.0
    %3322 = vmatprep.subr.mxu0 0.0
    %3323 = vmatpush1.xpose.msra.mxu0 0.0
    %3324 = vmatprep.subr.mxu0 0.0
    %3325 = vmatpush1.xpose.msra.mxu0 0.0
    %3326 = vmatprep.subr.mxu0 0.0
    %3327 = vmatpush1.xpose.msra.mxu0 0.0
    %3328 = vmatprep.subr.mxu0 0.0
    %3329 = vmatpush1.xpose.msra.mxu0 0.0
    %3330 = vmatprep.subr.mxu0 0.0
    %3331 = vmatpush1.xpose.msra.mxu0 0.0
    %3332 = vmatprep.subr.mxu0 0.0
    %3333 = vmatpush1.xpose.msra.mxu0 0.0
    %3334 = vmatprep.subr.mxu0 0.0
    %3335 = vmatpush1.xpose.msra.mxu0 0.0
    %3336 = vmatprep.subr.mxu0 0.0
    %3337 = vmatpush1.xpose.msra.mxu0 0.0
    %3338 = vmatprep.subr.mxu0 0.0
    %3339 = vmatpush1.xpose.msra.mxu0 0.0
    %3340 = vmatprep.subr.mxu0 0.0
    %3341 = vmatpush1.xpose.msra.mxu0 0.0
    %3342 = vmatprep.subr.mxu0 0.0
    %3343 = vmatpush1.xpose.msra.mxu0 0.0
    %3344 = vmatprep.subr.mxu0 0.0
    %3345 = vmatpush1.xpose.msra.mxu0 0.0
    %3346 = vmatprep.subr.mxu0 0.0
    %3347 = vmatpush1.xpose.msra.mxu0 0.0
    %3348 = vmatprep.subr.mxu0 0.0
    %3349 = vmatpush1.xpose.msra.mxu0 0.0
    %3350 = vmatprep.subr.mxu0 0.0
    %3351 = vmatpush1.xpose.msra.mxu0 0.0
    %3352 = vmatprep.subr.mxu0 0.0
    %3353 = vmatpush1.xpose.msra.mxu0 0.0
    %3354 = vmatprep.subr.mxu0 0.0
    %3355 = vmatpush1.xpose.msra.mxu0 0.0
    %3356 = vmatprep.subr.mxu0 0.0
    %3357 = vmatpush1.xpose.msra.mxu0 0.0
    %3358 = vmatprep.subr.mxu0 0.0
    %3359 = vmatpush1.xpose.msra.mxu0 0.0
    %3360 = vmatprep.subr.mxu0 0.0
    %3361 = vmatpush1.xpose.msra.mxu0 0.0
    %3362 = vmatprep.subr.mxu0 0.0
    %3363 = vmatpush1.xpose.msra.mxu0 0.0
    %3364 = vmatprep.subr.mxu0 0.0
    %3365 = vmatpush1.xpose.msra.mxu0 0.0
    %3366 = vmatprep.subr.mxu0 0.0
    %3367 = vmatpush1.xpose.msra.mxu0 0.0
    %3368 = vmatprep.subr.mxu0 0.0
    %3369 = vmatpush1.xpose.msra.mxu0 0.0
    %3370 = vmatprep.subr.mxu0 0.0
    %3371 = vmatpush1.xpose.msra.mxu0 0.0
    %3372 = vmatprep.subr.mxu0 0.0
    %3373 = vmatpush1.xpose.msra.mxu0 0.0
    %3374 = vmatprep.subr.mxu0 0.0
    %3375 = vmatpush1.xpose.msra.mxu0 0.0
    %3376 = vmatprep.subr.mxu0 0.0
    %3377 = vmatpush1.xpose.msra.mxu0 0.0
    %3378 = vmatprep.subr.mxu0 0.0
    %3379 = vmatpush1.xpose.msra.mxu0 0.0
    %3380 = vmatprep.subr.mxu0 0.0
    %3381 = vmatpush1.xpose.msra.mxu0 0.0
    %3382 = vmatprep.mubr.f32.mxu0 0.0
    %3383 = vmatmul.mubr.f32.gmra.mrb[0].mxu0 %v3314
    %v3384 = vpop.f32.mrb[0].mxu0
    %v3385 = vadd.f32 0.0, %v3384
    %v3386 = vpop.f32.mrb[0].mxu0
    %3387 = vdwg.mxu0
    %v3388 = vmul.f32 %v3157, 0.35355338
    %v3389 = vmul.f32 %v3233, 0.35355338
    %v3390 = vmul.f32 %v3309, 0.35355338
    %v3391 = vmul.f32 %v3385, 0.35355338
    %v3392 = vadd.f32 %v3388, %v477
    %v3393 = vadd.f32 %v3389, %v477
    %v3394 = vadd.f32 %v3390, %v477
    %v3395 = vadd.f32 %v3391, %v477
    %v3396 = vsel %vm329, %v3392, -inf
    %3397 = vmax.xlane.f32.xlu0 %v3396
    %v3398 = vpop.xlane.xlu0 %3397
    %v3399 = vsel %vm329, %v3393, -inf
    %3400 = vmax.xlane.f32.xlu0 %v3399
    %v3401 = vpop.xlane.xlu0 %3400
    %v3402 = vsel %vm329, %v3394, -inf
    %3403 = vmax.xlane.f32.xlu0 %v3402
    %v3404 = vpop.xlane.xlu0 %3403
    %v3405 = vsel %vm329, %v3395, -inf
    %3406 = vmax.xlane.f32.xlu0 %v3405
    %v3407 = vpop.xlane.xlu0 %3406
    %v3408 = vsub.f32 %v3392, %v3398
    %v3409 = vsub.f32 %v3393, %v3401
    %v3410 = vsub.f32 %v3394, %v3404
    %v3411 = vsub.f32 %v3395, %v3407
    %v3412 = vmul.f32 %v3408, 1.442695
    %v3413 = vpow.pop %v3412
    %v3414 = vmul.f32 %v3409, 1.442695
    %v3415 = vpow.pop %v3414
    %v3416 = vmul.f32 %v3410, 1.442695
    %v3417 = vpow.pop %v3416
    %v3418 = vmul.f32 %v3411, 1.442695
    %v3419 = vpow.pop %v3418
    %v3420 = vsel %vm329, %v3413, 0.0
    %3421 = vadd.xlane.f32.xlu0 %v3420
    %v3422 = vpop.xlane.xlu0 %3421
    %v3423 = vsel %vm329, %v3415, 0.0
    %3424 = vadd.xlane.f32.xlu0 %v3423
    %v3425 = vpop.xlane.xlu0 %3424
    %v3426 = vsel %vm329, %v3417, 0.0
    %3427 = vadd.xlane.f32.xlu0 %v3426
    %v3428 = vpop.xlane.xlu0 %3427
    %v3429 = vsel %vm329, %v3419, 0.0
    %3430 = vadd.xlane.f32.xlu0 %v3429
    %v3431 = vpop.xlane.xlu0 %3430
    %v3432 = vrcp.pop %v3422
    %v3433 = vmul.f32 %v3413, %v3432
    %v3434 = vrcp.pop %v3425
    %v3435 = vmul.f32 %v3415, %v3434
    %v3436 = vrcp.pop %v3428
    %v3437 = vmul.f32 %v3417, %v3436
    %v3438 = vrcp.pop %v3431
    %v3439 = vmul.f32 %v3419, %v3438
    %3440 = vrot.lane.b32.xlu0 %v2392, 64
    %v3441 = vpop.permute.xlu0 %3440
    %v3444 = vsel %vm329, %v3433, 0
    %3446 = vmatprep.subr.mxu0 0.0
    %3447 = vmatpush1.msra.mxu0 %v3441
    %3448 = vmatprep.subr.mxu0 0.0
    %3449 = vmatpush1.msra.mxu0 0.0
    %3450 = vmatprep.subr.mxu0 0.0
    %3451 = vmatpush1.msra.mxu0 0.0
    %3452 = vmatprep.subr.mxu0 0.0
    %3453 = vmatpush1.msra.mxu0 0.0
    %3454 = vmatprep.subr.mxu0 0.0
    %3455 = vmatpush1.msra.mxu0 0.0
    %3456 = vmatprep.subr.mxu0 0.0
    %3457 = vmatpush1.msra.mxu0 0.0
    %3458 = vmatprep.subr.mxu0 0.0
    %3459 = vmatpush1.msra.mxu0 0.0
    %3460 = vmatprep.subr.mxu0 0.0
    %3461 = vmatpush1.msra.mxu0 0.0
    %3462 = vmatprep.subr.mxu0 0.0
    %3463 = vmatpush1.msra.mxu0 0.0
    %3464 = vmatprep.subr.mxu0 0.0
    %3465 = vmatpush1.msra.mxu0 0.0
    %3466 = vmatprep.subr.mxu0 0.0
    %3467 = vmatpush1.msra.mxu0 0.0
    %3468 = vmatprep.subr.mxu0 0.0
    %3469 = vmatpush1.msra.mxu0 0.0
    %3470 = vmatprep.subr.mxu0 0.0
    %3471 = vmatpush1.msra.mxu0 0.0
    %3472 = vmatprep.subr.mxu0 0.0
    %3473 = vmatpush1.msra.mxu0 0.0
    %3474 = vmatprep.subr.mxu0 0.0
    %3475 = vmatpush1.msra.mxu0 0.0
    %3476 = vmatprep.subr.mxu0 0.0
    %3477 = vmatpush1.msra.mxu0 0.0
    %3478 = vmatprep.subr.mxu0 0.0
    %3479 = vmatpush1.msra.mxu0 0.0
    %3480 = vmatprep.subr.mxu0 0.0
    %3481 = vmatpush1.msra.mxu0 0.0
    %3482 = vmatprep.subr.mxu0 0.0
    %3483 = vmatpush1.msra.mxu0 0.0
    %3484 = vmatprep.subr.mxu0 0.0
    %3485 = vmatpush1.msra.mxu0 0.0
    %3486 = vmatprep.subr.mxu0 0.0
    %3487 = vmatpush1.msra.mxu0 0.0
    %3488 = vmatprep.subr.mxu0 0.0
    %3489 = vmatpush1.msra.mxu0 0.0
    %3490 = vmatprep.subr.mxu0 0.0
    %3491 = vmatpush1.msra.mxu0 0.0
    %3492 = vmatprep.subr.mxu0 0.0
    %3493 = vmatpush1.msra.mxu0 0.0
    %3494 = vmatprep.subr.mxu0 0.0
    %3495 = vmatpush1.msra.mxu0 0.0
    %3496 = vmatprep.subr.mxu0 0.0
    %3497 = vmatpush1.msra.mxu0 0.0
    %3498 = vmatprep.subr.mxu0 0.0
    %3499 = vmatpush1.msra.mxu0 0.0
    %3500 = vmatprep.subr.mxu0 0.0
    %3501 = vmatpush1.msra.mxu0 0.0
    %3502 = vmatprep.subr.mxu0 0.0
    %3503 = vmatpush1.msra.mxu0 0.0
    %3504 = vmatprep.subr.mxu0 0.0
    %3505 = vmatpush1.msra.mxu0 0.0
    %3506 = vmatprep.subr.mxu0 0.0
    %3507 = vmatpush1.msra.mxu0 0.0
    %3508 = vmatprep.subr.mxu0 0.0
    %3509 = vmatpush1.msra.mxu0 0.0
    %3510 = vmatprep.mubr.f32.mxu0 0.0
    %3511 = vmatmul.mubr.f32.gmra.mrb[0].mxu0 %v3444
    %v3512 = vpop.f32.mrb[0].mxu0
    %v3513 = vadd.f32 0.0, %v3512
    %v3514 = vpop.f32.mrb[0].mxu0
    %3515 = vdwg.mxu0
    %3516 = vrot.lane.b32.xlu0 %v3079, 64
    %v3517 = vpop.permute.xlu0 %3516
    %v3520 = vsel %vm329, %v3435, 0
    %3522 = vmatprep.subr.mxu0 0.0
    %3523 = vmatpush1.msra.mxu0 %v3517
    %3524 = vmatprep.subr.mxu0 0.0
    %3525 = vmatpush1.msra.mxu0 0.0
    %3526 = vmatprep.subr.mxu0 0.0
    %3527 = vmatpush1.msra.mxu0 0.0
    %3528 = vmatprep.subr.mxu0 0.0
    %3529 = vmatpush1.msra.mxu0 0.0
    %3530 = vmatprep.subr.mxu0 0.0
    %3531 = vmatpush1.msra.mxu0 0.0
    %3532 = vmatprep.subr.mxu0 0.0
    %3533 = vmatpush1.msra.mxu0 0.0
    %3534 = vmatprep.subr.mxu0 0.0
    %3535 = vmatpush1.msra.mxu0 0.0
    %3536 = vmatprep.subr.mxu0 0.0
    %3537 = vmatpush1.msra.mxu0 0.0
    %3538 = vmatprep.subr.mxu0 0.0
    %3539 = vmatpush1.msra.mxu0 0.0
    %3540 = vmatprep.subr.mxu0 0.0
    %3541 = vmatpush1.msra.mxu0 0.0
    %3542 = vmatprep.subr.mxu0 0.0
    %3543 = vmatpush1.msra.mxu0 0.0
    %3544 = vmatprep.subr.mxu0 0.0
    %3545 = vmatpush1.msra.mxu0 0.0
    %3546 = vmatprep.subr.mxu0 0.0
    %3547 = vmatpush1.msra.mxu0 0.0
    %3548 = vmatprep.subr.mxu0 0.0
    %3549 = vmatpush1.msra.mxu0 0.0
    %3550 = vmatprep.subr.mxu0 0.0
    %3551 = vmatpush1.msra.mxu0 0.0
    %3552 = vmatprep.subr.mxu0 0.0
    %3553 = vmatpush1.msra.mxu0 0.0
    %3554 = vmatprep.subr.mxu0 0.0
    %3555 = vmatpush1.msra.mxu0 0.0
    %3556 = vmatprep.subr.mxu0 0.0
    %3557 = vmatpush1.msra.mxu0 0.0
    %3558 = vmatprep.subr.mxu0 0.0
    %3559 = vmatpush1.msra.mxu0 0.0
    %3560 = vmatprep.subr.mxu0 0.0
    %3561 = vmatpush1.msra.mxu0 0.0
    %3562 = vmatprep.subr.mxu0 0.0
    %3563 = vmatpush1.msra.mxu0 0.0
    %3564 = vmatprep.subr.mxu0 0.0
    %3565 = vmatpush1.msra.mxu0 0.0
    %3566 = vmatprep.subr.mxu0 0.0
    %3567 = vmatpush1.msra.mxu0 0.0
    %3568 = vmatprep.subr.mxu0 0.0
    %3569 = vmatpush1.msra.mxu0 0.0
    %3570 = vmatprep.subr.mxu0 0.0
    %3571 = vmatpush1.msra.mxu0 0.0
    %3572 = vmatprep.subr.mxu0 0.0
    %3573 = vmatpush1.msra.mxu0 0.0
    %3574 = vmatprep.subr.mxu0 0.0
    %3575 = vmatpush1.msra.mxu0 0.0
    %3576 = vmatprep.subr.mxu0 0.0
    %3577 = vmatpush1.msra.mxu0 0.0
    %3578 = vmatprep.subr.mxu0 0.0
    %3579 = vmatpush1.msra.mxu0 0.0
    %3580 = vmatprep.subr.mxu0 0.0
    %3581 = vmatpush1.msra.mxu0 0.0
    %3582 = vmatprep.subr.mxu0 0.0
    %3583 = vmatpush1.msra.mxu0 0.0
    %3584 = vmatprep.subr.mxu0 0.0
    %3585 = vmatpush1.msra.mxu0 0.0
    %3586 = vmatprep.mubr.f32.mxu0 0.0
    %3587 = vmatmul.mubr.f32.gmra.mrb[0].mxu0 %v3520
    %v3588 = vpop.f32.mrb[0].mxu0
    %v3589 = vadd.f32 0.0, %v3588
    %v3590 = vpop.f32.mrb[0].mxu0
    %3591 = vdwg.mxu0
    %3592 = vrot.lane.b32.xlu0 %v3081, 64
    %v3593 = vpop.permute.xlu0 %3592
    %v3596 = vsel %vm329, %v3437, 0
    %3598 = vmatprep.subr.mxu0 0.0
    %3599 = vmatpush1.msra.mxu0 %v3593
    %3600 = vmatprep.subr.mxu0 0.0
    %3601 = vmatpush1.msra.mxu0 0.0
    %3602 = vmatprep.subr.mxu0 0.0
    %3603 = vmatpush1.msra.mxu0 0.0
    %3604 = vmatprep.subr.mxu0 0.0
    %3605 = vmatpush1.msra.mxu0 0.0
    %3606 = vmatprep.subr.mxu0 0.0
    %3607 = vmatpush1.msra.mxu0 0.0
    %3608 = vmatprep.subr.mxu0 0.0
    %3609 = vmatpush1.msra.mxu0 0.0
    %3610 = vmatprep.subr.mxu0 0.0
    %3611 = vmatpush1.msra.mxu0 0.0
    %3612 = vmatprep.subr.mxu0 0.0
    %3613 = vmatpush1.msra.mxu0 0.0
    %3614 = vmatprep.subr.mxu0 0.0
    %3615 = vmatpush1.msra.mxu0 0.0
    %3616 = vmatprep.subr.mxu0 0.0
    %3617 = vmatpush1.msra.mxu0 0.0
    %3618 = vmatprep.subr.mxu0 0.0
    %3619 = vmatpush1.msra.mxu0 0.0
    %3620 = vmatprep.subr.mxu0 0.0
    %3621 = vmatpush1.msra.mxu0 0.0
    %3622 = vmatprep.subr.mxu0 0.0
    %3623 = vmatpush1.msra.mxu0 0.0
    %3624 = vmatprep.subr.mxu0 0.0
    %3625 = vmatpush1.msra.mxu0 0.0
    %3626 = vmatprep.subr.mxu0 0.0
    %3627 = vmatpush1.msra.mxu0 0.0
    %3628 = vmatprep.subr.mxu0 0.0
    %3629 = vmatpush1.msra.mxu0 0.0
    %3630 = vmatprep.subr.mxu0 0.0
    %3631 = vmatpush1.msra.mxu0 0.0
    %3632 = vmatprep.subr.mxu0 0.0
    %3633 = vmatpush1.msra.mxu0 0.0
    %3634 = vmatprep.subr.mxu0 0.0
    %3635 = vmatpush1.msra.mxu0 0.0
    %3636 = vmatprep.subr.mxu0 0.0
    %3637 = vmatpush1.msra.mxu0 0.0
    %3638 = vmatprep.subr.mxu0 0.0
    %3639 = vmatpush1.msra.mxu0 0.0
    %3640 = vmatprep.subr.mxu0 0.0
    %3641 = vmatpush1.msra.mxu0 0.0
    %3642 = vmatprep.subr.mxu0 0.0
    %3643 = vmatpush1.msra.mxu0 0.0
    %3644 = vmatprep.subr.mxu0 0.0
    %3645 = vmatpush1.msra.mxu0 0.0
    %3646 = vmatprep.subr.mxu0 0.0
    %3647 = vmatpush1.msra.mxu0 0.0
    %3648 = vmatprep.subr.mxu0 0.0
    %3649 = vmatpush1.msra.mxu0 0.0
    %3650 = vmatprep.subr.mxu0 0.0
    %3651 = vmatpush1.msra.mxu0 0.0
    %3652 = vmatprep.subr.mxu0 0.0
    %3653 = vmatpush1.msra.mxu0 0.0
    %3654 = vmatprep.subr.mxu0 0.0
    %3655 = vmatpush1.msra.mxu0 0.0
    %3656 = vmatprep.subr.mxu0 0.0
    %3657 = vmatpush1.msra.mxu0 0.0
    %3658 = vmatprep.subr.mxu0 0.0
    %3659 = vmatpush1.msra.mxu0 0.0
    %3660 = vmatprep.subr.mxu0 0.0
    %3661 = vmatpush1.msra.mxu0 0.0
    %3662 = vmatprep.mubr.f32.mxu0 0.0
    %3663 = vmatmul.mubr.f32.gmra.mrb[0].mxu0 %v3596
    %v3664 = vpop.f32.mrb[0].mxu0
    %v3665 = vadd.f32 0.0, %v3664
    %v3666 = vpop.f32.mrb[0].mxu0
    %3667 = vdwg.mxu0
    %3668 = vrot.lane.b32.xlu0 %v3083, 64
    %v3669 = vpop.permute.xlu0 %3668
    %v3672 = vsel %vm329, %v3439, 0
    %3674 = vmatprep.subr.mxu0 0.0
    %3675 = vmatpush1.msra.mxu0 %v3669
    %3676 = vmatprep.subr.mxu0 0.0
    %3677 = vmatpush1.msra.mxu0 0.0
    %3678 = vmatprep.subr.mxu0 0.0
    %3679 = vmatpush1.msra.mxu0 0.0
    %3680 = vmatprep.subr.mxu0 0.0
    %3681 = vmatpush1.msra.mxu0 0.0
    %3682 = vmatprep.subr.mxu0 0.0
    %3683 = vmatpush1.msra.mxu0 0.0
    %3684 = vmatprep.subr.mxu0 0.0
    %3685 = vmatpush1.msra.mxu0 0.0
    %3686 = vmatprep.subr.mxu0 0.0
    %3687 = vmatpush1.msra.mxu0 0.0
    %3688 = vmatprep.subr.mxu0 0.0
    %3689 = vmatpush1.msra.mxu0 0.0
    %3690 = vmatprep.subr.mxu0 0.0
    %3691 = vmatpush1.msra.mxu0 0.0
    %3692 = vmatprep.subr.mxu0 0.0
    %3693 = vmatpush1.msra.mxu0 0.0
    %3694 = vmatprep.subr.mxu0 0.0
    %3695 = vmatpush1.msra.mxu0 0.0
    %3696 = vmatprep.subr.mxu0 0.0
    %3697 = vmatpush1.msra.mxu0 0.0
    %3698 = vmatprep.subr.mxu0 0.0
    %3699 = vmatpush1.msra.mxu0 0.0
    %3700 = vmatprep.subr.mxu0 0.0
    %3701 = vmatpush1.msra.mxu0 0.0
    %3702 = vmatprep.subr.mxu0 0.0
    %3703 = vmatpush1.msra.mxu0 0.0
    %3704 = vmatprep.subr.mxu0 0.0
    %3705 = vmatpush1.msra.mxu0 0.0
    %3706 = vmatprep.subr.mxu0 0.0
    %3707 = vmatpush1.msra.mxu0 0.0
    %3708 = vmatprep.subr.mxu0 0.0
    %3709 = vmatpush1.msra.mxu0 0.0
    %3710 = vmatprep.subr.mxu0 0.0
    %3711 = vmatpush1.msra.mxu0 0.0
    %3712 = vmatprep.subr.mxu0 0.0
    %3713 = vmatpush1.msra.mxu0 0.0
    %3714 = vmatprep.subr.mxu0 0.0
    %3715 = vmatpush1.msra.mxu0 0.0
    %3716 = vmatprep.subr.mxu0 0.0
    %3717 = vmatpush1.msra.mxu0 0.0
    %3718 = vmatprep.subr.mxu0 0.0
    %3719 = vmatpush1.msra.mxu0 0.0
    %3720 = vmatprep.subr.mxu0 0.0
    %3721 = vmatpush1.msra.mxu0 0.0
    %3722 = vmatprep.subr.mxu0 0.0
    %3723 = vmatpush1.msra.mxu0 0.0
    %3724 = vmatprep.subr.mxu0 0.0
    %3725 = vmatpush1.msra.mxu0 0.0
    %3726 = vmatprep.subr.mxu0 0.0
    %3727 = vmatpush1.msra.mxu0 0.0
    %3728 = vmatprep.subr.mxu0 0.0
    %3729 = vmatpush1.msra.mxu0 0.0
    %3730 = vmatprep.subr.mxu0 0.0
    %3731 = vmatpush1.msra.mxu0 0.0
    %3732 = vmatprep.subr.mxu0 0.0
    %3733 = vmatpush1.msra.mxu0 0.0
    %3734 = vmatprep.subr.mxu0 0.0
    %3735 = vmatpush1.msra.mxu0 0.0
    %3736 = vmatprep.subr.mxu0 0.0
    %3737 = vmatpush1.msra.mxu0 0.0
    %3738 = vmatprep.mubr.f32.mxu0 0.0
    %3739 = vmatmul.mubr.f32.gmra.mrb[0].mxu0 %v3672
    %v3740 = vpop.f32.mrb[0].mxu0
    %v3741 = vadd.f32 0.0, %v3740
    %v3742 = vpop.f32.mrb[0].mxu0
    %3743 = vdwg.mxu0
    %3745 = vrot.lane.b32.xlu0 %v3589, 8
    %v3746 = vpop.permute.xlu0 %3745
    %3749 = vrot.lane.b32.xlu0 %v3665, 16
    %v3750 = vpop.permute.xlu0 %3749
    %3753 = vrot.lane.b32.xlu0 %v3741, 24
    %v3754 = vpop.permute.xlu0 %3753
    %v3756 = vsel %vm329, %v3513, %v3746
    %v3757 = vsel %vm1250, %v3756, %v3750
    %v3758 = vsel %vm1252, %v3757, %v3754
    %3763 = vrot.lane.b32.xlu0 %v2304, 32
    %v3764 = vpop.permute.xlu0 %3763
    %3765 = vrot.lane.b32.xlu0 %v2305, 32
    %v3766 = vpop.permute.xlu0 %3765
    %3767 = vrot.lane.b32.xlu0 %v2306, 32
    %v3768 = vpop.permute.xlu0 %3767
    %3769 = vrot.lane.b32.xlu0 %v2307, 32
    %v3770 = vpop.permute.xlu0 %3769
    %3776 = vrot.lane.b32.xlu0 %v2313, 32
    %v3777 = vpop.permute.xlu0 %3776
    %v3780 = vsel %vm33, %v3076, 0
    %v3783 = vsel %vm33, %v3758, 0
    %3785 = vmatprep.subr.mxu0 0.0
    %3786 = vmatpush1.msra.mxu0 %v3764
    %3787 = vmatprep.subr.mxu0 0.0
    %3788 = vmatpush1.msra.mxu0 %v3766
    %3789 = vmatprep.subr.mxu0 0.0
    %3790 = vmatpush1.msra.mxu0 %v3768
    %3791 = vmatprep.subr.mxu0 0.0
    %3792 = vmatpush1.msra.mxu0 %v3770
    %3793 = vmatprep.subr.mxu0 0.0
    %3794 = vmatpush1.msra.mxu0 0.0
    %3795 = vmatprep.subr.mxu0 0.0
    %3796 = vmatpush1.msra.mxu0 0.0
    %3797 = vmatprep.subr.mxu0 0.0
    %3798 = vmatpush1.msra.mxu0 0.0
    %3799 = vmatprep.subr.mxu0 0.0
    %3800 = vmatpush1.msra.mxu0 0.0
    %3801 = vmatprep.subr.mxu0 0.0
    %3802 = vmatpush1.msra.mxu0 0.0
    %3803 = vmatprep.subr.mxu0 0.0
    %3804 = vmatpush1.msra.mxu0 0.0
    %3805 = vmatprep.subr.mxu0 0.0
    %3806 = vmatpush1.msra.mxu0 0.0
    %3807 = vmatprep.subr.mxu0 0.0
    %3808 = vmatpush1.msra.mxu0 0.0
    %3809 = vmatprep.subr.mxu0 0.0
    %3810 = vmatpush1.msra.mxu0 0.0
    %3811 = vmatprep.subr.mxu0 0.0
    %3812 = vmatpush1.msra.mxu0 0.0
    %3813 = vmatprep.subr.mxu0 0.0
    %3814 = vmatpush1.msra.mxu0 0.0
    %3815 = vmatprep.subr.mxu0 0.0
    %3816 = vmatpush1.msra.mxu0 0.0
    %3817 = vmatprep.subr.mxu0 0.0
    %3818 = vmatpush1.msra.mxu0 0.0
    %3819 = vmatprep.subr.mxu0 0.0
    %3820 = vmatpush1.msra.mxu0 0.0
    %3821 = vmatprep.subr.mxu0 0.0
    %3822 = vmatpush1.msra.mxu0 0.0
    %3823 = vmatprep.subr.mxu0 0.0
    %3824 = vmatpush1.msra.mxu0 0.0
    %3825 = vmatprep.subr.mxu0 0.0
    %3826 = vmatpush1.msra.mxu0 0.0
    %3827 = vmatprep.subr.mxu0 0.0
    %3828 = vmatpush1.msra.mxu0 0.0
    %3829 = vmatprep.subr.mxu0 0.0
    %3830 = vmatpush1.msra.mxu0 0.0
    %3831 = vmatprep.subr.mxu0 0.0
    %3832 = vmatpush1.msra.mxu0 0.0
    %3833 = vmatprep.subr.mxu0 0.0
    %3834 = vmatpush1.msra.mxu0 0.0
    %3835 = vmatprep.subr.mxu0 0.0
    %3836 = vmatpush1.msra.mxu0 0.0
    %3837 = vmatprep.subr.mxu0 0.0
    %3838 = vmatpush1.msra.mxu0 0.0
    %3839 = vmatprep.subr.mxu0 0.0
    %3840 = vmatpush1.msra.mxu0 0.0
    %3841 = vmatprep.subr.mxu0 0.0
    %3842 = vmatpush1.msra.mxu0 0.0
    %3843 = vmatprep.subr.mxu0 0.0
    %3844 = vmatpush1.msra.mxu0 0.0
    %3845 = vmatprep.subr.mxu0 0.0
    %3846 = vmatpush1.msra.mxu0 0.0
    %3847 = vmatprep.subr.mxu0 0.0
    %3848 = vmatpush1.msra.mxu0 0.0
    %3849 = vmatprep.mubr.f32.mxu0 0.0
    %3850 = vmatmul.mubr.f32.gmra.mrb[0].mxu0 %v3780
    %v3851 = vpop.f32.mrb[0].mxu0
    %v3852 = vadd.f32 %v3777, %v3851
    %v3853 = vpop.f32.mrb[0].mxu0
    %3854 = vmatprep.mubr.f32.mxu0 0.0
    %3855 = vmatmul.mubr.f32.gmra.mrb[0].mxu0 %v3783
    %v3856 = vpop.f32.mrb[0].mxu0
    %v3857 = vadd.f32 %v3777, %v3856
    %v3858 = vpop.f32.mrb[0].mxu0
    %3859 = vdwg.mxu0
    %v3860 = vadd.f32 %v2301, %v3852
    %v3861 = vadd.f32 %v2302, %v3857
    %v3862 = vsel %vm33, %v3860, 0.0
    %3863 = vadd.xlane.f32.xlu0 %v3862
    %v3864 = vpop.xlane.xlu0 %3863
    %v3865 = vsel %vm33, %v3861, 0.0
    %3866 = vadd.xlane.f32.xlu0 %v3865
    %v3867 = vpop.xlane.xlu0 %3866
    %v3868 = vmul.f32 %v3864, %v2045
    %v3869 = vmul.f32 %v3867, %v2045
    %v3870 = vsub.f32 %v3860, %v3868
    %v3871 = vsub.f32 %v3861, %v3869
    %v3872 = vmul.f32 %v3870, %v3870
    %v3873 = vmul.f32 %v3871, %v3871
    %v3874 = vsel %vm33, %v3872, 0.0
    %3875 = vadd.xlane.f32.xlu0 %v3874
    %v3876 = vpop.xlane.xlu0 %3875
    %v3877 = vsel %vm33, %v3873, 0.0
    %3878 = vadd.xlane.f32.xlu0 %v3877
    %v3879 = vpop.xlane.xlu0 %3878
    %v3880 = vmul.f32 %v3876, %v2045
    %v3881 = vmul.f32 %v3879, %v2045
    %v3882 = vadd.f32 %v3880, 1e-05
    %v3883 = vadd.f32 %v3881, 1e-05
    %v3884 = vrsqrt.pop %v3882
    %v3885 = vrsqrt.pop %v3883
    %v3886 = vmul.f32 %v3870, %v3884
    %v3887 = vmul.f32 %v3871, %v3885
    %v3888 = vlaneseq
    %v3889 = vshrl.u32 %v3888, 7
    %v3890 = vsub.s32 2, %v3889
    %v3891 = vrot.slane %v2309, %v3890
    %v3892 = vmul.f32 %v3886, %v3891
    %v3893 = vmul.f32 %v3887, %v3891
    %v3894 = vlaneseq
    %v3895 = vshrl.u32 %v3894, 7
    %v3896 = vsub.s32 3, %v3895
    %v3897 = vrot.slane %v2309, %v3896
    %v3898 = vadd.f32 %v3892, %v3897
    %v3899 = vadd.f32 %v3893, %v3897
    %s3900 = scalar_lea.vmem %s4, 32
    %v3901 = vld [vmem:[%s3900] sm:$0xff]
    %v3902 = vld [vmem:[%s3900 + $0x8] sm:$0xff]
    %v3903 = vld [vmem:[%s3900 + $0x10] sm:$0xff]
    %v3904 = vld [vmem:[%s3900 + $0x18] sm:$0xff]
    %v3905 = vlaneseq
    %v3906 = vshrl.u32 %v3905, 7
    %v3907 = vsub.s32 1, %v3906
    %v3908 = vrot.slane %v2309, %v3907
    %v3910 = vsel %vm33, %v3898, 0
    %v3913 = vsel %vm33, %v3899, 0
    %3915 = vmatprep.subr.mxu0 0.0
    %3916 = vmatpush1.msra.mxu0 %v3901
    %3917 = vmatprep.subr.mxu0 0.0
    %3918 = vmatpush1.msra.mxu0 %v3902
    %3919 = vmatprep.subr.mxu0 0.0
    %3920 = vmatpush1.msra.mxu0 %v3903
    %3921 = vmatprep.subr.mxu0 0.0
    %3922 = vmatpush1.msra.mxu0 %v3904
    %3923 = vmatprep.subr.mxu0 0.0
    %3924 = vmatpush1.msra.mxu0 0.0
    %3925 = vmatprep.subr.mxu0 0.0
    %3926 = vmatpush1.msra.mxu0 0.0
    %3927 = vmatprep.subr.mxu0 0.0
    %3928 = vmatpush1.msra.mxu0 0.0
    %3929 = vmatprep.subr.mxu0 0.0
    %3930 = vmatpush1.msra.mxu0 0.0
    %3931 = vmatprep.subr.mxu0 0.0
    %3932 = vmatpush1.msra.mxu0 0.0
    %3933 = vmatprep.subr.mxu0 0.0
    %3934 = vmatpush1.msra.mxu0 0.0
    %3935 = vmatprep.subr.mxu0 0.0
    %3936 = vmatpush1.msra.mxu0 0.0
    %3937 = vmatprep.subr.mxu0 0.0
    %3938 = vmatpush1.msra.mxu0 0.0
    %3939 = vmatprep.subr.mxu0 0.0
    %3940 = vmatpush1.msra.mxu0 0.0
    %3941 = vmatprep.subr.mxu0 0.0
    %3942 = vmatpush1.msra.mxu0 0.0
    %3943 = vmatprep.subr.mxu0 0.0
    %3944 = vmatpush1.msra.mxu0 0.0
    %3945 = vmatprep.subr.mxu0 0.0
    %3946 = vmatpush1.msra.mxu0 0.0
    %3947 = vmatprep.subr.mxu0 0.0
    %3948 = vmatpush1.msra.mxu0 0.0
    %3949 = vmatprep.subr.mxu0 0.0
    %3950 = vmatpush1.msra.mxu0 0.0
    %3951 = vmatprep.subr.mxu0 0.0
    %3952 = vmatpush1.msra.mxu0 0.0
    %3953 = vmatprep.subr.mxu0 0.0
    %3954 = vmatpush1.msra.mxu0 0.0
    %3955 = vmatprep.subr.mxu0 0.0
    %3956 = vmatpush1.msra.mxu0 0.0
    %3957 = vmatprep.subr.mxu0 0.0
    %3958 = vmatpush1.msra.mxu0 0.0
    %3959 = vmatprep.subr.mxu0 0.0
    %3960 = vmatpush1.msra.mxu0 0.0
    %3961 = vmatprep.subr.mxu0 0.0
    %3962 = vmatpush1.msra.mxu0 0.0
    %3963 = vmatprep.subr.mxu0 0.0
    %3964 = vmatpush1.msra.mxu0 0.0
    %3965 = vmatprep.subr.mxu0 0.0
    %3966 = vmatpush1.msra.mxu0 0.0
    %3967 = vmatprep.subr.mxu0 0.0
    %3968 = vmatpush1.msra.mxu0 0.0
    %3969 = vmatprep.subr.mxu0 0.0
    %3970 = vmatpush1.msra.mxu0 0.0
    %3971 = vmatprep.subr.mxu0 0.0
    %3972 = vmatpush1.msra.mxu0 0.0
    %3973 = vmatprep.subr.mxu0 0.0
    %3974 = vmatpush1.msra.mxu0 0.0
    %3975 = vmatprep.subr.mxu0 0.0
    %3976 = vmatpush1.msra.mxu0 0.0
    %3977 = vmatprep.subr.mxu0 0.0
    %3978 = vmatpush1.msra.mxu0 0.0
    %3979 = vmatprep.mubr.f32.mxu0 0.0
    %3980 = vmatmul.mubr.f32.gmra.mrb[0].mxu0 %v3910
    %v3981 = vpop.f32.mrb[0].mxu0
    %v3982 = vadd.f32 %v3908, %v3981
    %v3983 = vpop.f32.mrb[0].mxu0
    %3984 = vmatprep.mubr.f32.mxu0 0.0
    %3985 = vmatmul.mubr.f32.gmra.mrb[0].mxu0 %v3913
    %v3986 = vpop.f32.mrb[0].mxu0
    %v3987 = vadd.f32 %v3908, %v3986
    %v3988 = vpop.f32.mrb[0].mxu0
    %3989 = vdwg.mxu0
    %v3990 = vmax.f32 %v3982, 0.0
    %v3991 = vmax.f32 %v3987, 0.0
    %s3992 = scalar_lea.vmem %s5, 64
    %v3993 = vld [vmem:[%s3992] sm:$0xff]
    %v3994 = vld [vmem:[%s3992 + $0x8] sm:$0xff]
    %v3995 = vld [vmem:[%s3992 + $0x10] sm:$0xff]
    %v3996 = vld [vmem:[%s3992 + $0x18] sm:$0xff]
    %v3997 = vld [vmem:[%s3992 + $0x20] sm:$0xff]
    %v3998 = vld [vmem:[%s3992 + $0x28] sm:$0xff]
    %v3999 = vld [vmem:[%s3992 + $0x30] sm:$0xff]
    %v4000 = vld [vmem:[%s3992 + $0x38] sm:$0xff]
    %v4001 = vlaneseq
    %v4002 = vshrl.u32 %v4001, 7
    %v4003 = vsub.s32 4, %v4002
    %v4004 = vrot.slane %v2309, %v4003
    %v4006 = vsel %vm2181, %v3990, 0
    %v4009 = vsel %vm2181, %v3991, 0
    %4011 = vmatprep.subr.mxu0 0.0
    %4012 = vmatpush1.msra.mxu0 %v3993
    %4013 = vmatprep.subr.mxu0 0.0
    %4014 = vmatpush1.msra.mxu0 %v3994
    %4015 = vmatprep.subr.mxu0 0.0
    %4016 = vmatpush1.msra.mxu0 %v3995
    %4017 = vmatprep.subr.mxu0 0.0
    %4018 = vmatpush1.msra.mxu0 %v3996
    %4019 = vmatprep.subr.mxu0 0.0
    %4020 = vmatpush1.msra.mxu0 %v3997
    %4021 = vmatprep.subr.mxu0 0.0
    %4022 = vmatpush1.msra.mxu0 %v3998
    %4023 = vmatprep.subr.mxu0 0.0
    %4024 = vmatpush1.msra.mxu0 %v3999
    %4025 = vmatprep.subr.mxu0 0.0
    %4026 = vmatpush1.msra.mxu0 %v4000
    %4027 = vmatprep.subr.mxu0 0.0
    %4028 = vmatpush1.msra.mxu0 0.0
    %4029 = vmatprep.subr.mxu0 0.0
    %4030 = vmatpush1.msra.mxu0 0.0
    %4031 = vmatprep.subr.mxu0 0.0
    %4032 = vmatpush1.msra.mxu0 0.0
    %4033 = vmatprep.subr.mxu0 0.0
    %4034 = vmatpush1.msra.mxu0 0.0
    %4035 = vmatprep.subr.mxu0 0.0
    %4036 = vmatpush1.msra.mxu0 0.0
    %4037 = vmatprep.subr.mxu0 0.0
    %4038 = vmatpush1.msra.mxu0 0.0
    %4039 = vmatprep.subr.mxu0 0.0
    %4040 = vmatpush1.msra.mxu0 0.0
    %4041 = vmatprep.subr.mxu0 0.0
    %4042 = vmatpush1.msra.mxu0 0.0
    %4043 = vmatprep.subr.mxu0 0.0
    %4044 = vmatpush1.msra.mxu0 0.0
    %4045 = vmatprep.subr.mxu0 0.0
    %4046 = vmatpush1.msra.mxu0 0.0
    %4047 = vmatprep.subr.mxu0 0.0
    %4048 = vmatpush1.msra.mxu0 0.0
    %4049 = vmatprep.subr.mxu0 0.0
    %4050 = vmatpush1.msra.mxu0 0.0
    %4051 = vmatprep.subr.mxu0 0.0
    %4052 = vmatpush1.msra.mxu0 0.0
    %4053 = vmatprep.subr.mxu0 0.0
    %4054 = vmatpush1.msra.mxu0 0.0
    %4055 = vmatprep.subr.mxu0 0.0
    %4056 = vmatpush1.msra.mxu0 0.0
    %4057 = vmatprep.subr.mxu0 0.0
    %4058 = vmatpush1.msra.mxu0 0.0
    %4059 = vmatprep.subr.mxu0 0.0
    %4060 = vmatpush1.msra.mxu0 0.0
    %4061 = vmatprep.subr.mxu0 0.0
    %4062 = vmatpush1.msra.mxu0 0.0
    %4063 = vmatprep.subr.mxu0 0.0
    %4064 = vmatpush1.msra.mxu0 0.0
    %4065 = vmatprep.subr.mxu0 0.0
    %4066 = vmatpush1.msra.mxu0 0.0
    %4067 = vmatprep.subr.mxu0 0.0
    %4068 = vmatpush1.msra.mxu0 0.0
    %4069 = vmatprep.subr.mxu0 0.0
    %4070 = vmatpush1.msra.mxu0 0.0
    %4071 = vmatprep.subr.mxu0 0.0
    %4072 = vmatpush1.msra.mxu0 0.0
    %4073 = vmatprep.subr.mxu0 0.0
    %4074 = vmatpush1.msra.mxu0 0.0
    %4075 = vmatprep.mubr.f32.mxu0 0.0
    %4076 = vmatmul.mubr.f32.gmra.mrb[0].mxu0 %v4006
    %v4077 = vpop.f32.mrb[0].mxu0
    %v4078 = vadd.f32 %v4004, %v4077
    %v4079 = vpop.f32.mrb[0].mxu0
    %4080 = vmatprep.mubr.f32.mxu0 0.0
    %4081 = vmatmul.mubr.f32.gmra.mrb[0].mxu0 %v4009
    %v4082 = vpop.f32.mrb[0].mxu0
    %v4083 = vadd.f32 %v4004, %v4082
    %v4084 = vpop.f32.mrb[0].mxu0
    %4085 = vdwg.mxu0
    %v4086 = vadd.f32 %v3898, %v4078
    %v4087 = vadd.f32 %v3899, %v4083
    %v4088 = vsel %vm33, %v4086, 0.0
    %4089 = vadd.xlane.f32.xlu0 %v4088
    %v4090 = vpop.xlane.xlu0 %4089
    %v4091 = vsel %vm33, %v4087, 0.0
    %4092 = vadd.xlane.f32.xlu0 %v4091
    %v4093 = vpop.xlane.xlu0 %4092
    %v4094 = vmul.f32 %v4090, %v2045
    %v4095 = vmul.f32 %v4093, %v2045
    %v4096 = vsub.f32 %v4086, %v4094
    %v4097 = vsub.f32 %v4087, %v4095
    %v4098 = vmul.f32 %v4096, %v4096
    %v4099 = vmul.f32 %v4097, %v4097
    %v4100 = vsel %vm33, %v4098, 0.0
    %4101 = vadd.xlane.f32.xlu0 %v4100
    %v4102 = vpop.xlane.xlu0 %4101
    %v4103 = vsel %vm33, %v4099, 0.0
    %4104 = vadd.xlane.f32.xlu0 %v4103
    %v4105 = vpop.xlane.xlu0 %4104
    %v4106 = vmul.f32 %v4102, %v2045
    %v4107 = vmul.f32 %v4105, %v2045
    %v4108 = vadd.f32 %v4106, 1e-05
    %v4109 = vadd.f32 %v4107, 1e-05
    %v4110 = vrsqrt.pop %v4108
    %v4111 = vrsqrt.pop %v4109
    %v4112 = vmul.f32 %v4096, %v4110
    %v4113 = vmul.f32 %v4097, %v4111
    %v4114 = vlaneseq
    %v4115 = vshrl.u32 %v4114, 7
    %v4116 = vsub.s32 5, %v4115
    %v4117 = vrot.slane %v2309, %v4116
    %v4118 = vmul.f32 %v4112, %v4117
    %v4119 = vmul.f32 %v4113, %v4117
    %v4120 = vlaneseq
    %v4121 = vshrl.u32 %v4120, 7
    %v4122 = vsub.s32 6, %v4121
    %v4123 = vrot.slane %v2309, %v4122
    %v4124 = vadd.f32 %v4118, %v4123
    %v4125 = vadd.f32 %v4119, %v4123
    %v4126 = vsel %vm311, 0.0, %v4124
    %v4127 = vsel %vm312, 0.0, %v4125
    %4128 = vst.msk [vmem:[#allocation2] sm:$0xff] %vm33, %v4126
    %4129 = vst.msk [vmem:[#allocation2 + $0x8] sm:$0xff] %vm33, %v4127
    // Predicated region
    $region30: #{cnn_transformer_forward.1} parent=1 // pred_check
      _
    $region31: #{cnn_transformer_forward.1} parent=1 // pred_check_branch
      %4131 = sbr.rel (0) target = $region33
    $region32: #{cnn_transformer_forward.1} parent=1 // pred_region
      %s4133 = ssub.s32 256, 256
      %4134 = vsyncadd [#allocation3], %s4133
      %s4135 = sshll.u32 [#allocation2], 4
      %s4136 = int_to_ptr.vmem [resolvable:$true] %s4135
      %4141 = dma.vmem_to_hbm [thread:$0]  %s4136, 256, %s7, [#allocation3], 128, 128, 8
    $region33: #{cnn_transformer_forward.1} parent=1 // pred_fallthru
      _
    // Predicated region
    $region34: #{cnn_transformer_forward.1} parent=1 // pred_check
      _
    $region35: #{cnn_transformer_forward.1} parent=1 // pred_check_branch
      %4143 = sbr.rel (0) target = $region37
    $region36: #{cnn_transformer_forward.1} parent=1 // pred_region
      %4144 = dma.done [#allocation3], 256
    $region37: #{cnn_transformer_forward.1} parent=1 // pred_fallthru
      _
    %4145 = vsyncpa [#allocation3], 1

</llo_original>
